<compile_context>
chip_gen: v7x
topology: tpu7x:2x2x1
jax: 0.10.0
libtpu: 0.0.40
codegen_flags: <defaults>
</compile_context>

<pallas_src>
import functools

import numpy as np

import jax
import jax.numpy as jnp
from jax.experimental import pallas as pl
from jax.experimental.pallas import tpu as pltpu


# --------------------------------- small helpers ----------------------------------
def _round_up(n, m):
    return -(-n // m) * m


@functools.lru_cache(maxsize=None)
def _vmem_capacity_bytes():
    """Per-core VMEM capacity (128 MiB on v5e/v6e, 64 MiB on v7x); safe fallback."""
    try:
        cap = int(pltpu.get_tpu_info().vmem_capacity_bytes)
        if cap > 0:
            return cap
    except Exception:
        pass
    return 64 * 1024 * 1024  # conservative (v7x-sized) fallback


def _vmem_limit(need_bytes, cap):
    """Explicit scoped-VMEM limit: generous headroom, capped below physical VMEM."""
    limit = max(int(need_bytes) * 2, 32 * 1024 * 1024)
    return int(min(limit, int(cap * 0.9)))


@functools.lru_cache(maxsize=None)
def _buffered_single_ok():
    """Probe (outside any trace) whether pipeline_mode=pl.Buffered(1) works end-to-end."""
    try:
        spec = pl.BlockSpec((8, 128), lambda i: (0, 0), pipeline_mode=pl.Buffered(1))
    except Exception:
        return False

    def _k(x_ref, o_ref):
        o_ref[...] = x_ref[...] + 1.0

    try:
        with jax.ensure_compile_time_eval():
            x = jnp.zeros((8, 128), jnp.float32)
            out = pl.pallas_call(
                _k,
                out_shape=jax.ShapeDtypeStruct((8, 128), jnp.float32),
                grid=(2,),
                in_specs=[spec],
                out_specs=pl.BlockSpec((8, 128), lambda i: (0, 0)),
            )(x)
            jax.block_until_ready(out)
        return True
    except Exception:
        return False


def _const_spec(block_shape, index_map):
    """BlockSpec for an operand whose block never changes across the grid.

    Single-buffer it when supported (halves the VMEM held by large constant weights,
    e.g. a 32 MiB bf16 W_hh at H=2048 would otherwise double-buffer to 64 MiB);
    otherwise fall back to the default spec.
    """
    if _buffered_single_ok():
        return pl.BlockSpec(block_shape, index_map, pipeline_mode=pl.Buffered(1))
    return pl.BlockSpec(block_shape, index_map)


# ------------------------- hoisted projection: x @ W + b -------------------------
def _matmul_bias_kernel(x_ref, w_ref, b_ref, o_ref):
    # x: (row_blk, Din) bf16/f32, w: (Din, col_blk) bf16, b: (1, col_blk) f32
    o_ref[...] = (jnp.dot(x_ref[...].astype(w_ref.dtype), w_ref[...],
                          preferred_element_type=jnp.float32)
                  + b_ref[...]).astype(o_ref.dtype)


def matmul_bias(x2d, w, b):
    """x2d: (N, Din), w: (Din, G) bf16, b: (1, G) f32 -> (N, G) f32.

    Row-padded + row/column tiled, both grid axes 'parallel' (megacore on v7x).
    """
    N, Din = x2d.shape
    G = w.shape[-1]

    # Row tiling: pad N so any row count keeps a near-optimal block (no divisor fallback).
    row_blk = 512 if N >= 512 else _round_up(max(N, 8), 8)
    N_pad = _round_up(N, row_blk)
    if N_pad != N:
        x2d = jnp.pad(x2d, ((0, N_pad - N), (0, 0)))

    # Column (lane) tiling of the 4H output: keeps the weight + f32 output blocks
    # inside v7x's 64 MiB VMEM and gives the megacore a second parallel axis.
    col_blk = G
    if G % 128 == 0:
        for cand in (2048, 1024, 512, 256, 128):
            if G % cand == 0:
                col_blk = cand
                break

    n_row = N_pad // row_blk
    n_col = G // col_blk

    w_spec_cls = _const_spec if n_col == 1 else pl.BlockSpec  # constant only if untiled
    cap = _vmem_capacity_bytes()
    need = (2 * row_blk * Din * x2d.dtype.itemsize       # x blocks (double-buffered)
            + 2 * Din * col_blk * w.dtype.itemsize        # weight blocks
            + 2 * col_blk * 4                             # bias blocks
            + 2 * row_blk * col_blk * 4)                  # f32 output blocks

    out = pl.pallas_call(
        _matmul_bias_kernel,
        out_shape=jax.ShapeDtypeStruct((N_pad, G), jnp.float32),
        grid=(n_col, n_row),
        in_specs=[pl.BlockSpec((row_blk, Din), lambda j, i: (i, 0)),
                  w_spec_cls((Din, col_blk), lambda j, i: (0, j)),
                  w_spec_cls((1, col_blk), lambda j, i: (0, j))],
        out_specs=pl.BlockSpec((row_blk, col_blk), lambda j, i: (i, j)),
        compiler_params=pltpu.CompilerParams(
            dimension_semantics=("parallel", "parallel"),
            vmem_limit_bytes=_vmem_limit(need, cap)),
    )(x2d, w, b)
    return out if N_pad == N else out[:N]


# ------------------------------ recurrent LSTM kernel -----------------------------
def _lstm_rec_kernel(*refs, hidden, t_blk, seq_len, needs_mask, fuse_head, batch_head):
    if fuse_head:
        if batch_head:
            (gx_ref, whh_ref, wout_ref, bout_ref,
             pred_ref, hn_ref, cn_ref, h_sc, c_sc, hall_sc) = refs
        else:
            (gx_ref, whh_ref, wout_ref, bout_ref,
             pred_ref, hn_ref, cn_ref, h_sc, c_sc) = refs
            hall_sc = None
    else:
        gx_ref, whh_ref, y_ref, hn_ref, cn_ref, h_sc, c_sc = refs

    H = hidden
    tb = pl.program_id(1)                 # time-block index (inner, sequential axis)

    @pl.when(tb == 0)
    def _():                              # fresh (h, c) state for this batch shard
        h_sc[...] = jnp.zeros_like(h_sc)
        c_sc[...] = jnp.zeros_like(c_sc)

    whh = whh_ref[...]                    # (H, 4H) bf16 — hoisted out of the time loop
    if fuse_head:
        wout = wout_ref[...]              # (H, O) f32
        bout = bout_ref[...]              # (1, O) f32

    def step(t, carry):
        h_prev, c_prev = carry            # f32 (Bs, H)
        gates = (gx_ref[t]
                 + jnp.dot(h_prev.astype(whh.dtype), whh,
                           preferred_element_type=jnp.float32))    # (Bs, 4H)
        # Gate columns were permuted at init to (i, f, o, g): sigmoid only over the
        # first 3H lanes, tanh over the last H — no wasted EUP work on the g quarter.
        sig = jax.nn.sigmoid(gates[:, :3 * H])
        i_g = sig[:, 0:H]
        f_g = sig[:, H:2 * H]
        o_g = sig[:, 2 * H:3 * H]
        g_g = jnp.tanh(gates[:, 3 * H:4 * H])
        c_new = f_g * c_prev + i_g * g_g
        h_new = o_g * jnp.tanh(c_new)
        if needs_mask:                    # padded tail timesteps: freeze the state
            valid = (tb * t_blk + t) < seq_len
            h_new = jnp.where(valid, h_new, h_prev)
            c_new = jnp.where(valid, c_new, c_prev)
        if fuse_head:
            if batch_head:
                hall_sc[t] = h_new        # defer head to one batched matmul per block
            else:
                p = jnp.dot(h_new, wout, preferred_element_type=jnp.float32) + bout
                pred_ref[t] = p.astype(pred_ref.dtype)
        else:
            y_ref[t] = h_new.astype(y_ref.dtype)      # bf16 inter-layer activations
        return h_new, c_new

    # Partial unroll: keeps LLO scheduling visibility without blowing the 64-vreg budget.
    h_last, c_last = jax.lax.fori_loop(0, t_blk, step, (h_sc[...], c_sc[...]),
                                       unroll=min(t_blk, 8))
    h_sc[...] = h_last
    c_sc[...] = c_last

    if fuse_head and batch_head:
        # One lane-dense head matmul + one store per time block (not per timestep).
        tb_n, bs_n, o_n = pred_ref.shape
        hid = hall_sc[...].reshape(tb_n * bs_n, H)            # layout-trivial (Bs%8==0)
        p = jnp.dot(hid, wout, preferred_element_type=jnp.float32) + bout
        pred_ref[...] = p.reshape(tb_n, bs_n, o_n).astype(pred_ref.dtype)

    @pl.when(tb == pl.num_programs(1) - 1)
    def _():
        hn_ref[...] = h_last.astype(hn_ref.dtype)
        cn_ref[...] = c_last.astype(cn_ref.dtype)


def _plan_time_block(T, Bs, G, H, O):
    """Pick the time block from a per-generation VMEM budget (64 MiB v7x, 128 MiB v5e/v6e)."""
    cap = _vmem_capacity_bytes()
    budget = int(cap * 0.7)
    wbufs = 1 if _buffered_single_ok() else 2
    resident = wbufs * H * G * 2                     # W_hh (bf16)
    resident += wbufs * (H * O * 4 + max(O, 128) * 4)  # head weight + bias
    resident += 2 * Bs * H * 4                       # h/c scratch
    resident += 2 * 2 * Bs * H * 4                   # h_n / c_n output blocks
    per_t = 2 * Bs * G * 4                           # gx block (f32, double-buffered)
    per_t += Bs * H * 4                              # per-block hidden-state scratch
    per_t += 2 * max(Bs * H * 2, Bs * O * 4)         # y (bf16) or pred (f32) out block
    avail = max(budget - resident, per_t)
    t_blk = int(max(1, min(T, 128, avail // per_t)))
    t_pad = _round_up(T, t_blk)
    return t_blk, t_pad


def lstm_recurrent_layer(gx, whh, *, t_blk, seq_len, n_b, head=None):
    """Recurrence only (x-projection already folded into gx).

    gx: (T_pad, B, 4H) f32 pre-activations; whh: (H, 4H) bf16.
    head=None      -> (y:(T_pad,B,H) bf16, h_n:(B,H) f32, c_n:(B,H) f32)
    head=(w_t, b)  -> (pred:(T_pad,B,O) f32, h_n, c_n)   [linear head fused in]
    """
    T_pad, B, G = gx.shape
    H = G // 4
    Bs = B // n_b
    n_t = T_pad // t_blk
    needs_mask = (T_pad != seq_len)
    cap = _vmem_capacity_bytes()
    wbufs = 1 if _buffered_single_ok() else 2

    grid = (n_b, n_t)                                 # batch shards parallel (v7x megacore)
    dims = ("parallel", "arbitrary")
    gx_spec = pl.BlockSpec((t_blk, Bs, G), lambda b, t: (t, b, 0))
    whh_spec = _const_spec((H, G), lambda b, t: (0, 0))
    hn_spec = pl.BlockSpec((Bs, H), lambda b, t: (b, 0))
    state_scratch = [pltpu.VMEM((Bs, H), jnp.float32),
                     pltpu.VMEM((Bs, H), jnp.float32)]

    need = wbufs * H * G * 2 + 6 * Bs * H * 4 + 2 * t_blk * Bs * G * 4

    if head is None:
        need += 2 * t_blk * Bs * H * 2
        kern = functools.partial(_lstm_rec_kernel, hidden=H, t_blk=t_blk,
                                 seq_len=seq_len, needs_mask=needs_mask,
                                 fuse_head=False, batch_head=False)
        return pl.pallas_call(
            kern,
            out_shape=(jax.ShapeDtypeStruct((T_pad, B, H), jnp.bfloat16),
                       jax.ShapeDtypeStruct((B, H), jnp.float32),
                       jax.ShapeDtypeStruct((B, H), jnp.float32)),
            grid=grid,
            in_specs=[gx_spec, whh_spec],
            out_specs=(pl.BlockSpec((t_blk, Bs, H), lambda b, t: (t, b, 0)),
                       hn_spec, hn_spec),
            scratch_shapes=state_scratch,
            compiler_params=pltpu.CompilerParams(
                dimension_semantics=dims,
                vmem_limit_bytes=_vmem_limit(need, cap)),
        )(gx, whh)

    w_out_t, b_out = head
    O = w_out_t.shape[-1]
    batch_head = (Bs % 8 == 0)            # batched, lane-dense head (falls back for tiny B)
    need += wbufs * (H * O * 4 + max(O, 128) * 4) + 2 * t_blk * Bs * O * 4
    scratch = list(state_scratch)
    if batch_head:
        need += t_blk * Bs * H * 4
        scratch.append(pltpu.VMEM((t_blk, Bs, H), jnp.float32))
    kern = functools.partial(_lstm_rec_kernel, hidden=H, t_blk=t_blk,
                             seq_len=seq_len, needs_mask=needs_mask,
                             fuse_head=True, batch_head=batch_head)
    return pl.pallas_call(
        kern,
        out_shape=(jax.ShapeDtypeStruct((T_pad, B, O), jnp.float32),
                   jax.ShapeDtypeStruct((B, H), jnp.float32),
                   jax.ShapeDtypeStruct((B, H), jnp.float32)),
        grid=grid,
        in_specs=[gx_spec, whh_spec,
                  _const_spec((H, O), lambda b, t: (0, 0)),
                  _const_spec((1, O), lambda b, t: (0, 0))],
        out_specs=(pl.BlockSpec((t_blk, Bs, O), lambda b, t: (t, b, 0)),
                   hn_spec, hn_spec),
        scratch_shapes=scratch,
        compiler_params=pltpu.CompilerParams(
            dimension_semantics=dims,
            vmem_limit_bytes=_vmem_limit(need, cap)),
    )(gx, whh, w_out_t, b_out)


# ----------------------------------- parameters -----------------------------------
def _to_ifog(w):
    """Reorder PyTorch gate packing (i, f, g, o) along dim 0 to kernel order (i, f, o, g)."""
    i, f, g, o = jnp.split(w, 4, axis=0)
    return jnp.concatenate([i, f, o, g], axis=0)


def init_raw_params(key, input_size, hidden_size, out_size, layers):
    """PyTorch-default init, PyTorch parameter layout (used by the pure-JAX reference)."""
    k = float(hidden_size) ** -0.5
    raw = {"lstm": []}
    for l in range(layers):
        d_in = input_size if l == 0 else hidden_size
        key, k1, k2, k3, k4 = jax.random.split(key, 5)
        raw["lstm"].append({
            "w_ih": jax.random.uniform(k1, (4 * hidden_size, d_in), jnp.float32, -k, k),
            "w_hh": jax.random.uniform(k2, (4 * hidden_size, hidden_size), jnp.float32, -k, k),
            "b_ih": jax.random.uniform(k3, (4 * hidden_size,), jnp.float32, -k, k),
            "b_hh": jax.random.uniform(k4, (4 * hidden_size,), jnp.float32, -k, k),
        })
    key, k5, k6 = jax.random.split(key, 3)
    raw["w_out"] = jax.random.uniform(k5, (out_size, hidden_size), jnp.float32, -k, k)
    raw["b_out"] = jax.random.uniform(k6, (out_size,), jnp.float32, -k, k)
    return raw


def prepare_params(raw):
    """Kernel-ready layout: gate order (i,f,o,g), transposed, bf16 weights, fused bias."""
    params = {"lstm": []}
    for lp in raw["lstm"]:
        w_ih = _to_ifog(lp["w_ih"])                      # (4H, Din)
        w_hh = _to_ifog(lp["w_hh"])                      # (4H, H)
        b = _to_ifog(lp["b_ih"] + lp["b_hh"])            # (4H,)
        params["lstm"].append({
            "wih": jnp.transpose(w_ih).astype(jnp.bfloat16),    # (Din, 4H)
            "whh": jnp.transpose(w_hh).astype(jnp.bfloat16),    # (H, 4H)
            "b": b.reshape(1, -1).astype(jnp.float32),          # (1, 4H)
        })
    params["w_out_t"] = jnp.transpose(raw["w_out"]).astype(jnp.float32)   # (H, O)
    params["b_out"] = raw["b_out"].reshape(1, -1).astype(jnp.float32)     # (1, O)
    return params


# ------------------------------------ model glue -----------------------------------
@jax.jit
def lstm_model_forward(seq, params):
    """Mirrors LSTMmodel.forward: returns (pred, (h_n, c_n)).

    seq: (batch, time, input_size)   [batch_first, like PyTorch]
    pred: (batch, time, out_size);  h_n, c_n: (layers, batch, hidden_size)
    """
    # Time-major, bf16 staging (the gemm consumes bf16 anyway -> bit-identical downstream).
    x = jnp.transpose(seq, (1, 0, 2)).astype(jnp.bfloat16)     # (T, B, Din)
    T, B, _ = x.shape
    H = params["lstm"][0]["whh"].shape[0]
    G = 4 * H
    O = params["w_out_t"].shape[-1]

    # Split the batch over 2 TensorCores when each shard stays sublane-aligned.
    n_b = 2 if (B % 2 == 0 and (B // 2) % 8 == 0) else 1
    Bs = B // n_b
    t_blk, T_pad = _plan_time_block(T, Bs, G, H, O)
    if T_pad != T:
        x = jnp.pad(x, ((0, T_pad - T), (0, 0), (0, 0)))       # masked in-kernel

    n_layers = len(params["lstm"])
    hs, cs = [], []
    pred_tm = None
    for li, lp in enumerate(params["lstm"]):
        Din = x.shape[-1]
        # Hoisted, tiled, megacore-parallel input projection for ALL timesteps at once.
        gx = matmul_bias(x.reshape(T_pad * B, Din), lp["wih"], lp["b"])
        gx = gx.reshape(T_pad, B, G)                           # (T_pad, B, 4H) f32
        if li == n_layers - 1:
            pred_tm, hn, cn = lstm_recurrent_layer(
                gx, lp["whh"], t_blk=t_blk, seq_len=T, n_b=n_b,
                head=(params["w_out_t"], params["b_out"]))
        else:
            x, hn, cn = lstm_recurrent_layer(gx, lp["whh"], t_blk=t_blk,
                                             seq_len=T, n_b=n_b)
        hs.append(hn)
        cs.append(cn)

    pred = jnp.transpose(pred_tm[:T], (1, 0, 2))               # (B, T, O)
    return pred, (jnp.stack(hs), jnp.stack(cs))


# ----------------------------- pure-JAX reference check -----------------------------
def _reference_forward(seq, raw):
    """Plain-JAX LSTM mirroring the kernel's precision choices (bf16 weights /
    inter-layer activations, f32 state & accumulation) for a tight comparison."""
    x = jnp.transpose(seq, (1, 0, 2)).astype(jnp.bfloat16).astype(jnp.float32)
    T, B, _ = x.shape
    hs, cs = [], []
    y = None
    for lp in raw["lstm"]:
        wih = lp["w_ih"].astype(jnp.bfloat16).astype(jnp.float32)
        whh = lp["w_hh"].astype(jnp.bfloat16).astype(jnp.float32)
        b = (lp["b_ih"] + lp["b_hh"]).astype(jnp.float32)
        H = whh.shape[1]
        h = jnp.zeros((B, H), jnp.float32)
        c = jnp.zeros((B, H), jnp.float32)
        ys = []
        for t in range(T):
            h_q = h.astype(jnp.bfloat16).astype(jnp.float32)
            g = x[t] @ wih.T + h_q @ whh.T + b
            i = jax.nn.sigmoid(g[:, 0:H])
            f = jax.nn.sigmoid(g[:, H:2 * H])
            gg = jnp.tanh(g[:, 2 * H:3 * H])
            o = jax.nn.sigmoid(g[:, 3 * H:4 * H])
            c = f * c + i * gg
            h = o * jnp.tanh(c)
            ys.append(h)
        hs.append(h)
        cs.append(c)
        y = jnp.stack(ys)                                       # (T, B, H) f32
        x = y.astype(jnp.bfloat16).astype(jnp.float32)          # bf16 inter-layer staging
    pred = jnp.einsum("tbh,oh->tbo", y, raw["w_out"],
                      precision=jax.lax.Precision.HIGHEST) + raw["b_out"]
    return jnp.transpose(pred, (1, 0, 2)), (jnp.stack(hs), jnp.stack(cs))


if __name__ == "__main__":
    input_size, hidden_size, out_size, layers = 4, 32, 1, 2
    seq_len = 8

    key = jax.random.PRNGKey(0)
    key, pkey = jax.random.split(key)
    raw = init_raw_params(pkey, input_size, hidden_size, out_size, layers)
    params = prepare_params(raw)

    _buffered_single_ok()   # warm the single-buffer probe outside any trace

    # batch=16 exercises the 2-shard parallel recurrence + batched lane-dense head;
    # batch=2 exercises the small-batch fallback paths.
    for batch in (16, 2):
        key, xkey = jax.random.split(key)
        seq = jax.random.normal(xkey, (batch, seq_len, input_size), jnp.float32)

        pred, (h_n, c_n) = lstm_model_forward(seq, params)
        jax.block_until_ready((pred, h_n, c_n))

        assert pred.shape == (batch, seq_len, out_size)
        assert h_n.shape == (layers, batch, hidden_size)
        assert c_n.shape == (layers, batch, hidden_size)

        ref_pred, (ref_h, ref_c) = _reference_forward(seq, raw)
        np.testing.assert_allclose(np.asarray(pred), np.asarray(ref_pred),
                                   rtol=2e-2, atol=2e-2)
        np.testing.assert_allclose(np.asarray(h_n), np.asarray(ref_h),
                                   rtol=2e-2, atol=2e-2)
        np.testing.assert_allclose(np.asarray(c_n), np.asarray(ref_c),
                                   rtol=2e-2, atol=2e-2)

    print("KERNEL_OK")
</pallas_src>

<mosaic_0001>
module attributes {stable_mosaic.version = 11 : i64} {
  func.func @_k(%arg0: i32, %arg1: memref<8x128xf32, #tpu.memory_space<vmem>>, %arg2: memref<8x128xf32, #tpu.memory_space<vmem>>) attributes {dimension_semantics = [#tpu.dimension_semantics<arbitrary>], iteration_bounds = array<i64: 2>, scalar_prefetch = 0 : i64, scratch_operands = 0 : i64, tpu.core_type = #tpu.core_type<tc>, window_params = [{pipeline_mode = #tpu.pipeline_mode<synchronous>, transform_indices = @transform_0, window_bounds = array<i64: 8, 128>}, {pipeline_mode = #tpu.pipeline_mode<synchronous>, transform_indices = @transform_1, window_bounds = array<i64: 8, 128>}]} {
    %c0 = arith.constant 0 : index
    %c0_0 = arith.constant 0 : index
    %0 = vector.load %arg1[%c0, %c0_0] : memref<8x128xf32, #tpu.memory_space<vmem>>, vector<8x128xf32>
    %cst = arith.constant 1.000000e+00 : f32
    %1 = vector.broadcast %cst : f32 to vector<8x128xf32>
    %2 = arith.addf %0, %1 : vector<8x128xf32>
    %c0_1 = arith.constant 0 : index
    %c0_2 = arith.constant 0 : index
    %3 = vector.load %arg2[%c0_1, %c0_2] : memref<8x128xf32, #tpu.memory_space<vmem>>, vector<8x128xf32>
    tpu.vector_store %arg2[%c0_1, %c0_2], %2 {strides = array<i32>} : memref<8x128xf32, #tpu.memory_space<vmem>>, vector<8x128xf32>,
    return
  }
  func.func @transform_0(%arg0: i32) -> (i32, i32) {
    %c0_i32 = arith.constant 0 : i32
    %c0_i32_0 = arith.constant 0 : i32
    %c0_i32_1 = arith.constant 0 : i32
    return %c0_i32, %c0_i32_0 : i32, i32
  }
  func.func @transform_1(%arg0: i32) -> (i32, i32) {
    %c0_i32 = arith.constant 0 : i32
    %c0_i32_0 = arith.constant 0 : i32
    %c0_i32_1 = arith.constant 0 : i32
    return %c0_i32, %c0_i32_0 : i32, i32
  }
}

module attributes {stable_mosaic.version = 11 : i64} {
  func.func @_matmul_bias_kernel(%arg0: i32, %arg1: i32, %arg2: memref<128x4xbf16, #tpu.memory_space<vmem>>, %arg3: memref<4x128xbf16, #tpu.memory_space<vmem>>, %arg4: memref<1x128xf32, #tpu.memory_space<vmem>>, %arg5: memref<128x128xf32, #tpu.memory_space<vmem>>) attributes {dimension_semantics = [#tpu.dimension_semantics<parallel>, #tpu.dimension_semantics<parallel>], iteration_bounds = array<i64: 1, 1>, scalar_prefetch = 0 : i64, scratch_operands = 0 : i64, tpu.core_type = #tpu.core_type<tc>, window_params = [{transform_indices = @transform_0, window_bounds = array<i64: 128, 4>}, {transform_indices = @transform_1, window_bounds = array<i64: 4, 128>}, {transform_indices = @transform_2, window_bounds = array<i64: 1, 128>}, {transform_indices = @transform_3, window_bounds = array<i64: 128, 128>}]} {
    %c0 = arith.constant 0 : index
    %c0_0 = arith.constant 0 : index
    %0 = vector.load %arg2[%c0, %c0_0] : memref<128x4xbf16, #tpu.memory_space<vmem>>, vector<128x4xbf16>
    %c0_1 = arith.constant 0 : index
    %c0_2 = arith.constant 0 : index
    %1 = vector.load %arg3[%c0_1, %c0_2] : memref<4x128xbf16, #tpu.memory_space<vmem>>, vector<4x128xbf16>
    %cst = arith.constant dense<0.000000e+00> : vector<128x128xf32>
    %2 = tpu.matmul %0, %1, %cst {dimension_numbers = #tpu.dot_dimension_numbers<[1], [0], [0], [1], [0, 0, 1, 1], [], []>} : vector<128x4xbf16>, vector<4x128xbf16>, vector<128x128xf32> -> vector<128x128xf32>
    %c0_3 = arith.constant 0 : index
    %c0_4 = arith.constant 0 : index
    %3 = vector.load %arg4[%c0_3, %c0_4] : memref<1x128xf32, #tpu.memory_space<vmem>>, vector<1x128xf32>
    %4 = vector.broadcast %3 : vector<1x128xf32> to vector<128x128xf32>
    %5 = arith.addf %2, %4 : vector<128x128xf32>
    %c0_5 = arith.constant 0 : index
    %c0_6 = arith.constant 0 : index
    %6 = vector.load %arg5[%c0_5, %c0_6] : memref<128x128xf32, #tpu.memory_space<vmem>>, vector<128x128xf32>
    tpu.vector_store %arg5[%c0_5, %c0_6], %5 {strides = array<i32>} : memref<128x128xf32, #tpu.memory_space<vmem>>, vector<128x128xf32>,
    return
  }
  func.func @transform_0(%arg0: i32, %arg1: i32) -> (i32, i32) {
    %c0_i32 = arith.constant 0 : i32
    %c0_i32_0 = arith.constant 0 : i32
    return %arg1, %c0_i32 : i32, i32
  }
  func.func @transform_1(%arg0: i32, %arg1: i32) -> (i32, i32) {
    %c0_i32 = arith.constant 0 : i32
    %c0_i32_0 = arith.constant 0 : i32
    return %c0_i32, %arg0 : i32, i32
  }
  func.func @transform_2(%arg0: i32, %arg1: i32) -> (i32, i32) {
    %c0_i32 = arith.constant 0 : i32
    %c0_i32_0 = arith.constant 0 : i32
    return %c0_i32, %arg0 : i32, i32
  }
  func.func @transform_3(%arg0: i32, %arg1: i32) -> (i32, i32) {
    %c0_i32 = arith.constant 0 : i32
    return %arg1, %arg0 : i32, i32
  }
}

module attributes {stable_mosaic.version = 11 : i64} {
  func.func @_matmul_bias_kernel(%arg0: i32, %arg1: i32, %arg2: memref<128x32xbf16, #tpu.memory_space<vmem>>, %arg3: memref<32x128xbf16, #tpu.memory_space<vmem>>, %arg4: memref<1x128xf32, #tpu.memory_space<vmem>>, %arg5: memref<128x128xf32, #tpu.memory_space<vmem>>) attributes {dimension_semantics = [#tpu.dimension_semantics<parallel>, #tpu.dimension_semantics<parallel>], iteration_bounds = array<i64: 1, 1>, scalar_prefetch = 0 : i64, scratch_operands = 0 : i64, tpu.core_type = #tpu.core_type<tc>, window_params = [{transform_indices = @transform_0, window_bounds = array<i64: 128, 32>}, {transform_indices = @transform_1, window_bounds = array<i64: 32, 128>}, {transform_indices = @transform_2, window_bounds = array<i64: 1, 128>}, {transform_indices = @transform_3, window_bounds = array<i64: 128, 128>}]} {
    %c0 = arith.constant 0 : index
    %c0_0 = arith.constant 0 : index
    %0 = vector.load %arg2[%c0, %c0_0] : memref<128x32xbf16, #tpu.memory_space<vmem>>, vector<128x32xbf16>
    %c0_1 = arith.constant 0 : index
    %c0_2 = arith.constant 0 : index
    %1 = vector.load %arg3[%c0_1, %c0_2] : memref<32x128xbf16, #tpu.memory_space<vmem>>, vector<32x128xbf16>
    %cst = arith.constant dense<0.000000e+00> : vector<128x128xf32>
    %2 = tpu.matmul %0, %1, %cst {dimension_numbers = #tpu.dot_dimension_numbers<[1], [0], [0], [1], [0, 0, 1, 1], [], []>} : vector<128x32xbf16>, vector<32x128xbf16>, vector<128x128xf32> -> vector<128x128xf32>
    %c0_3 = arith.constant 0 : index
    %c0_4 = arith.constant 0 : index
    %3 = vector.load %arg4[%c0_3, %c0_4] : memref<1x128xf32, #tpu.memory_space<vmem>>, vector<1x128xf32>
    %4 = vector.broadcast %3 : vector<1x128xf32> to vector<128x128xf32>
    %5 = arith.addf %2, %4 : vector<128x128xf32>
    %c0_5 = arith.constant 0 : index
    %c0_6 = arith.constant 0 : index
    %6 = vector.load %arg5[%c0_5, %c0_6] : memref<128x128xf32, #tpu.memory_space<vmem>>, vector<128x128xf32>
    tpu.vector_store %arg5[%c0_5, %c0_6], %5 {strides = array<i32>} : memref<128x128xf32, #tpu.memory_space<vmem>>, vector<128x128xf32>,
    return
  }
  func.func @transform_0(%arg0: i32, %arg1: i32) -> (i32, i32) {
    %c0_i32 = arith.constant 0 : i32
    %c0_i32_0 = arith.constant 0 : i32
    return %arg1, %c0_i32 : i32, i32
  }
  func.func @transform_1(%arg0: i32, %arg1: i32) -> (i32, i32) {
    %c0_i32 = arith.constant 0 : i32
    %c0_i32_0 = arith.constant 0 : i32
    return %c0_i32, %arg0 : i32, i32
  }
  func.func @transform_2(%arg0: i32, %arg1: i32) -> (i32, i32) {
    %c0_i32 = arith.constant 0 : i32
    %c0_i32_0 = arith.constant 0 : i32
    return %c0_i32, %arg0 : i32, i32
  }
  func.func @transform_3(%arg0: i32, %arg1: i32) -> (i32, i32) {
    %c0_i32 = arith.constant 0 : i32
    return %arg1, %arg0 : i32, i32
  }
}

module attributes {stable_mosaic.version = 11 : i64} {
  func.func @_lstm_rec_kernel(%arg0: i32, %arg1: i32, %arg2: memref<8x8x128xf32, #tpu.memory_space<vmem>>, %arg3: memref<32x128xbf16, #tpu.memory_space<vmem>>, %arg4: memref<8x8x32xbf16, #tpu.memory_space<vmem>>, %arg5: memref<8x32xf32, #tpu.memory_space<vmem>>, %arg6: memref<8x32xf32, #tpu.memory_space<vmem>>, %arg7: memref<8x32xf32, #tpu.memory_space<vmem>>, %arg8: memref<8x32xf32, #tpu.memory_space<vmem>>) attributes {dimension_semantics = [#tpu.dimension_semantics<parallel>, #tpu.dimension_semantics<arbitrary>], iteration_bounds = array<i64: 2, 1>, scalar_prefetch = 0 : i64, scratch_operands = 2 : i64, tpu.core_type = #tpu.core_type<tc>, window_params = [{transform_indices = @transform_0, window_bounds = array<i64: 8, 8, 128>}, {pipeline_mode = #tpu.pipeline_mode<synchronous>, transform_indices = @transform_1, window_bounds = array<i64: 32, 128>}, {transform_indices = @transform_2, window_bounds = array<i64: 8, 8, 32>}, {transform_indices = @transform_3, window_bounds = array<i64: 8, 32>}, {transform_indices = @transform_4, window_bounds = array<i64: 8, 32>}]} {
    %c0_i32 = arith.constant 0 : i32
    %0 = arith.cmpi eq, %arg1, %c0_i32 : i32
    %1 = arith.extui %0 : i1 to i32
    %c0_i32_0 = arith.constant 0 : i32
    %2 = arith.cmpi ne, %1, %c0_i32_0 : i32
    scf.if %2 {
      %cst_60 = arith.constant 0.000000e+00 : f32
      %227 = vector.broadcast %cst_60 : f32 to vector<8x32xf32>
      %c0_61 = arith.constant 0 : index
      %c0_62 = arith.constant 0 : index
      %228 = vector.load %arg7[%c0_61, %c0_62] : memref<8x32xf32, #tpu.memory_space<vmem>>, vector<8x32xf32>
      tpu.vector_store %arg7[%c0_61, %c0_62], %227 {strides = array<i32>} : memref<8x32xf32, #tpu.memory_space<vmem>>, vector<8x32xf32>,
      %cst_63 = arith.constant 0.000000e+00 : f32
      %229 = vector.broadcast %cst_63 : f32 to vector<8x32xf32>
      %c0_64 = arith.constant 0 : index
      %c0_65 = arith.constant 0 : index
      %230 = vector.load %arg8[%c0_64, %c0_65] : memref<8x32xf32, #tpu.memory_space<vmem>>, vector<8x32xf32>
      tpu.vector_store %arg8[%c0_64, %c0_65], %229 {strides = array<i32>} : memref<8x32xf32, #tpu.memory_space<vmem>>, vector<8x32xf32>,
    } else {
    }
    %c0 = arith.constant 0 : index
    %c0_1 = arith.constant 0 : index
    %3 = vector.load %arg3[%c0, %c0_1] : memref<32x128xbf16, #tpu.memory_space<vmem>>, vector<32x128xbf16>
    %c0_2 = arith.constant 0 : index
    %c0_3 = arith.constant 0 : index
    %4 = vector.load %arg7[%c0_2, %c0_3] : memref<8x32xf32, #tpu.memory_space<vmem>>, vector<8x32xf32>
    %c0_4 = arith.constant 0 : index
    %c0_5 = arith.constant 0 : index
    %5 = vector.load %arg8[%c0_4, %c0_5] : memref<8x32xf32, #tpu.memory_space<vmem>>, vector<8x32xf32>
    %c0_i32_6 = arith.constant 0 : i32
    %6 = arith.index_cast %c0_i32_6 : i32 to index
    %c0_7 = arith.constant 0 : index
    %c0_8 = arith.constant 0 : index
    %7 = vector.load %arg2[%6, %c0_7, %c0_8] : memref<8x8x128xf32, #tpu.memory_space<vmem>>, vector<1x8x128xf32>
    %8 = vector.shape_cast %7 : vector<1x8x128xf32> to vector<8x128xf32>
    %9 = arith.truncf %4 : vector<8x32xf32> to vector<8x32xbf16>
    %cst = arith.constant dense<0.000000e+00> : vector<8x128xf32>
    %10 = tpu.matmul %9, %3, %cst {dimension_numbers = #tpu.dot_dimension_numbers<[1], [0], [0], [1], [0, 0, 1, 1], [], []>} : vector<8x32xbf16>, vector<32x128xbf16>, vector<8x128xf32> -> vector<8x128xf32>
    %11 = arith.addf %8, %10 : vector<8x128xf32>
    %12 = vector.extract_strided_slice %11 {offsets = [0, 0], sizes = [8, 96], strides = [1, 1]} : vector<8x128xf32> to vector<8x96xf32>
    %13 = arith.negf %12 : vector<8x96xf32>
    %14 = math.exp %13 : vector<8x96xf32>
    %cst_9 = arith.constant 1.000000e+00 : f32
    %15 = vector.broadcast %cst_9 : f32 to vector<8x96xf32>
    %16 = arith.addf %15, %14 : vector<8x96xf32>
    %17 = arith.divf %15, %16 : vector<8x96xf32>
    %18 = vector.extract_strided_slice %17 {offsets = [0, 0], sizes = [8, 32], strides = [1, 1]} : vector<8x96xf32> to vector<8x32xf32>
    %19 = vector.extract_strided_slice %17 {offsets = [0, 32], sizes = [8, 32], strides = [1, 1]} : vector<8x96xf32> to vector<8x32xf32>
    %20 = vector.extract_strided_slice %17 {offsets = [0, 64], sizes = [8, 32], strides = [1, 1]} : vector<8x96xf32> to vector<8x32xf32>
    %21 = vector.extract_strided_slice %11 {offsets = [0, 96], sizes = [8, 32], strides = [1, 1]} : vector<8x128xf32> to vector<8x32xf32>
    %22 = math.tanh %21 : vector<8x32xf32>
    %23 = arith.mulf %19, %5 : vector<8x32xf32>
    %24 = arith.mulf %18, %22 : vector<8x32xf32>
    %25 = arith.addf %23, %24 : vector<8x32xf32>
    %26 = math.tanh %25 : vector<8x32xf32>
    %27 = arith.mulf %20, %26 : vector<8x32xf32>
    %28 = arith.truncf %27 : vector<8x32xf32> to vector<8x32xbf16>
    %29 = arith.index_cast %c0_i32_6 : i32 to index
    %c0_10 = arith.constant 0 : index
    %c0_11 = arith.constant 0 : index
    %30 = vector.load %arg4[%29, %c0_10, %c0_11] : memref<8x8x32xbf16, #tpu.memory_space<vmem>>, vector<1x8x32xbf16>
    %31 = vector.shape_cast %30 : vector<1x8x32xbf16> to vector<8x32xbf16>
    %32 = vector.shape_cast %28 : vector<8x32xbf16> to vector<1x8x32xbf16>
    tpu.vector_store %arg4[%29, %c0_10, %c0_11], %32 {strides = array<i32>} : memref<8x8x32xbf16, #tpu.memory_space<vmem>>, vector<1x8x32xbf16>,
    %c1_i32 = arith.constant 1 : i32
    %33 = arith.index_cast %c1_i32 : i32 to index
    %c0_12 = arith.constant 0 : index
    %c0_13 = arith.constant 0 : index
    %34 = vector.load %arg2[%33, %c0_12, %c0_13] : memref<8x8x128xf32, #tpu.memory_space<vmem>>, vector<1x8x128xf32>
    %35 = vector.shape_cast %34 : vector<1x8x128xf32> to vector<8x128xf32>
    %36 = arith.truncf %27 : vector<8x32xf32> to vector<8x32xbf16>
    %cst_14 = arith.constant dense<0.000000e+00> : vector<8x128xf32>
    %37 = tpu.matmul %36, %3, %cst_14 {dimension_numbers = #tpu.dot_dimension_numbers<[1], [0], [0], [1], [0, 0, 1, 1], [], []>} : vector<8x32xbf16>, vector<32x128xbf16>, vector<8x128xf32> -> vector<8x128xf32>
    %38 = arith.addf %35, %37 : vector<8x128xf32>
    %39 = vector.extract_strided_slice %38 {offsets = [0, 0], sizes = [8, 96], strides = [1, 1]} : vector<8x128xf32> to vector<8x96xf32>
    %40 = arith.negf %39 : vector<8x96xf32>
    %41 = math.exp %40 : vector<8x96xf32>
    %cst_15 = arith.constant 1.000000e+00 : f32
    %42 = vector.broadcast %cst_15 : f32 to vector<8x96xf32>
    %43 = arith.addf %42, %41 : vector<8x96xf32>
    %44 = arith.divf %42, %43 : vector<8x96xf32>
    %45 = vector.extract_strided_slice %44 {offsets = [0, 0], sizes = [8, 32], strides = [1, 1]} : vector<8x96xf32> to vector<8x32xf32>
    %46 = vector.extract_strided_slice %44 {offsets = [0, 32], sizes = [8, 32], strides = [1, 1]} : vector<8x96xf32> to vector<8x32xf32>
    %47 = vector.extract_strided_slice %44 {offsets = [0, 64], sizes = [8, 32], strides = [1, 1]} : vector<8x96xf32> to vector<8x32xf32>
    %48 = vector.extract_strided_slice %38 {offsets = [0, 96], sizes = [8, 32], strides = [1, 1]} : vector<8x128xf32> to vector<8x32xf32>
    %49 = math.tanh %48 : vector<8x32xf32>
    %50 = arith.mulf %46, %25 : vector<8x32xf32>
    %51 = arith.mulf %45, %49 : vector<8x32xf32>
    %52 = arith.addf %50, %51 : vector<8x32xf32>
    %53 = math.tanh %52 : vector<8x32xf32>
    %54 = arith.mulf %47, %53 : vector<8x32xf32>
    %55 = arith.truncf %54 : vector<8x32xf32> to vector<8x32xbf16>
    %56 = arith.index_cast %c1_i32 : i32 to index
    %c0_16 = arith.constant 0 : index
    %c0_17 = arith.constant 0 : index
    %57 = vector.load %arg4[%56, %c0_16, %c0_17] : memref<8x8x32xbf16, #tpu.memory_space<vmem>>, vector<1x8x32xbf16>
    %58 = vector.shape_cast %57 : vector<1x8x32xbf16> to vector<8x32xbf16>
    %59 = vector.shape_cast %55 : vector<8x32xbf16> to vector<1x8x32xbf16>
    tpu.vector_store %arg4[%56, %c0_16, %c0_17], %59 {strides = array<i32>} : memref<8x8x32xbf16, #tpu.memory_space<vmem>>, vector<1x8x32xbf16>,
    %c2_i32 = arith.constant 2 : i32
    %60 = arith.index_cast %c2_i32 : i32 to index
    %c0_18 = arith.constant 0 : index
    %c0_19 = arith.constant 0 : index
    %61 = vector.load %arg2[%60, %c0_18, %c0_19] : memref<8x8x128xf32, #tpu.memory_space<vmem>>, vector<1x8x128xf32>
    %62 = vector.shape_cast %61 : vector<1x8x128xf32> to vector<8x128xf32>
    %63 = arith.truncf %54 : vector<8x32xf32> to vector<8x32xbf16>
    %cst_20 = arith.constant dense<0.000000e+00> : vector<8x128xf32>
    %64 = tpu.matmul %63, %3, %cst_20 {dimension_numbers = #tpu.dot_dimension_numbers<[1], [0], [0], [1], [0, 0, 1, 1], [], []>} : vector<8x32xbf16>, vector<32x128xbf16>, vector<8x128xf32> -> vector<8x128xf32>
    %65 = arith.addf %62, %64 : vector<8x128xf32>
    %66 = vector.extract_strided_slice %65 {offsets = [0, 0], sizes = [8, 96], strides = [1, 1]} : vector<8x128xf32> to vector<8x96xf32>
    %67 = arith.negf %66 : vector<8x96xf32>
    %68 = math.exp %67 : vector<8x96xf32>
    %cst_21 = arith.constant 1.000000e+00 : f32
    %69 = vector.broadcast %cst_21 : f32 to vector<8x96xf32>
    %70 = arith.addf %69, %68 : vector<8x96xf32>
    %71 = arith.divf %69, %70 : vector<8x96xf32>
    %72 = vector.extract_strided_slice %71 {offsets = [0, 0], sizes = [8, 32], strides = [1, 1]} : vector<8x96xf32> to vector<8x32xf32>
    %73 = vector.extract_strided_slice %71 {offsets = [0, 32], sizes = [8, 32], strides = [1, 1]} : vector<8x96xf32> to vector<8x32xf32>
    %74 = vector.extract_strided_slice %71 {offsets = [0, 64], sizes = [8, 32], strides = [1, 1]} : vector<8x96xf32> to vector<8x32xf32>
    %75 = vector.extract_strided_slice %65 {offsets = [0, 96], sizes = [8, 32], strides = [1, 1]} : vector<8x128xf32> to vector<8x32xf32>
    %76 = math.tanh %75 : vector<8x32xf32>
    %77 = arith.mulf %73, %52 : vector<8x32xf32>
    %78 = arith.mulf %72, %76 : vector<8x32xf32>
    %79 = arith.addf %77, %78 : vector<8x32xf32>
    %80 = math.tanh %79 : vector<8x32xf32>
    %81 = arith.mulf %74, %80 : vector<8x32xf32>
    %82 = arith.truncf %81 : vector<8x32xf32> to vector<8x32xbf16>
    %83 = arith.index_cast %c2_i32 : i32 to index
    %c0_22 = arith.constant 0 : index
    %c0_23 = arith.constant 0 : index
    %84 = vector.load %arg4[%83, %c0_22, %c0_23] : memref<8x8x32xbf16, #tpu.memory_space<vmem>>, vector<1x8x32xbf16>
    %85 = vector.shape_cast %84 : vector<1x8x32xbf16> to vector<8x32xbf16>
    %86 = vector.shape_cast %82 : vector<8x32xbf16> to vector<1x8x32xbf16>
    tpu.vector_store %arg4[%83, %c0_22, %c0_23], %86 {strides = array<i32>} : memref<8x8x32xbf16, #tpu.memory_space<vmem>>, vector<1x8x32xbf16>,
    %c3_i32 = arith.constant 3 : i32
    %87 = arith.index_cast %c3_i32 : i32 to index
    %c0_24 = arith.constant 0 : index
    %c0_25 = arith.constant 0 : index
    %88 = vector.load %arg2[%87, %c0_24, %c0_25] : memref<8x8x128xf32, #tpu.memory_space<vmem>>, vector<1x8x128xf32>
    %89 = vector.shape_cast %88 : vector<1x8x128xf32> to vector<8x128xf32>
    %90 = arith.truncf %81 : vector<8x32xf32> to vector<8x32xbf16>
    %cst_26 = arith.constant dense<0.000000e+00> : vector<8x128xf32>
    %91 = tpu.matmul %90, %3, %cst_26 {dimension_numbers = #tpu.dot_dimension_numbers<[1], [0], [0], [1], [0, 0, 1, 1], [], []>} : vector<8x32xbf16>, vector<32x128xbf16>, vector<8x128xf32> -> vector<8x128xf32>
    %92 = arith.addf %89, %91 : vector<8x128xf32>
    %93 = vector.extract_strided_slice %92 {offsets = [0, 0], sizes = [8, 96], strides = [1, 1]} : vector<8x128xf32> to vector<8x96xf32>
    %94 = arith.negf %93 : vector<8x96xf32>
    %95 = math.exp %94 : vector<8x96xf32>
    %cst_27 = arith.constant 1.000000e+00 : f32
    %96 = vector.broadcast %cst_27 : f32 to vector<8x96xf32>
    %97 = arith.addf %96, %95 : vector<8x96xf32>
    %98 = arith.divf %96, %97 : vector<8x96xf32>
    %99 = vector.extract_strided_slice %98 {offsets = [0, 0], sizes = [8, 32], strides = [1, 1]} : vector<8x96xf32> to vector<8x32xf32>
    %100 = vector.extract_strided_slice %98 {offsets = [0, 32], sizes = [8, 32], strides = [1, 1]} : vector<8x96xf32> to vector<8x32xf32>
    %101 = vector.extract_strided_slice %98 {offsets = [0, 64], sizes = [8, 32], strides = [1, 1]} : vector<8x96xf32> to vector<8x32xf32>
    %102 = vector.extract_strided_slice %92 {offsets = [0, 96], sizes = [8, 32], strides = [1, 1]} : vector<8x128xf32> to vector<8x32xf32>
    %103 = math.tanh %102 : vector<8x32xf32>
    %104 = arith.mulf %100, %79 : vector<8x32xf32>
    %105 = arith.mulf %99, %103 : vector<8x32xf32>
    %106 = arith.addf %104, %105 : vector<8x32xf32>
    %107 = math.tanh %106 : vector<8x32xf32>
    %108 = arith.mulf %101, %107 : vector<8x32xf32>
    %109 = arith.truncf %108 : vector<8x32xf32> to vector<8x32xbf16>
    %110 = arith.index_cast %c3_i32 : i32 to index
    %c0_28 = arith.constant 0 : index
    %c0_29 = arith.constant 0 : index
    %111 = vector.load %arg4[%110, %c0_28, %c0_29] : memref<8x8x32xbf16, #tpu.memory_space<vmem>>, vector<1x8x32xbf16>
    %112 = vector.shape_cast %111 : vector<1x8x32xbf16> to vector<8x32xbf16>
    %113 = vector.shape_cast %109 : vector<8x32xbf16> to vector<1x8x32xbf16>
    tpu.vector_store %arg4[%110, %c0_28, %c0_29], %113 {strides = array<i32>} : memref<8x8x32xbf16, #tpu.memory_space<vmem>>, vector<1x8x32xbf16>,
    %c4_i32 = arith.constant 4 : i32
    %114 = arith.index_cast %c4_i32 : i32 to index
    %c0_30 = arith.constant 0 : index
    %c0_31 = arith.constant 0 : index
    %115 = vector.load %arg2[%114, %c0_30, %c0_31] : memref<8x8x128xf32, #tpu.memory_space<vmem>>, vector<1x8x128xf32>
    %116 = vector.shape_cast %115 : vector<1x8x128xf32> to vector<8x128xf32>
    %117 = arith.truncf %108 : vector<8x32xf32> to vector<8x32xbf16>
    %cst_32 = arith.constant dense<0.000000e+00> : vector<8x128xf32>
    %118 = tpu.matmul %117, %3, %cst_32 {dimension_numbers = #tpu.dot_dimension_numbers<[1], [0], [0], [1], [0, 0, 1, 1], [], []>} : vector<8x32xbf16>, vector<32x128xbf16>, vector<8x128xf32> -> vector<8x128xf32>
    %119 = arith.addf %116, %118 : vector<8x128xf32>
    %120 = vector.extract_strided_slice %119 {offsets = [0, 0], sizes = [8, 96], strides = [1, 1]} : vector<8x128xf32> to vector<8x96xf32>
    %121 = arith.negf %120 : vector<8x96xf32>
    %122 = math.exp %121 : vector<8x96xf32>
    %cst_33 = arith.constant 1.000000e+00 : f32
    %123 = vector.broadcast %cst_33 : f32 to vector<8x96xf32>
    %124 = arith.addf %123, %122 : vector<8x96xf32>
    %125 = arith.divf %123, %124 : vector<8x96xf32>
    %126 = vector.extract_strided_slice %125 {offsets = [0, 0], sizes = [8, 32], strides = [1, 1]} : vector<8x96xf32> to vector<8x32xf32>
    %127 = vector.extract_strided_slice %125 {offsets = [0, 32], sizes = [8, 32], strides = [1, 1]} : vector<8x96xf32> to vector<8x32xf32>
    %128 = vector.extract_strided_slice %125 {offsets = [0, 64], sizes = [8, 32], strides = [1, 1]} : vector<8x96xf32> to vector<8x32xf32>
    %129 = vector.extract_strided_slice %119 {offsets = [0, 96], sizes = [8, 32], strides = [1, 1]} : vector<8x128xf32> to vector<8x32xf32>
    %130 = math.tanh %129 : vector<8x32xf32>
    %131 = arith.mulf %127, %106 : vector<8x32xf32>
    %132 = arith.mulf %126, %130 : vector<8x32xf32>
    %133 = arith.addf %131, %132 : vector<8x32xf32>
    %134 = math.tanh %133 : vector<8x32xf32>
    %135 = arith.mulf %128, %134 : vector<8x32xf32>
    %136 = arith.truncf %135 : vector<8x32xf32> to vector<8x32xbf16>
    %137 = arith.index_cast %c4_i32 : i32 to index
    %c0_34 = arith.constant 0 : index
    %c0_35 = arith.constant 0 : index
    %138 = vector.load %arg4[%137, %c0_34, %c0_35] : memref<8x8x32xbf16, #tpu.memory_space<vmem>>, vector<1x8x32xbf16>
    %139 = vector.shape_cast %138 : vector<1x8x32xbf16> to vector<8x32xbf16>
    %140 = vector.shape_cast %136 : vector<8x32xbf16> to vector<1x8x32xbf16>
    tpu.vector_store %arg4[%137, %c0_34, %c0_35], %140 {strides = array<i32>} : memref<8x8x32xbf16, #tpu.memory_space<vmem>>, vector<1x8x32xbf16>,
    %c5_i32 = arith.constant 5 : i32
    %141 = arith.index_cast %c5_i32 : i32 to index
    %c0_36 = arith.constant 0 : index
    %c0_37 = arith.constant 0 : index
    %142 = vector.load %arg2[%141, %c0_36, %c0_37] : memref<8x8x128xf32, #tpu.memory_space<vmem>>, vector<1x8x128xf32>
    %143 = vector.shape_cast %142 : vector<1x8x128xf32> to vector<8x128xf32>
    %144 = arith.truncf %135 : vector<8x32xf32> to vector<8x32xbf16>
    %cst_38 = arith.constant dense<0.000000e+00> : vector<8x128xf32>
    %145 = tpu.matmul %144, %3, %cst_38 {dimension_numbers = #tpu.dot_dimension_numbers<[1], [0], [0], [1], [0, 0, 1, 1], [], []>} : vector<8x32xbf16>, vector<32x128xbf16>, vector<8x128xf32> -> vector<8x128xf32>
    %146 = arith.addf %143, %145 : vector<8x128xf32>
    %147 = vector.extract_strided_slice %146 {offsets = [0, 0], sizes = [8, 96], strides = [1, 1]} : vector<8x128xf32> to vector<8x96xf32>
    %148 = arith.negf %147 : vector<8x96xf32>
    %149 = math.exp %148 : vector<8x96xf32>
    %cst_39 = arith.constant 1.000000e+00 : f32
    %150 = vector.broadcast %cst_39 : f32 to vector<8x96xf32>
    %151 = arith.addf %150, %149 : vector<8x96xf32>
    %152 = arith.divf %150, %151 : vector<8x96xf32>
    %153 = vector.extract_strided_slice %152 {offsets = [0, 0], sizes = [8, 32], strides = [1, 1]} : vector<8x96xf32> to vector<8x32xf32>
    %154 = vector.extract_strided_slice %152 {offsets = [0, 32], sizes = [8, 32], strides = [1, 1]} : vector<8x96xf32> to vector<8x32xf32>
    %155 = vector.extract_strided_slice %152 {offsets = [0, 64], sizes = [8, 32], strides = [1, 1]} : vector<8x96xf32> to vector<8x32xf32>
    %156 = vector.extract_strided_slice %146 {offsets = [0, 96], sizes = [8, 32], strides = [1, 1]} : vector<8x128xf32> to vector<8x32xf32>
    %157 = math.tanh %156 : vector<8x32xf32>
    %158 = arith.mulf %154, %133 : vector<8x32xf32>
    %159 = arith.mulf %153, %157 : vector<8x32xf32>
    %160 = arith.addf %158, %159 : vector<8x32xf32>
    %161 = math.tanh %160 : vector<8x32xf32>
    %162 = arith.mulf %155, %161 : vector<8x32xf32>
    %163 = arith.truncf %162 : vector<8x32xf32> to vector<8x32xbf16>
    %164 = arith.index_cast %c5_i32 : i32 to index
    %c0_40 = arith.constant 0 : index
    %c0_41 = arith.constant 0 : index
    %165 = vector.load %arg4[%164, %c0_40, %c0_41] : memref<8x8x32xbf16, #tpu.memory_space<vmem>>, vector<1x8x32xbf16>
    %166 = vector.shape_cast %165 : vector<1x8x32xbf16> to vector<8x32xbf16>
    %167 = vector.shape_cast %163 : vector<8x32xbf16> to vector<1x8x32xbf16>
    tpu.vector_store %arg4[%164, %c0_40, %c0_41], %167 {strides = array<i32>} : memref<8x8x32xbf16, #tpu.memory_space<vmem>>, vector<1x8x32xbf16>,
    %c6_i32 = arith.constant 6 : i32
    %168 = arith.index_cast %c6_i32 : i32 to index
    %c0_42 = arith.constant 0 : index
    %c0_43 = arith.constant 0 : index
    %169 = vector.load %arg2[%168, %c0_42, %c0_43] : memref<8x8x128xf32, #tpu.memory_space<vmem>>, vector<1x8x128xf32>
    %170 = vector.shape_cast %169 : vector<1x8x128xf32> to vector<8x128xf32>
    %171 = arith.truncf %162 : vector<8x32xf32> to vector<8x32xbf16>
    %cst_44 = arith.constant dense<0.000000e+00> : vector<8x128xf32>
    %172 = tpu.matmul %171, %3, %cst_44 {dimension_numbers = #tpu.dot_dimension_numbers<[1], [0], [0], [1], [0, 0, 1, 1], [], []>} : vector<8x32xbf16>, vector<32x128xbf16>, vector<8x128xf32> -> vector<8x128xf32>
    %173 = arith.addf %170, %172 : vector<8x128xf32>
    %174 = vector.extract_strided_slice %173 {offsets = [0, 0], sizes = [8, 96], strides = [1, 1]} : vector<8x128xf32> to vector<8x96xf32>
    %175 = arith.negf %174 : vector<8x96xf32>
    %176 = math.exp %175 : vector<8x96xf32>
    %cst_45 = arith.constant 1.000000e+00 : f32
    %177 = vector.broadcast %cst_45 : f32 to vector<8x96xf32>
    %178 = arith.addf %177, %176 : vector<8x96xf32>
    %179 = arith.divf %177, %178 : vector<8x96xf32>
    %180 = vector.extract_strided_slice %179 {offsets = [0, 0], sizes = [8, 32], strides = [1, 1]} : vector<8x96xf32> to vector<8x32xf32>
    %181 = vector.extract_strided_slice %179 {offsets = [0, 32], sizes = [8, 32], strides = [1, 1]} : vector<8x96xf32> to vector<8x32xf32>
    %182 = vector.extract_strided_slice %179 {offsets = [0, 64], sizes = [8, 32], strides = [1, 1]} : vector<8x96xf32> to vector<8x32xf32>
    %183 = vector.extract_strided_slice %173 {offsets = [0, 96], sizes = [8, 32], strides = [1, 1]} : vector<8x128xf32> to vector<8x32xf32>
    %184 = math.tanh %183 : vector<8x32xf32>
    %185 = arith.mulf %181, %160 : vector<8x32xf32>
    %186 = arith.mulf %180, %184 : vector<8x32xf32>
    %187 = arith.addf %185, %186 : vector<8x32xf32>
    %188 = math.tanh %187 : vector<8x32xf32>
    %189 = arith.mulf %182, %188 : vector<8x32xf32>
    %190 = arith.truncf %189 : vector<8x32xf32> to vector<8x32xbf16>
    %191 = arith.index_cast %c6_i32 : i32 to index
    %c0_46 = arith.constant 0 : index
    %c0_47 = arith.constant 0 : index
    %192 = vector.load %arg4[%191, %c0_46, %c0_47] : memref<8x8x32xbf16, #tpu.memory_space<vmem>>, vector<1x8x32xbf16>
    %193 = vector.shape_cast %192 : vector<1x8x32xbf16> to vector<8x32xbf16>
    %194 = vector.shape_cast %190 : vector<8x32xbf16> to vector<1x8x32xbf16>
    tpu.vector_store %arg4[%191, %c0_46, %c0_47], %194 {strides = array<i32>} : memref<8x8x32xbf16, #tpu.memory_space<vmem>>, vector<1x8x32xbf16>,
    %c7_i32 = arith.constant 7 : i32
    %195 = arith.index_cast %c7_i32 : i32 to index
    %c0_48 = arith.constant 0 : index
    %c0_49 = arith.constant 0 : index
    %196 = vector.load %arg2[%195, %c0_48, %c0_49] : memref<8x8x128xf32, #tpu.memory_space<vmem>>, vector<1x8x128xf32>
    %197 = vector.shape_cast %196 : vector<1x8x128xf32> to vector<8x128xf32>
    %198 = arith.truncf %189 : vector<8x32xf32> to vector<8x32xbf16>
    %cst_50 = arith.constant dense<0.000000e+00> : vector<8x128xf32>
    %199 = tpu.matmul %198, %3, %cst_50 {dimension_numbers = #tpu.dot_dimension_numbers<[1], [0], [0], [1], [0, 0, 1, 1], [], []>} : vector<8x32xbf16>, vector<32x128xbf16>, vector<8x128xf32> -> vector<8x128xf32>
    %200 = arith.addf %197, %199 : vector<8x128xf32>
    %201 = vector.extract_strided_slice %200 {offsets = [0, 0], sizes = [8, 96], strides = [1, 1]} : vector<8x128xf32> to vector<8x96xf32>
    %202 = arith.negf %201 : vector<8x96xf32>
    %203 = math.exp %202 : vector<8x96xf32>
    %cst_51 = arith.constant 1.000000e+00 : f32
    %204 = vector.broadcast %cst_51 : f32 to vector<8x96xf32>
    %205 = arith.addf %204, %203 : vector<8x96xf32>
    %206 = arith.divf %204, %205 : vector<8x96xf32>
    %207 = vector.extract_strided_slice %206 {offsets = [0, 0], sizes = [8, 32], strides = [1, 1]} : vector<8x96xf32> to vector<8x32xf32>
    %208 = vector.extract_strided_slice %206 {offsets = [0, 32], sizes = [8, 32], strides = [1, 1]} : vector<8x96xf32> to vector<8x32xf32>
    %209 = vector.extract_strided_slice %206 {offsets = [0, 64], sizes = [8, 32], strides = [1, 1]} : vector<8x96xf32> to vector<8x32xf32>
    %210 = vector.extract_strided_slice %200 {offsets = [0, 96], sizes = [8, 32], strides = [1, 1]} : vector<8x128xf32> to vector<8x32xf32>
    %211 = math.tanh %210 : vector<8x32xf32>
    %212 = arith.mulf %208, %187 : vector<8x32xf32>
    %213 = arith.mulf %207, %211 : vector<8x32xf32>
    %214 = arith.addf %212, %213 : vector<8x32xf32>
    %215 = math.tanh %214 : vector<8x32xf32>
    %216 = arith.mulf %209, %215 : vector<8x32xf32>
    %217 = arith.truncf %216 : vector<8x32xf32> to vector<8x32xbf16>
    %218 = arith.index_cast %c7_i32 : i32 to index
    %c0_52 = arith.constant 0 : index
    %c0_53 = arith.constant 0 : index
    %219 = vector.load %arg4[%218, %c0_52, %c0_53] : memref<8x8x32xbf16, #tpu.memory_space<vmem>>, vector<1x8x32xbf16>
    %220 = vector.shape_cast %219 : vector<1x8x32xbf16> to vector<8x32xbf16>
    %221 = vector.shape_cast %217 : vector<8x32xbf16> to vector<1x8x32xbf16>
    tpu.vector_store %arg4[%218, %c0_52, %c0_53], %221 {strides = array<i32>} : memref<8x8x32xbf16, #tpu.memory_space<vmem>>, vector<1x8x32xbf16>,
    %c8_i32 = arith.constant 8 : i32
    %c0_54 = arith.constant 0 : index
    %c0_55 = arith.constant 0 : index
    %222 = vector.load %arg7[%c0_54, %c0_55] : memref<8x32xf32, #tpu.memory_space<vmem>>, vector<8x32xf32>
    tpu.vector_store %arg7[%c0_54, %c0_55], %216 {strides = array<i32>} : memref<8x32xf32, #tpu.memory_space<vmem>>, vector<8x32xf32>,
    %c0_56 = arith.constant 0 : index
    %c0_57 = arith.constant 0 : index
    %223 = vector.load %arg8[%c0_56, %c0_57] : memref<8x32xf32, #tpu.memory_space<vmem>>, vector<8x32xf32>
    tpu.vector_store %arg8[%c0_56, %c0_57], %214 {strides = array<i32>} : memref<8x32xf32, #tpu.memory_space<vmem>>, vector<8x32xf32>,
    %c0_i32_58 = arith.constant 0 : i32
    %224 = arith.cmpi eq, %arg1, %c0_i32_58 : i32
    %225 = arith.extui %224 : i1 to i32
    %c0_i32_59 = arith.constant 0 : i32
    %226 = arith.cmpi ne, %225, %c0_i32_59 : i32
    scf.if %226 {
      %c0_60 = arith.constant 0 : index
      %c0_61 = arith.constant 0 : index
      %227 = vector.load %arg5[%c0_60, %c0_61] : memref<8x32xf32, #tpu.memory_space<vmem>>, vector<8x32xf32>
      tpu.vector_store %arg5[%c0_60, %c0_61], %216 {strides = array<i32>} : memref<8x32xf32, #tpu.memory_space<vmem>>, vector<8x32xf32>,
      %c0_62 = arith.constant 0 : index
      %c0_63 = arith.constant 0 : index
      %228 = vector.load %arg6[%c0_62, %c0_63] : memref<8x32xf32, #tpu.memory_space<vmem>>, vector<8x32xf32>
      tpu.vector_store %arg6[%c0_62, %c0_63], %214 {strides = array<i32>} : memref<8x32xf32, #tpu.memory_space<vmem>>, vector<8x32xf32>,
    } else {
    }
    return
  }
  func.func @transform_0(%arg0: i32, %arg1: i32) -> (i32, i32, i32) {
    %c0_i32 = arith.constant 0 : i32
    %c0_i32_0 = arith.constant 0 : i32
    return %arg1, %arg0, %c0_i32 : i32, i32, i32
  }
  func.func @transform_1(%arg0: i32, %arg1: i32) -> (i32, i32) {
    %c0_i32 = arith.constant 0 : i32
    %c0_i32_0 = arith.constant 0 : i32
    %c0_i32_1 = arith.constant 0 : i32
    return %c0_i32, %c0_i32_0 : i32, i32
  }
  func.func @transform_2(%arg0: i32, %arg1: i32) -> (i32, i32, i32) {
    %c0_i32 = arith.constant 0 : i32
    %c0_i32_0 = arith.constant 0 : i32
    return %arg1, %arg0, %c0_i32 : i32, i32, i32
  }
  func.func @transform_3(%arg0: i32, %arg1: i32) -> (i32, i32) {
    %c0_i32 = arith.constant 0 : i32
    %c0_i32_0 = arith.constant 0 : i32
    return %arg0, %c0_i32 : i32, i32
  }
  func.func @transform_4(%arg0: i32, %arg1: i32) -> (i32, i32) {
    %c0_i32 = arith.constant 0 : i32
    %c0_i32_0 = arith.constant 0 : i32
    return %arg0, %c0_i32 : i32, i32
  }
}

module attributes {stable_mosaic.version = 11 : i64} {
  func.func @_lstm_rec_kernel(%arg0: i32, %arg1: i32, %arg2: memref<8x8x128xf32, #tpu.memory_space<vmem>>, %arg3: memref<32x128xbf16, #tpu.memory_space<vmem>>, %arg4: memref<32x1xf32, #tpu.memory_space<vmem>>, %arg5: memref<1x1xf32, #tpu.memory_space<vmem>>, %arg6: memref<8x8x1xf32, #tpu.memory_space<vmem>>, %arg7: memref<8x32xf32, #tpu.memory_space<vmem>>, %arg8: memref<8x32xf32, #tpu.memory_space<vmem>>, %arg9: memref<8x32xf32, #tpu.memory_space<vmem>>, %arg10: memref<8x32xf32, #tpu.memory_space<vmem>>, %arg11: memref<8x8x32xf32, #tpu.memory_space<vmem>>) attributes {dimension_semantics = [#tpu.dimension_semantics<parallel>, #tpu.dimension_semantics<arbitrary>], iteration_bounds = array<i64: 2, 1>, scalar_prefetch = 0 : i64, scratch_operands = 3 : i64, tpu.core_type = #tpu.core_type<tc>, window_params = [{transform_indices = @transform_0, window_bounds = array<i64: 8, 8, 128>}, {pipeline_mode = #tpu.pipeline_mode<synchronous>, transform_indices = @transform_1, window_bounds = array<i64: 32, 128>}, {pipeline_mode = #tpu.pipeline_mode<synchronous>, transform_indices = @transform_2, window_bounds = array<i64: 32, 1>}, {pipeline_mode = #tpu.pipeline_mode<synchronous>, transform_indices = @transform_3, window_bounds = array<i64: 1, 1>}, {transform_indices = @transform_4, window_bounds = array<i64: 8, 8, 1>}, {transform_indices = @transform_5, window_bounds = array<i64: 8, 32>}, {transform_indices = @transform_6, window_bounds = array<i64: 8, 32>}]} {
    %c0_i32 = arith.constant 0 : i32
    %0 = arith.cmpi eq, %arg1, %c0_i32 : i32
    %1 = arith.extui %0 : i1 to i32
    %c0_i32_0 = arith.constant 0 : i32
    %2 = arith.cmpi ne, %1, %c0_i32_0 : i32
    scf.if %2 {
      %cst_71 = arith.constant 0.000000e+00 : f32
      %228 = vector.broadcast %cst_71 : f32 to vector<8x32xf32>
      %c0_72 = arith.constant 0 : index
      %c0_73 = arith.constant 0 : index
      %229 = vector.load %arg9[%c0_72, %c0_73] : memref<8x32xf32, #tpu.memory_space<vmem>>, vector<8x32xf32>
      tpu.vector_store %arg9[%c0_72, %c0_73], %228 {strides = array<i32>} : memref<8x32xf32, #tpu.memory_space<vmem>>, vector<8x32xf32>,
      %cst_74 = arith.constant 0.000000e+00 : f32
      %230 = vector.broadcast %cst_74 : f32 to vector<8x32xf32>
      %c0_75 = arith.constant 0 : index
      %c0_76 = arith.constant 0 : index
      %231 = vector.load %arg10[%c0_75, %c0_76] : memref<8x32xf32, #tpu.memory_space<vmem>>, vector<8x32xf32>
      tpu.vector_store %arg10[%c0_75, %c0_76], %230 {strides = array<i32>} : memref<8x32xf32, #tpu.memory_space<vmem>>, vector<8x32xf32>,
    } else {
    }
    %c0 = arith.constant 0 : index
    %c0_1 = arith.constant 0 : index
    %3 = vector.load %arg3[%c0, %c0_1] : memref<32x128xbf16, #tpu.memory_space<vmem>>, vector<32x128xbf16>
    %c0_2 = arith.constant 0 : index
    %c0_3 = arith.constant 0 : index
    %4 = vector.load %arg4[%c0_2, %c0_3] : memref<32x1xf32, #tpu.memory_space<vmem>>, vector<32x1xf32>
    %c0_4 = arith.constant 0 : index
    %c0_5 = arith.constant 0 : index
    %5 = vector.load %arg5[%c0_4, %c0_5] : memref<1x1xf32, #tpu.memory_space<vmem>>, vector<1x1xf32>
    %c0_6 = arith.constant 0 : index
    %c0_7 = arith.constant 0 : index
    %6 = vector.load %arg9[%c0_6, %c0_7] : memref<8x32xf32, #tpu.memory_space<vmem>>, vector<8x32xf32>
    %c0_8 = arith.constant 0 : index
    %c0_9 = arith.constant 0 : index
    %7 = vector.load %arg10[%c0_8, %c0_9] : memref<8x32xf32, #tpu.memory_space<vmem>>, vector<8x32xf32>
    %c0_i32_10 = arith.constant 0 : i32
    %8 = arith.index_cast %c0_i32_10 : i32 to index
    %c0_11 = arith.constant 0 : index
    %c0_12 = arith.constant 0 : index
    %9 = vector.load %arg2[%8, %c0_11, %c0_12] : memref<8x8x128xf32, #tpu.memory_space<vmem>>, vector<1x8x128xf32>
    %10 = vector.shape_cast %9 : vector<1x8x128xf32> to vector<8x128xf32>
    %11 = arith.truncf %6 : vector<8x32xf32> to vector<8x32xbf16>
    %cst = arith.constant dense<0.000000e+00> : vector<8x128xf32>
    %12 = tpu.matmul %11, %3, %cst {dimension_numbers = #tpu.dot_dimension_numbers<[1], [0], [0], [1], [0, 0, 1, 1], [], []>} : vector<8x32xbf16>, vector<32x128xbf16>, vector<8x128xf32> -> vector<8x128xf32>
    %13 = arith.addf %10, %12 : vector<8x128xf32>
    %14 = vector.extract_strided_slice %13 {offsets = [0, 0], sizes = [8, 96], strides = [1, 1]} : vector<8x128xf32> to vector<8x96xf32>
    %15 = arith.negf %14 : vector<8x96xf32>
    %16 = math.exp %15 : vector<8x96xf32>
    %cst_13 = arith.constant 1.000000e+00 : f32
    %17 = vector.broadcast %cst_13 : f32 to vector<8x96xf32>
    %18 = arith.addf %17, %16 : vector<8x96xf32>
    %19 = arith.divf %17, %18 : vector<8x96xf32>
    %20 = vector.extract_strided_slice %19 {offsets = [0, 0], sizes = [8, 32], strides = [1, 1]} : vector<8x96xf32> to vector<8x32xf32>
    %21 = vector.extract_strided_slice %19 {offsets = [0, 32], sizes = [8, 32], strides = [1, 1]} : vector<8x96xf32> to vector<8x32xf32>
    %22 = vector.extract_strided_slice %19 {offsets = [0, 64], sizes = [8, 32], strides = [1, 1]} : vector<8x96xf32> to vector<8x32xf32>
    %23 = vector.extract_strided_slice %13 {offsets = [0, 96], sizes = [8, 32], strides = [1, 1]} : vector<8x128xf32> to vector<8x32xf32>
    %24 = math.tanh %23 : vector<8x32xf32>
    %25 = arith.mulf %21, %7 : vector<8x32xf32>
    %26 = arith.mulf %20, %24 : vector<8x32xf32>
    %27 = arith.addf %25, %26 : vector<8x32xf32>
    %28 = math.tanh %27 : vector<8x32xf32>
    %29 = arith.mulf %22, %28 : vector<8x32xf32>
    %30 = arith.index_cast %c0_i32_10 : i32 to index
    %c0_14 = arith.constant 0 : index
    %c0_15 = arith.constant 0 : index
    %31 = vector.load %arg11[%30, %c0_14, %c0_15] : memref<8x8x32xf32, #tpu.memory_space<vmem>>, vector<1x8x32xf32>
    %32 = vector.shape_cast %31 : vector<1x8x32xf32> to vector<8x32xf32>
    %33 = vector.shape_cast %29 : vector<8x32xf32> to vector<1x8x32xf32>
    tpu.vector_store %arg11[%30, %c0_14, %c0_15], %33 {strides = array<i32>} : memref<8x8x32xf32, #tpu.memory_space<vmem>>, vector<1x8x32xf32>,
    %c1_i32 = arith.constant 1 : i32
    %34 = arith.index_cast %c1_i32 : i32 to index
    %c0_16 = arith.constant 0 : index
    %c0_17 = arith.constant 0 : index
    %35 = vector.load %arg2[%34, %c0_16, %c0_17] : memref<8x8x128xf32, #tpu.memory_space<vmem>>, vector<1x8x128xf32>
    %36 = vector.shape_cast %35 : vector<1x8x128xf32> to vector<8x128xf32>
    %37 = arith.truncf %29 : vector<8x32xf32> to vector<8x32xbf16>
    %cst_18 = arith.constant dense<0.000000e+00> : vector<8x128xf32>
    %38 = tpu.matmul %37, %3, %cst_18 {dimension_numbers = #tpu.dot_dimension_numbers<[1], [0], [0], [1], [0, 0, 1, 1], [], []>} : vector<8x32xbf16>, vector<32x128xbf16>, vector<8x128xf32> -> vector<8x128xf32>
    %39 = arith.addf %36, %38 : vector<8x128xf32>
    %40 = vector.extract_strided_slice %39 {offsets = [0, 0], sizes = [8, 96], strides = [1, 1]} : vector<8x128xf32> to vector<8x96xf32>
    %41 = arith.negf %40 : vector<8x96xf32>
    %42 = math.exp %41 : vector<8x96xf32>
    %cst_19 = arith.constant 1.000000e+00 : f32
    %43 = vector.broadcast %cst_19 : f32 to vector<8x96xf32>
    %44 = arith.addf %43, %42 : vector<8x96xf32>
    %45 = arith.divf %43, %44 : vector<8x96xf32>
    %46 = vector.extract_strided_slice %45 {offsets = [0, 0], sizes = [8, 32], strides = [1, 1]} : vector<8x96xf32> to vector<8x32xf32>
    %47 = vector.extract_strided_slice %45 {offsets = [0, 32], sizes = [8, 32], strides = [1, 1]} : vector<8x96xf32> to vector<8x32xf32>
    %48 = vector.extract_strided_slice %45 {offsets = [0, 64], sizes = [8, 32], strides = [1, 1]} : vector<8x96xf32> to vector<8x32xf32>
    %49 = vector.extract_strided_slice %39 {offsets = [0, 96], sizes = [8, 32], strides = [1, 1]} : vector<8x128xf32> to vector<8x32xf32>
    %50 = math.tanh %49 : vector<8x32xf32>
    %51 = arith.mulf %47, %27 : vector<8x32xf32>
    %52 = arith.mulf %46, %50 : vector<8x32xf32>
    %53 = arith.addf %51, %52 : vector<8x32xf32>
    %54 = math.tanh %53 : vector<8x32xf32>
    %55 = arith.mulf %48, %54 : vector<8x32xf32>
    %56 = arith.index_cast %c1_i32 : i32 to index
    %c0_20 = arith.constant 0 : index
    %c0_21 = arith.constant 0 : index
    %57 = vector.load %arg11[%56, %c0_20, %c0_21] : memref<8x8x32xf32, #tpu.memory_space<vmem>>, vector<1x8x32xf32>
    %58 = vector.shape_cast %57 : vector<1x8x32xf32> to vector<8x32xf32>
    %59 = vector.shape_cast %55 : vector<8x32xf32> to vector<1x8x32xf32>
    tpu.vector_store %arg11[%56, %c0_20, %c0_21], %59 {strides = array<i32>} : memref<8x8x32xf32, #tpu.memory_space<vmem>>, vector<1x8x32xf32>,
    %c2_i32 = arith.constant 2 : i32
    %60 = arith.index_cast %c2_i32 : i32 to index
    %c0_22 = arith.constant 0 : index
    %c0_23 = arith.constant 0 : index
    %61 = vector.load %arg2[%60, %c0_22, %c0_23] : memref<8x8x128xf32, #tpu.memory_space<vmem>>, vector<1x8x128xf32>
    %62 = vector.shape_cast %61 : vector<1x8x128xf32> to vector<8x128xf32>
    %63 = arith.truncf %55 : vector<8x32xf32> to vector<8x32xbf16>
    %cst_24 = arith.constant dense<0.000000e+00> : vector<8x128xf32>
    %64 = tpu.matmul %63, %3, %cst_24 {dimension_numbers = #tpu.dot_dimension_numbers<[1], [0], [0], [1], [0, 0, 1, 1], [], []>} : vector<8x32xbf16>, vector<32x128xbf16>, vector<8x128xf32> -> vector<8x128xf32>
    %65 = arith.addf %62, %64 : vector<8x128xf32>
    %66 = vector.extract_strided_slice %65 {offsets = [0, 0], sizes = [8, 96], strides = [1, 1]} : vector<8x128xf32> to vector<8x96xf32>
    %67 = arith.negf %66 : vector<8x96xf32>
    %68 = math.exp %67 : vector<8x96xf32>
    %cst_25 = arith.constant 1.000000e+00 : f32
    %69 = vector.broadcast %cst_25 : f32 to vector<8x96xf32>
    %70 = arith.addf %69, %68 : vector<8x96xf32>
    %71 = arith.divf %69, %70 : vector<8x96xf32>
    %72 = vector.extract_strided_slice %71 {offsets = [0, 0], sizes = [8, 32], strides = [1, 1]} : vector<8x96xf32> to vector<8x32xf32>
    %73 = vector.extract_strided_slice %71 {offsets = [0, 32], sizes = [8, 32], strides = [1, 1]} : vector<8x96xf32> to vector<8x32xf32>
    %74 = vector.extract_strided_slice %71 {offsets = [0, 64], sizes = [8, 32], strides = [1, 1]} : vector<8x96xf32> to vector<8x32xf32>
    %75 = vector.extract_strided_slice %65 {offsets = [0, 96], sizes = [8, 32], strides = [1, 1]} : vector<8x128xf32> to vector<8x32xf32>
    %76 = math.tanh %75 : vector<8x32xf32>
    %77 = arith.mulf %73, %53 : vector<8x32xf32>
    %78 = arith.mulf %72, %76 : vector<8x32xf32>
    %79 = arith.addf %77, %78 : vector<8x32xf32>
    %80 = math.tanh %79 : vector<8x32xf32>
    %81 = arith.mulf %74, %80 : vector<8x32xf32>
    %82 = arith.index_cast %c2_i32 : i32 to index
    %c0_26 = arith.constant 0 : index
    %c0_27 = arith.constant 0 : index
    %83 = vector.load %arg11[%82, %c0_26, %c0_27] : memref<8x8x32xf32, #tpu.memory_space<vmem>>, vector<1x8x32xf32>
    %84 = vector.shape_cast %83 : vector<1x8x32xf32> to vector<8x32xf32>
    %85 = vector.shape_cast %81 : vector<8x32xf32> to vector<1x8x32xf32>
    tpu.vector_store %arg11[%82, %c0_26, %c0_27], %85 {strides = array<i32>} : memref<8x8x32xf32, #tpu.memory_space<vmem>>, vector<1x8x32xf32>,
    %c3_i32 = arith.constant 3 : i32
    %86 = arith.index_cast %c3_i32 : i32 to index
    %c0_28 = arith.constant 0 : index
    %c0_29 = arith.constant 0 : index
    %87 = vector.load %arg2[%86, %c0_28, %c0_29] : memref<8x8x128xf32, #tpu.memory_space<vmem>>, vector<1x8x128xf32>
    %88 = vector.shape_cast %87 : vector<1x8x128xf32> to vector<8x128xf32>
    %89 = arith.truncf %81 : vector<8x32xf32> to vector<8x32xbf16>
    %cst_30 = arith.constant dense<0.000000e+00> : vector<8x128xf32>
    %90 = tpu.matmul %89, %3, %cst_30 {dimension_numbers = #tpu.dot_dimension_numbers<[1], [0], [0], [1], [0, 0, 1, 1], [], []>} : vector<8x32xbf16>, vector<32x128xbf16>, vector<8x128xf32> -> vector<8x128xf32>
    %91 = arith.addf %88, %90 : vector<8x128xf32>
    %92 = vector.extract_strided_slice %91 {offsets = [0, 0], sizes = [8, 96], strides = [1, 1]} : vector<8x128xf32> to vector<8x96xf32>
    %93 = arith.negf %92 : vector<8x96xf32>
    %94 = math.exp %93 : vector<8x96xf32>
    %cst_31 = arith.constant 1.000000e+00 : f32
    %95 = vector.broadcast %cst_31 : f32 to vector<8x96xf32>
    %96 = arith.addf %95, %94 : vector<8x96xf32>
    %97 = arith.divf %95, %96 : vector<8x96xf32>
    %98 = vector.extract_strided_slice %97 {offsets = [0, 0], sizes = [8, 32], strides = [1, 1]} : vector<8x96xf32> to vector<8x32xf32>
    %99 = vector.extract_strided_slice %97 {offsets = [0, 32], sizes = [8, 32], strides = [1, 1]} : vector<8x96xf32> to vector<8x32xf32>
    %100 = vector.extract_strided_slice %97 {offsets = [0, 64], sizes = [8, 32], strides = [1, 1]} : vector<8x96xf32> to vector<8x32xf32>
    %101 = vector.extract_strided_slice %91 {offsets = [0, 96], sizes = [8, 32], strides = [1, 1]} : vector<8x128xf32> to vector<8x32xf32>
    %102 = math.tanh %101 : vector<8x32xf32>
    %103 = arith.mulf %99, %79 : vector<8x32xf32>
    %104 = arith.mulf %98, %102 : vector<8x32xf32>
    %105 = arith.addf %103, %104 : vector<8x32xf32>
    %106 = math.tanh %105 : vector<8x32xf32>
    %107 = arith.mulf %100, %106 : vector<8x32xf32>
    %108 = arith.index_cast %c3_i32 : i32 to index
    %c0_32 = arith.constant 0 : index
    %c0_33 = arith.constant 0 : index
    %109 = vector.load %arg11[%108, %c0_32, %c0_33] : memref<8x8x32xf32, #tpu.memory_space<vmem>>, vector<1x8x32xf32>
    %110 = vector.shape_cast %109 : vector<1x8x32xf32> to vector<8x32xf32>
    %111 = vector.shape_cast %107 : vector<8x32xf32> to vector<1x8x32xf32>
    tpu.vector_store %arg11[%108, %c0_32, %c0_33], %111 {strides = array<i32>} : memref<8x8x32xf32, #tpu.memory_space<vmem>>, vector<1x8x32xf32>,
    %c4_i32 = arith.constant 4 : i32
    %112 = arith.index_cast %c4_i32 : i32 to index
    %c0_34 = arith.constant 0 : index
    %c0_35 = arith.constant 0 : index
    %113 = vector.load %arg2[%112, %c0_34, %c0_35] : memref<8x8x128xf32, #tpu.memory_space<vmem>>, vector<1x8x128xf32>
    %114 = vector.shape_cast %113 : vector<1x8x128xf32> to vector<8x128xf32>
    %115 = arith.truncf %107 : vector<8x32xf32> to vector<8x32xbf16>
    %cst_36 = arith.constant dense<0.000000e+00> : vector<8x128xf32>
    %116 = tpu.matmul %115, %3, %cst_36 {dimension_numbers = #tpu.dot_dimension_numbers<[1], [0], [0], [1], [0, 0, 1, 1], [], []>} : vector<8x32xbf16>, vector<32x128xbf16>, vector<8x128xf32> -> vector<8x128xf32>
    %117 = arith.addf %114, %116 : vector<8x128xf32>
    %118 = vector.extract_strided_slice %117 {offsets = [0, 0], sizes = [8, 96], strides = [1, 1]} : vector<8x128xf32> to vector<8x96xf32>
    %119 = arith.negf %118 : vector<8x96xf32>
    %120 = math.exp %119 : vector<8x96xf32>
    %cst_37 = arith.constant 1.000000e+00 : f32
    %121 = vector.broadcast %cst_37 : f32 to vector<8x96xf32>
    %122 = arith.addf %121, %120 : vector<8x96xf32>
    %123 = arith.divf %121, %122 : vector<8x96xf32>
    %124 = vector.extract_strided_slice %123 {offsets = [0, 0], sizes = [8, 32], strides = [1, 1]} : vector<8x96xf32> to vector<8x32xf32>
    %125 = vector.extract_strided_slice %123 {offsets = [0, 32], sizes = [8, 32], strides = [1, 1]} : vector<8x96xf32> to vector<8x32xf32>
    %126 = vector.extract_strided_slice %123 {offsets = [0, 64], sizes = [8, 32], strides = [1, 1]} : vector<8x96xf32> to vector<8x32xf32>
    %127 = vector.extract_strided_slice %117 {offsets = [0, 96], sizes = [8, 32], strides = [1, 1]} : vector<8x128xf32> to vector<8x32xf32>
    %128 = math.tanh %127 : vector<8x32xf32>
    %129 = arith.mulf %125, %105 : vector<8x32xf32>
    %130 = arith.mulf %124, %128 : vector<8x32xf32>
    %131 = arith.addf %129, %130 : vector<8x32xf32>
    %132 = math.tanh %131 : vector<8x32xf32>
    %133 = arith.mulf %126, %132 : vector<8x32xf32>
    %134 = arith.index_cast %c4_i32 : i32 to index
    %c0_38 = arith.constant 0 : index
    %c0_39 = arith.constant 0 : index
    %135 = vector.load %arg11[%134, %c0_38, %c0_39] : memref<8x8x32xf32, #tpu.memory_space<vmem>>, vector<1x8x32xf32>
    %136 = vector.shape_cast %135 : vector<1x8x32xf32> to vector<8x32xf32>
    %137 = vector.shape_cast %133 : vector<8x32xf32> to vector<1x8x32xf32>
    tpu.vector_store %arg11[%134, %c0_38, %c0_39], %137 {strides = array<i32>} : memref<8x8x32xf32, #tpu.memory_space<vmem>>, vector<1x8x32xf32>,
    %c5_i32 = arith.constant 5 : i32
    %138 = arith.index_cast %c5_i32 : i32 to index
    %c0_40 = arith.constant 0 : index
    %c0_41 = arith.constant 0 : index
    %139 = vector.load %arg2[%138, %c0_40, %c0_41] : memref<8x8x128xf32, #tpu.memory_space<vmem>>, vector<1x8x128xf32>
    %140 = vector.shape_cast %139 : vector<1x8x128xf32> to vector<8x128xf32>
    %141 = arith.truncf %133 : vector<8x32xf32> to vector<8x32xbf16>
    %cst_42 = arith.constant dense<0.000000e+00> : vector<8x128xf32>
    %142 = tpu.matmul %141, %3, %cst_42 {dimension_numbers = #tpu.dot_dimension_numbers<[1], [0], [0], [1], [0, 0, 1, 1], [], []>} : vector<8x32xbf16>, vector<32x128xbf16>, vector<8x128xf32> -> vector<8x128xf32>
    %143 = arith.addf %140, %142 : vector<8x128xf32>
    %144 = vector.extract_strided_slice %143 {offsets = [0, 0], sizes = [8, 96], strides = [1, 1]} : vector<8x128xf32> to vector<8x96xf32>
    %145 = arith.negf %144 : vector<8x96xf32>
    %146 = math.exp %145 : vector<8x96xf32>
    %cst_43 = arith.constant 1.000000e+00 : f32
    %147 = vector.broadcast %cst_43 : f32 to vector<8x96xf32>
    %148 = arith.addf %147, %146 : vector<8x96xf32>
    %149 = arith.divf %147, %148 : vector<8x96xf32>
    %150 = vector.extract_strided_slice %149 {offsets = [0, 0], sizes = [8, 32], strides = [1, 1]} : vector<8x96xf32> to vector<8x32xf32>
    %151 = vector.extract_strided_slice %149 {offsets = [0, 32], sizes = [8, 32], strides = [1, 1]} : vector<8x96xf32> to vector<8x32xf32>
    %152 = vector.extract_strided_slice %149 {offsets = [0, 64], sizes = [8, 32], strides = [1, 1]} : vector<8x96xf32> to vector<8x32xf32>
    %153 = vector.extract_strided_slice %143 {offsets = [0, 96], sizes = [8, 32], strides = [1, 1]} : vector<8x128xf32> to vector<8x32xf32>
    %154 = math.tanh %153 : vector<8x32xf32>
    %155 = arith.mulf %151, %131 : vector<8x32xf32>
    %156 = arith.mulf %150, %154 : vector<8x32xf32>
    %157 = arith.addf %155, %156 : vector<8x32xf32>
    %158 = math.tanh %157 : vector<8x32xf32>
    %159 = arith.mulf %152, %158 : vector<8x32xf32>
    %160 = arith.index_cast %c5_i32 : i32 to index
    %c0_44 = arith.constant 0 : index
    %c0_45 = arith.constant 0 : index
    %161 = vector.load %arg11[%160, %c0_44, %c0_45] : memref<8x8x32xf32, #tpu.memory_space<vmem>>, vector<1x8x32xf32>
    %162 = vector.shape_cast %161 : vector<1x8x32xf32> to vector<8x32xf32>
    %163 = vector.shape_cast %159 : vector<8x32xf32> to vector<1x8x32xf32>
    tpu.vector_store %arg11[%160, %c0_44, %c0_45], %163 {strides = array<i32>} : memref<8x8x32xf32, #tpu.memory_space<vmem>>, vector<1x8x32xf32>,
    %c6_i32 = arith.constant 6 : i32
    %164 = arith.index_cast %c6_i32 : i32 to index
    %c0_46 = arith.constant 0 : index
    %c0_47 = arith.constant 0 : index
    %165 = vector.load %arg2[%164, %c0_46, %c0_47] : memref<8x8x128xf32, #tpu.memory_space<vmem>>, vector<1x8x128xf32>
    %166 = vector.shape_cast %165 : vector<1x8x128xf32> to vector<8x128xf32>
    %167 = arith.truncf %159 : vector<8x32xf32> to vector<8x32xbf16>
    %cst_48 = arith.constant dense<0.000000e+00> : vector<8x128xf32>
    %168 = tpu.matmul %167, %3, %cst_48 {dimension_numbers = #tpu.dot_dimension_numbers<[1], [0], [0], [1], [0, 0, 1, 1], [], []>} : vector<8x32xbf16>, vector<32x128xbf16>, vector<8x128xf32> -> vector<8x128xf32>
    %169 = arith.addf %166, %168 : vector<8x128xf32>
    %170 = vector.extract_strided_slice %169 {offsets = [0, 0], sizes = [8, 96], strides = [1, 1]} : vector<8x128xf32> to vector<8x96xf32>
    %171 = arith.negf %170 : vector<8x96xf32>
    %172 = math.exp %171 : vector<8x96xf32>
    %cst_49 = arith.constant 1.000000e+00 : f32
    %173 = vector.broadcast %cst_49 : f32 to vector<8x96xf32>
    %174 = arith.addf %173, %172 : vector<8x96xf32>
    %175 = arith.divf %173, %174 : vector<8x96xf32>
    %176 = vector.extract_strided_slice %175 {offsets = [0, 0], sizes = [8, 32], strides = [1, 1]} : vector<8x96xf32> to vector<8x32xf32>
    %177 = vector.extract_strided_slice %175 {offsets = [0, 32], sizes = [8, 32], strides = [1, 1]} : vector<8x96xf32> to vector<8x32xf32>
    %178 = vector.extract_strided_slice %175 {offsets = [0, 64], sizes = [8, 32], strides = [1, 1]} : vector<8x96xf32> to vector<8x32xf32>
    %179 = vector.extract_strided_slice %169 {offsets = [0, 96], sizes = [8, 32], strides = [1, 1]} : vector<8x128xf32> to vector<8x32xf32>
    %180 = math.tanh %179 : vector<8x32xf32>
    %181 = arith.mulf %177, %157 : vector<8x32xf32>
    %182 = arith.mulf %176, %180 : vector<8x32xf32>
    %183 = arith.addf %181, %182 : vector<8x32xf32>
    %184 = math.tanh %183 : vector<8x32xf32>
    %185 = arith.mulf %178, %184 : vector<8x32xf32>
    %186 = arith.index_cast %c6_i32 : i32 to index
    %c0_50 = arith.constant 0 : index
    %c0_51 = arith.constant 0 : index
    %187 = vector.load %arg11[%186, %c0_50, %c0_51] : memref<8x8x32xf32, #tpu.memory_space<vmem>>, vector<1x8x32xf32>
    %188 = vector.shape_cast %187 : vector<1x8x32xf32> to vector<8x32xf32>
    %189 = vector.shape_cast %185 : vector<8x32xf32> to vector<1x8x32xf32>
    tpu.vector_store %arg11[%186, %c0_50, %c0_51], %189 {strides = array<i32>} : memref<8x8x32xf32, #tpu.memory_space<vmem>>, vector<1x8x32xf32>,
    %c7_i32 = arith.constant 7 : i32
    %190 = arith.index_cast %c7_i32 : i32 to index
    %c0_52 = arith.constant 0 : index
    %c0_53 = arith.constant 0 : index
    %191 = vector.load %arg2[%190, %c0_52, %c0_53] : memref<8x8x128xf32, #tpu.memory_space<vmem>>, vector<1x8x128xf32>
    %192 = vector.shape_cast %191 : vector<1x8x128xf32> to vector<8x128xf32>
    %193 = arith.truncf %185 : vector<8x32xf32> to vector<8x32xbf16>
    %cst_54 = arith.constant dense<0.000000e+00> : vector<8x128xf32>
    %194 = tpu.matmul %193, %3, %cst_54 {dimension_numbers = #tpu.dot_dimension_numbers<[1], [0], [0], [1], [0, 0, 1, 1], [], []>} : vector<8x32xbf16>, vector<32x128xbf16>, vector<8x128xf32> -> vector<8x128xf32>
    %195 = arith.addf %192, %194 : vector<8x128xf32>
    %196 = vector.extract_strided_slice %195 {offsets = [0, 0], sizes = [8, 96], strides = [1, 1]} : vector<8x128xf32> to vector<8x96xf32>
    %197 = arith.negf %196 : vector<8x96xf32>
    %198 = math.exp %197 : vector<8x96xf32>
    %cst_55 = arith.constant 1.000000e+00 : f32
    %199 = vector.broadcast %cst_55 : f32 to vector<8x96xf32>
    %200 = arith.addf %199, %198 : vector<8x96xf32>
    %201 = arith.divf %199, %200 : vector<8x96xf32>
    %202 = vector.extract_strided_slice %201 {offsets = [0, 0], sizes = [8, 32], strides = [1, 1]} : vector<8x96xf32> to vector<8x32xf32>
    %203 = vector.extract_strided_slice %201 {offsets = [0, 32], sizes = [8, 32], strides = [1, 1]} : vector<8x96xf32> to vector<8x32xf32>
    %204 = vector.extract_strided_slice %201 {offsets = [0, 64], sizes = [8, 32], strides = [1, 1]} : vector<8x96xf32> to vector<8x32xf32>
    %205 = vector.extract_strided_slice %195 {offsets = [0, 96], sizes = [8, 32], strides = [1, 1]} : vector<8x128xf32> to vector<8x32xf32>
    %206 = math.tanh %205 : vector<8x32xf32>
    %207 = arith.mulf %203, %183 : vector<8x32xf32>
    %208 = arith.mulf %202, %206 : vector<8x32xf32>
    %209 = arith.addf %207, %208 : vector<8x32xf32>
    %210 = math.tanh %209 : vector<8x32xf32>
    %211 = arith.mulf %204, %210 : vector<8x32xf32>
    %212 = arith.index_cast %c7_i32 : i32 to index
    %c0_56 = arith.constant 0 : index
    %c0_57 = arith.constant 0 : index
    %213 = vector.load %arg11[%212, %c0_56, %c0_57] : memref<8x8x32xf32, #tpu.memory_space<vmem>>, vector<1x8x32xf32>
    %214 = vector.shape_cast %213 : vector<1x8x32xf32> to vector<8x32xf32>
    %215 = vector.shape_cast %211 : vector<8x32xf32> to vector<1x8x32xf32>
    tpu.vector_store %arg11[%212, %c0_56, %c0_57], %215 {strides = array<i32>} : memref<8x8x32xf32, #tpu.memory_space<vmem>>, vector<1x8x32xf32>,
    %c8_i32 = arith.constant 8 : i32
    %c0_58 = arith.constant 0 : index
    %c0_59 = arith.constant 0 : index
    %216 = vector.load %arg9[%c0_58, %c0_59] : memref<8x32xf32, #tpu.memory_space<vmem>>, vector<8x32xf32>
    tpu.vector_store %arg9[%c0_58, %c0_59], %211 {strides = array<i32>} : memref<8x32xf32, #tpu.memory_space<vmem>>, vector<8x32xf32>,
    %c0_60 = arith.constant 0 : index
    %c0_61 = arith.constant 0 : index
    %217 = vector.load %arg10[%c0_60, %c0_61] : memref<8x32xf32, #tpu.memory_space<vmem>>, vector<8x32xf32>
    tpu.vector_store %arg10[%c0_60, %c0_61], %209 {strides = array<i32>} : memref<8x32xf32, #tpu.memory_space<vmem>>, vector<8x32xf32>,
    %c0_62 = arith.constant 0 : index
    %c0_63 = arith.constant 0 : index
    %c0_64 = arith.constant 0 : index
    %218 = vector.load %arg11[%c0_62, %c0_63, %c0_64] : memref<8x8x32xf32, #tpu.memory_space<vmem>>, vector<8x8x32xf32>
    %219 = vector.shape_cast %218 : vector<8x8x32xf32> to vector<64x32xf32>
    %cst_65 = arith.constant dense<0.000000e+00> : vector<64x1xf32>
    %220 = tpu.matmul %219, %4, %cst_65 {dimension_numbers = #tpu.dot_dimension_numbers<[1], [0], [0], [1], [0, 0, 1, 1], [], []>} : vector<64x32xf32>, vector<32x1xf32>, vector<64x1xf32> -> vector<64x1xf32>
    %221 = vector.broadcast %5 : vector<1x1xf32> to vector<64x1xf32>
    %222 = arith.addf %220, %221 : vector<64x1xf32>
    %223 = vector.shape_cast %222 : vector<64x1xf32> to vector<8x8x1xf32>
    %c0_66 = arith.constant 0 : index
    %c0_67 = arith.constant 0 : index
    %c0_68 = arith.constant 0 : index
    %224 = vector.load %arg6[%c0_66, %c0_67, %c0_68] : memref<8x8x1xf32, #tpu.memory_space<vmem>>, vector<8x8x1xf32>
    tpu.vector_store %arg6[%c0_66, %c0_67, %c0_68], %223 {strides = array<i32>} : memref<8x8x1xf32, #tpu.memory_space<vmem>>, vector<8x8x1xf32>,
    %c0_i32_69 = arith.constant 0 : i32
    %225 = arith.cmpi eq, %arg1, %c0_i32_69 : i32
    %226 = arith.extui %225 : i1 to i32
    %c0_i32_70 = arith.constant 0 : i32
    %227 = arith.cmpi ne, %226, %c0_i32_70 : i32
    scf.if %227 {
      %c0_71 = arith.constant 0 : index
      %c0_72 = arith.constant 0 : index
      %228 = vector.load %arg7[%c0_71, %c0_72] : memref<8x32xf32, #tpu.memory_space<vmem>>, vector<8x32xf32>
      tpu.vector_store %arg7[%c0_71, %c0_72], %211 {strides = array<i32>} : memref<8x32xf32, #tpu.memory_space<vmem>>, vector<8x32xf32>,
      %c0_73 = arith.constant 0 : index
      %c0_74 = arith.constant 0 : index
      %229 = vector.load %arg8[%c0_73, %c0_74] : memref<8x32xf32, #tpu.memory_space<vmem>>, vector<8x32xf32>
      tpu.vector_store %arg8[%c0_73, %c0_74], %209 {strides = array<i32>} : memref<8x32xf32, #tpu.memory_space<vmem>>, vector<8x32xf32>,
    } else {
    }
    return
  }
  func.func @transform_0(%arg0: i32, %arg1: i32) -> (i32, i32, i32) {
    %c0_i32 = arith.constant 0 : i32
    %c0_i32_0 = arith.constant 0 : i32
    return %arg1, %arg0, %c0_i32 : i32, i32, i32
  }
  func.func @transform_1(%arg0: i32, %arg1: i32) -> (i32, i32) {
    %c0_i32 = arith.constant 0 : i32
    %c0_i32_0 = arith.constant 0 : i32
    %c0_i32_1 = arith.constant 0 : i32
    return %c0_i32, %c0_i32_0 : i32, i32
  }
  func.func @transform_2(%arg0: i32, %arg1: i32) -> (i32, i32) {
    %c0_i32 = arith.constant 0 : i32
    %c0_i32_0 = arith.constant 0 : i32
    %c0_i32_1 = arith.constant 0 : i32
    return %c0_i32, %c0_i32_0 : i32, i32
  }
  func.func @transform_3(%arg0: i32, %arg1: i32) -> (i32, i32) {
    %c0_i32 = arith.constant 0 : i32
    %c0_i32_0 = arith.constant 0 : i32
    %c0_i32_1 = arith.constant 0 : i32
    return %c0_i32, %c0_i32_0 : i32, i32
  }
  func.func @transform_4(%arg0: i32, %arg1: i32) -> (i32, i32, i32) {
    %c0_i32 = arith.constant 0 : i32
    %c0_i32_0 = arith.constant 0 : i32
    return %arg1, %arg0, %c0_i32 : i32, i32, i32
  }
  func.func @transform_5(%arg0: i32, %arg1: i32) -> (i32, i32) {
    %c0_i32 = arith.constant 0 : i32
    %c0_i32_0 = arith.constant 0 : i32
    return %arg0, %c0_i32 : i32, i32
  }
  func.func @transform_6(%arg0: i32, %arg1: i32) -> (i32, i32) {
    %c0_i32 = arith.constant 0 : i32
    %c0_i32_0 = arith.constant 0 : i32
    return %arg0, %c0_i32 : i32, i32
  }
}

</mosaic_0001>

<llo_original>
// kernel: tpu_custom_call.1
$region0: #{tpu_custom_call.1}
  #allocation0 [shape = 'u32[]', space=smem, size = 0x4, offset = 0x4, fixed_abs, tag = 'smem constant byte address 0x4 - core index']
  #allocation1 [shape = 'u32[144,128]{1,0:T(1,128)}', space=vmem, size = 0x12000, scoped, tag = 'internal scratch']
  %s0 = inlined_call_operand.hbm [shape: f32[8,128], index: 0, kind: input, shape index: {}]
  %s1 = inlined_call_operand.hbm [shape: f32[8,128], index: 1, kind: output, shape index: {}]
  %s2 = sld [smem:[#allocation0]]
  $region41: #{tpu_custom_call.1} parent=0
    _
  %s4 = ssub.s32 1, %s2
  %s5 = scalar_select 0, %s4, %s2
  $region1: #{tpu_custom_call.1} parent=0
    #allocation2 [shape = 'u8[4096]{0}', space=vmem, size = 0x1000, scoped, tag = 'input window, operand 0, single buffered']
    #allocation3 [shape = 's32[2]{0}', space=sflag, size = 0x8, scoped, tag = 'scoped memory for tpu_custom_call.1']
    #allocation4 [shape = 's32[2]{0}', space=sflag, size = 0x8, scoped, tag = 'scoped memory for tpu_custom_call.1']
    #allocation5 [shape = 'u8[4096]{0}', space=vmem, size = 0x1000, scoped, tag = 'output window, operand 0, single buffered']
    %6 = vsyncpa [#allocation3], 0
    %7 = vsyncpa [#allocation4], 0
    loop: start=0, step=1, limit=4
    $region2: #{tpu_custom_call.1} parent=1 // loop_pre_header
      _
    $region3: #{tpu_custom_call.1} parent=1 // loop_header
      %s9 = sphi 0, %s13
      %p10 = scmp.ge.s32.totalorder %s9, 4
      %s17 = sphi 0, %s17
      %s19 = sphi 0, %s17
      %s20 = sphi 0, %s19
      %s34 = sphi 0, %s20
      %s38 = sphi 0, %s38
      %s40 = sphi 0, %s38
      %s41 = sphi 0, %s40
      %s55 = sphi 0, %s41
    $region4: #{tpu_custom_call.1} parent=1 // loop_header_branch
      %12 = sbr.rel (%p10) target = $region8
    $region5: #{tpu_custom_call.1} parent=1 // loop_body
      %s14 = ssub.s32 %s9, 1
      %s15 = ssub.s32 %s9, 2
      %s16 = sadd.s32 %s9, 1
      %s18 = sadd.s32 %s17, 1
      %p21 = scmp.eq.s32.totalorder %s9, 1
      %p22 = scmp.ne.s32.totalorder %s17, %s19
      %p23 = scmp.eq.s32.totalorder %s9, 0
      %p24 = por %p22, %p23
      %p25 = scmp.ne.s32.totalorder %s17, %s19
      %p26 = scmp.eq.s32.totalorder %s14, 1
      %p27 = por %p25, %p26
      %p28 = scmp.ne.s32.totalorder %s19, %s20
      %p29 = scmp.eq.s32.totalorder %s14, 0
      %p30 = por %p28, %p29
      %p31 = scmp.ne.s32.totalorder %s19, %s20
      %p32 = scmp.eq.s32.totalorder %s15, 1
      %p33 = por %p31, %p32
      %p35 = scmp.ne.s32.totalorder %s20, %s34
      %p36 = scmp.eq.s32.totalorder %s15, 0
      %p37 = por %p35, %p36
      %s39 = sadd.s32 %s38, 1
      %p42 = scmp.eq.s32.totalorder %s9, 1
      %p43 = scmp.ne.s32.totalorder %s38, %s40
      %p44 = scmp.eq.s32.totalorder %s9, 0
      %p45 = por %p43, %p44
      %p46 = scmp.ne.s32.totalorder %s38, %s40
      %p47 = scmp.eq.s32.totalorder %s14, 1
      %p48 = por %p46, %p47
      %p49 = scmp.ne.s32.totalorder %s40, %s41
      %p50 = scmp.eq.s32.totalorder %s14, 0
      %p51 = por %p49, %p50
      %p52 = scmp.ne.s32.totalorder %s40, %s41
      %p53 = scmp.eq.s32.totalorder %s15, 1
      %p54 = por %p52, %p53
      %p56 = scmp.ne.s32.totalorder %s41, %s55
      %p57 = scmp.eq.s32.totalorder %s15, 0
      %p58 = por %p56, %p57
      %p59 = scmp.le.s32.totalorder 1, %s9
      %p60 = scmp.lt.s32.totalorder %s9, 3
      %p61 = pnand %p59, %p60
      %p62 = pneg %p61
      // Predicated region
      $region9: #{tpu_custom_call.1} parent=5 // pred_check
        _
      $region10: #{tpu_custom_call.1} parent=5 // pred_check_branch
        %64 = sbr.rel (%p61) target = $region12
      $region11: #{tpu_custom_call.1} parent=5 // pred_region
        %s65 = ssub.s32 %s9, 1
        // Predicated region
        $region13: #{tpu_custom_call.1} parent=11 // pred_check
          %p66 = pneg %p30
        $region14: #{tpu_custom_call.1} parent=11 // pred_check_branch
          %68 = sbr.rel (%p66) target = $region16
        $region15: #{tpu_custom_call.1} parent=11 // pred_region
          %s70 = ssub.s32 128, 128
          %71 = vsyncadd [#allocation3], %s70
          %s73 = sshll.u32 [#allocation2], 4
          %s74 = int_to_ptr.vmem [resolvable:$true] %s73
          %76 = dma.hbm_to_vmem [thread:$0]  %s0, 128, %s74, [#allocation3]
        $region16: #{tpu_custom_call.1} parent=11 // pred_fallthru
          _
      $region12: #{tpu_custom_call.1} parent=5 // pred_fallthru
        _
      %p77 = scmp.lt.s32.totalorder %s9, 2
      // Predicated region
      $region17: #{tpu_custom_call.1} parent=5 // pred_check
        %p78 = pneg %p77
      $region18: #{tpu_custom_call.1} parent=5 // pred_check_branch
        %80 = sbr.rel (%p78) target = $region20
      $region19: #{tpu_custom_call.1} parent=5 // pred_region
        _
      $region20: #{tpu_custom_call.1} parent=5 // pred_fallthru
        _
      %p81 = scmp.le.s32.totalorder 1, %s9
      %p82 = scmp.lt.s32.totalorder %s9, 3
      %p83 = pnand %p81, %p82
      %p84 = pneg %p83
      // Predicated region
      $region21: #{tpu_custom_call.1} parent=5 // pred_check
        _
      $region22: #{tpu_custom_call.1} parent=5 // pred_check_branch
        %86 = sbr.rel (%p83) target = $region24
      $region23: #{tpu_custom_call.1} parent=5 // pred_region
        %s87 = ssub.s32 %s9, 1
        // Predicated region
        $region25: #{tpu_custom_call.1} parent=23 // pred_check
          %p88 = pneg %p30
        $region26: #{tpu_custom_call.1} parent=23 // pred_check_branch
          %90 = sbr.rel (%p88) target = $region28
        $region27: #{tpu_custom_call.1} parent=23 // pred_region
          %91 = dma.done [#allocation3], 128
        $region28: #{tpu_custom_call.1} parent=23 // pred_fallthru
          _
        %p92 = pneg %p30
        %p93 = pneg %p27
        %p94 = pneg %p51
        %p95 = pneg %p48
        %v96 = vld [vmem:[#allocation2] sm:$0xff]
        %v97 = vadd.f32 %v96, 1.0
        %98 = vst [vmem:[#allocation5] sm:$0xff] %v97
        // Predicated region
        $region29: #{tpu_custom_call.1} parent=23 // pred_check
          %p99 = pneg %p48
        $region30: #{tpu_custom_call.1} parent=23 // pred_check_branch
          %101 = sbr.rel (%p99) target = $region32
        $region31: #{tpu_custom_call.1} parent=23 // pred_region
          %s103 = ssub.s32 128, 128
          %104 = vsyncadd [#allocation4], %s103
          %s106 = sshll.u32 [#allocation5], 4
          %s107 = int_to_ptr.vmem [resolvable:$true] %s106
          %109 = dma.vmem_to_hbm [thread:$0]  %s107, 128, %s1, [#allocation4]
        $region32: #{tpu_custom_call.1} parent=23 // pred_fallthru
          _
        // Predicated region
        $region33: #{tpu_custom_call.1} parent=23 // pred_check
          %p110 = pneg %p48
        $region34: #{tpu_custom_call.1} parent=23 // pred_check_branch
          %112 = sbr.rel (%p110) target = $region36
        $region35: #{tpu_custom_call.1} parent=23 // pred_region
          %113 = dma.done [#allocation4], 128
        $region36: #{tpu_custom_call.1} parent=23 // pred_fallthru
          _
      $region24: #{tpu_custom_call.1} parent=5 // pred_fallthru
        _
      %p114 = scmp.le.s32.totalorder 2, %s9
      // Predicated region
      $region37: #{tpu_custom_call.1} parent=5 // pred_check
        %p115 = pneg %p114
      $region38: #{tpu_custom_call.1} parent=5 // pred_check_branch
        %117 = sbr.rel (%p115) target = $region40
      $region39: #{tpu_custom_call.1} parent=5 // pred_region
        %s118 = ssub.s32 %s9, 2
      $region40: #{tpu_custom_call.1} parent=5 // pred_fallthru
        _
    $region6: #{tpu_custom_call.1} parent=1 // loop_footer
      %s13 = sadd.s32 1, %s9
    $region7: #{tpu_custom_call.1} parent=1 // loop_footer_branch
      %8 = sbr.rel target = $region3
    $region8: #{tpu_custom_call.1} parent=1 // loop_exit
      _
    %119 = vsyncpa [#allocation3], 1
    %s120 = scalar_lea.sflag [#allocation3], 1
    %121 = vsyncpa %s120, 1
    %122 = vsyncpa [#allocation4], 1
    %s123 = scalar_lea.sflag [#allocation4], 1
    %124 = vsyncpa %s123, 1

// kernel: lstm_model_forward.4
$region0: #{lstm_model_forward.4}
  #allocation0 [shape = 'u32[]', space=smem, size = 0x4, offset = 0x4, fixed_abs, tag = 'smem constant byte address 0x4 - core index']
  #allocation1 [shape = 'u32[144,128]{1,0:T(1,128)}', space=vmem, size = 0x12000, scoped, tag = 'internal scratch']
  %s0 = inlined_call_operand.vmem [shape: bf16[128,4], index: 0, kind: input, shape index: {}]
  %s1 = inlined_call_operand.vmem [shape: bf16[4,128], index: 1, kind: input, shape index: {}]
  %s2 = inlined_call_operand.vmem [shape: f32[1,128], index: 2, kind: input, shape index: {}]
  %s3 = inlined_call_operand.vmem [shape: f32[128,128], index: 3, kind: output, shape index: {}]
  %s4 = sld [smem:[#allocation0]]
  $region22: #{lstm_model_forward.4} parent=0
    _
  %s6 = ssub.s32 1, %s4
  %s7 = scalar_select 0, %s6, %s4
  // Predicated region
  $region2: #{lstm_model_forward.4} parent=0 // pred_check
    _
  $region3: #{lstm_model_forward.4} parent=0 // pred_check_branch
    %9 = sbr.rel (0) target = $region5
  $region4: #{lstm_model_forward.4} parent=0 // pred_region
    _
  $region5: #{lstm_model_forward.4} parent=0 // pred_fallthru
    _
  // Predicated region
  $region6: #{lstm_model_forward.4} parent=0 // pred_check
    _
  $region7: #{lstm_model_forward.4} parent=0 // pred_check_branch
    %11 = sbr.rel (0) target = $region9
  $region8: #{lstm_model_forward.4} parent=0 // pred_region
    _
  $region9: #{lstm_model_forward.4} parent=0 // pred_fallthru
    _
  // Predicated region
  $region10: #{lstm_model_forward.4} parent=0 // pred_check
    _
  $region11: #{lstm_model_forward.4} parent=0 // pred_check_branch
    %13 = sbr.rel (0) target = $region13
  $region12: #{lstm_model_forward.4} parent=0 // pred_region
    _
  $region13: #{lstm_model_forward.4} parent=0 // pred_fallthru
    _
  %v15 = vld [vmem:[%s0] sm:$0xf]
  %v16 = vld [vmem:[%s0 + $0x4] sm:$0xf]
  %v17 = vld [vmem:[%s0 + $0x8] sm:$0xf]
  %v18 = vld [vmem:[%s0 + $0xc] sm:$0xf]
  %v19 = vld [vmem:[%s0 + $0x10] sm:$0xf]
  %v20 = vld [vmem:[%s0 + $0x14] sm:$0xf]
  %v21 = vld [vmem:[%s0 + $0x18] sm:$0xf]
  %v22 = vld [vmem:[%s0 + $0x1c] sm:$0xf]
  %v23 = vld [vmem:[%s0 + $0x20] sm:$0xf]
  %v24 = vld [vmem:[%s0 + $0x24] sm:$0xf]
  %v25 = vld [vmem:[%s0 + $0x28] sm:$0xf]
  %v26 = vld [vmem:[%s0 + $0x2c] sm:$0xf]
  %v27 = vld [vmem:[%s0 + $0x30] sm:$0xf]
  %v28 = vld [vmem:[%s0 + $0x34] sm:$0xf]
  %v29 = vld [vmem:[%s0 + $0x38] sm:$0xf]
  %v30 = vld [vmem:[%s0 + $0x3c] sm:$0xf]
  %v31 = vld [vmem:[%s1] sm:$0x3]
  %v32 = vld [vmem:[%s2] sm:$0x1]
  %v34 = vlaneseq
  %v35 = vshrl.u32 %v34, 7
  %v36 = vsub.s32 0, %v35
  %v37 = vrot.slane %v32, %v36
  %v55 = vunpack.c.l.b16 %v15
  %v56 = vunpack.c.l.b16 %v16
  %v57 = vunpack.c.l.b16 %v17
  %v58 = vunpack.c.l.b16 %v18
  %v59 = vunpack.c.l.b16 %v19
  %v60 = vunpack.c.l.b16 %v20
  %v61 = vunpack.c.l.b16 %v21
  %v62 = vunpack.c.l.b16 %v22
  %v63 = vunpack.c.l.b16 %v23
  %v64 = vunpack.c.l.b16 %v24
  %v65 = vunpack.c.l.b16 %v25
  %v66 = vunpack.c.l.b16 %v26
  %v67 = vunpack.c.l.b16 %v27
  %v68 = vunpack.c.l.b16 %v28
  %v69 = vunpack.c.l.b16 %v29
  %v70 = vunpack.c.l.b16 %v30
  %v71 = vpack.c.b16 %v56, %v55
  %v72 = vpack.c.b16 %v58, %v57
  %v73 = vpack.c.b16 %v60, %v59
  %v74 = vpack.c.b16 %v62, %v61
  %v75 = vpack.c.b16 %v64, %v63
  %v76 = vpack.c.b16 %v66, %v65
  %v77 = vpack.c.b16 %v68, %v67
  %v78 = vpack.c.b16 %v70, %v69
  %vm79 = vcmask 31744
  %v81 = vsel %vm79, %v71, 0
  %v84 = vsel %vm79, %v72, 0
  %v87 = vsel %vm79, %v73, 0
  %v90 = vsel %vm79, %v74, 0
  %v93 = vsel %vm79, %v75, 0
  %v96 = vsel %vm79, %v76, 0
  %v99 = vsel %vm79, %v77, 0
  %v102 = vsel %vm79, %v78, 0
  %vm104 = vcmask 1041408
  %v106 = vsel %vm104, %v31, 0
  %108 = vmatprep.subr.bf16.mxu0 0
  %109 = vmatpush1.bf16.msra.mxu0 %v106
  %110 = vmatprep.subr.bf16.mxu0 0
  %111 = vmatpush1.bf16.msra.mxu0 0
  %112 = vmatprep.subr.bf16.mxu0 0
  %113 = vmatpush1.bf16.msra.mxu0 0
  %114 = vmatprep.subr.bf16.mxu0 0
  %115 = vmatpush1.bf16.msra.mxu0 0
  %116 = vmatprep.subr.bf16.mxu0 0
  %117 = vmatpush1.bf16.msra.mxu0 0
  %118 = vmatprep.subr.bf16.mxu0 0
  %119 = vmatpush1.bf16.msra.mxu0 0
  %120 = vmatprep.subr.bf16.mxu0 0
  %121 = vmatpush1.bf16.msra.mxu0 0
  %122 = vmatprep.subr.bf16.mxu0 0
  %123 = vmatpush1.bf16.msra.mxu0 0
  %124 = vmatprep.subr.bf16.mxu0 0
  %125 = vmatpush1.bf16.msra.mxu0 0
  %126 = vmatprep.subr.bf16.mxu0 0
  %127 = vmatpush1.bf16.msra.mxu0 0
  %128 = vmatprep.subr.bf16.mxu0 0
  %129 = vmatpush1.bf16.msra.mxu0 0
  %130 = vmatprep.subr.bf16.mxu0 0
  %131 = vmatpush1.bf16.msra.mxu0 0
  %132 = vmatprep.subr.bf16.mxu0 0
  %133 = vmatpush1.bf16.msra.mxu0 0
  %134 = vmatprep.subr.bf16.mxu0 0
  %135 = vmatpush1.bf16.msra.mxu0 0
  %136 = vmatprep.subr.bf16.mxu0 0
  %137 = vmatpush1.bf16.msra.mxu0 0
  %138 = vmatprep.subr.bf16.mxu0 0
  %139 = vmatpush1.bf16.msra.mxu0 0
  %140 = vmatprep.mubr.bf16.mxu0 0
  %141 = vmatmul.mubr.bf16.gmra.mrb[0].mxu0 %v81
  %v142 = vpop.f32.mrb[0].mxu0
  %v143 = vadd.f32 %v37, %v142
  %v144 = vpop.f32.mrb[0].mxu0
  %v145 = vpop.f32.mrb[0].mxu0
  %v146 = vadd.f32 %v37, %v145
  %v147 = vpop.f32.mrb[0].mxu0
  %148 = vmatprep.mubr.bf16.mxu0 0
  %149 = vmatmul.mubr.bf16.gmra.mrb[0].mxu0 %v84
  %v150 = vpop.f32.mrb[0].mxu0
  %v151 = vadd.f32 %v37, %v150
  %v152 = vpop.f32.mrb[0].mxu0
  %v153 = vpop.f32.mrb[0].mxu0
  %v154 = vadd.f32 %v37, %v153
  %v155 = vpop.f32.mrb[0].mxu0
  %156 = vmatprep.mubr.bf16.mxu0 0
  %157 = vmatmul.mubr.bf16.gmra.mrb[0].mxu0 %v87
  %v158 = vpop.f32.mrb[0].mxu0
  %v159 = vadd.f32 %v37, %v158
  %v160 = vpop.f32.mrb[0].mxu0
  %v161 = vpop.f32.mrb[0].mxu0
  %v162 = vadd.f32 %v37, %v161
  %v163 = vpop.f32.mrb[0].mxu0
  %164 = vmatprep.mubr.bf16.mxu0 0
  %165 = vmatmul.mubr.bf16.gmra.mrb[0].mxu0 %v90
  %v166 = vpop.f32.mrb[0].mxu0
  %v167 = vadd.f32 %v37, %v166
  %v168 = vpop.f32.mrb[0].mxu0
  %v169 = vpop.f32.mrb[0].mxu0
  %v170 = vadd.f32 %v37, %v169
  %v171 = vpop.f32.mrb[0].mxu0
  %172 = vmatprep.mubr.bf16.mxu0 0
  %173 = vmatmul.mubr.bf16.gmra.mrb[0].mxu0 %v93
  %v174 = vpop.f32.mrb[0].mxu0
  %v175 = vadd.f32 %v37, %v174
  %v176 = vpop.f32.mrb[0].mxu0
  %v177 = vpop.f32.mrb[0].mxu0
  %v178 = vadd.f32 %v37, %v177
  %v179 = vpop.f32.mrb[0].mxu0
  %180 = vmatprep.mubr.bf16.mxu0 0
  %181 = vmatmul.mubr.bf16.gmra.mrb[0].mxu0 %v96
  %v182 = vpop.f32.mrb[0].mxu0
  %v183 = vadd.f32 %v37, %v182
  %v184 = vpop.f32.mrb[0].mxu0
  %v185 = vpop.f32.mrb[0].mxu0
  %v186 = vadd.f32 %v37, %v185
  %v187 = vpop.f32.mrb[0].mxu0
  %188 = vmatprep.mubr.bf16.mxu0 0
  %189 = vmatmul.mubr.bf16.gmra.mrb[0].mxu0 %v99
  %v190 = vpop.f32.mrb[0].mxu0
  %v191 = vadd.f32 %v37, %v190
  %v192 = vpop.f32.mrb[0].mxu0
  %v193 = vpop.f32.mrb[0].mxu0
  %v194 = vadd.f32 %v37, %v193
  %v195 = vpop.f32.mrb[0].mxu0
  %196 = vmatprep.mubr.bf16.mxu0 0
  %197 = vmatmul.mubr.bf16.gmra.mrb[0].mxu0 %v102
  %v198 = vpop.f32.mrb[0].mxu0
  %v199 = vadd.f32 %v37, %v198
  %v200 = vpop.f32.mrb[0].mxu0
  %v201 = vpop.f32.mrb[0].mxu0
  %v202 = vadd.f32 %v37, %v201
  %v203 = vpop.f32.mrb[0].mxu0
  %204 = vdwg.mxu0
  %205 = vst [vmem:[%s3] sm:$0xff] %v143
  %206 = vst [vmem:[%s3 + $0x8] sm:$0xff] %v146
  %207 = vst [vmem:[%s3 + $0x10] sm:$0xff] %v151
  %208 = vst [vmem:[%s3 + $0x18] sm:$0xff] %v154
  %209 = vst [vmem:[%s3 + $0x20] sm:$0xff] %v159
  %210 = vst [vmem:[%s3 + $0x28] sm:$0xff] %v162
  %211 = vst [vmem:[%s3 + $0x30] sm:$0xff] %v167
  %212 = vst [vmem:[%s3 + $0x38] sm:$0xff] %v170
  %213 = vst [vmem:[%s3 + $0x40] sm:$0xff] %v175
  %214 = vst [vmem:[%s3 + $0x48] sm:$0xff] %v178
  %215 = vst [vmem:[%s3 + $0x50] sm:$0xff] %v183
  %216 = vst [vmem:[%s3 + $0x58] sm:$0xff] %v186
  %217 = vst [vmem:[%s3 + $0x60] sm:$0xff] %v191
  %218 = vst [vmem:[%s3 + $0x68] sm:$0xff] %v194
  %219 = vst [vmem:[%s3 + $0x70] sm:$0xff] %v199
  %220 = vst [vmem:[%s3 + $0x78] sm:$0xff] %v202
  // Predicated region
  $region14: #{lstm_model_forward.4} parent=0 // pred_check
    _
  $region15: #{lstm_model_forward.4} parent=0 // pred_check_branch
    %222 = sbr.rel (0) target = $region17
  $region16: #{lstm_model_forward.4} parent=0 // pred_region
    _
  $region17: #{lstm_model_forward.4} parent=0 // pred_fallthru
    _
  // Predicated region
  $region18: #{lstm_model_forward.4} parent=0 // pred_check
    _
  $region19: #{lstm_model_forward.4} parent=0 // pred_check_branch
    %224 = sbr.rel (0) target = $region21
  $region20: #{lstm_model_forward.4} parent=0 // pred_region
    _
  $region21: #{lstm_model_forward.4} parent=0 // pred_fallthru
    _

// kernel: lstm_model_forward.6
$region0: #{lstm_model_forward.6}
  #allocation0 [shape = 'u32[]', space=smem, size = 0x4, offset = 0x4, fixed_abs, tag = 'smem constant byte address 0x4 - core index']
  #allocation1 [shape = 'u32[144,128]{1,0:T(1,128)}', space=vmem, size = 0x12000, scoped, tag = 'internal scratch']
  %s0 = inlined_call_operand.vmem [shape: bf16[128,32], index: 0, kind: input, shape index: {}]
  %s1 = inlined_call_operand.vmem [shape: bf16[32,128], index: 1, kind: input, shape index: {}]
  %s2 = inlined_call_operand.vmem [shape: f32[1,128], index: 2, kind: input, shape index: {}]
  %s3 = inlined_call_operand.vmem [shape: f32[128,128], index: 3, kind: output, shape index: {}]
  %s4 = sld [smem:[#allocation0]]
  $region22: #{lstm_model_forward.6} parent=0
    _
  %s6 = ssub.s32 1, %s4
  %s7 = scalar_select 0, %s6, %s4
  // Predicated region
  $region2: #{lstm_model_forward.6} parent=0 // pred_check
    _
  $region3: #{lstm_model_forward.6} parent=0 // pred_check_branch
    %9 = sbr.rel (0) target = $region5
  $region4: #{lstm_model_forward.6} parent=0 // pred_region
    _
  $region5: #{lstm_model_forward.6} parent=0 // pred_fallthru
    _
  // Predicated region
  $region6: #{lstm_model_forward.6} parent=0 // pred_check
    _
  $region7: #{lstm_model_forward.6} parent=0 // pred_check_branch
    %11 = sbr.rel (0) target = $region9
  $region8: #{lstm_model_forward.6} parent=0 // pred_region
    _
  $region9: #{lstm_model_forward.6} parent=0 // pred_fallthru
    _
  // Predicated region
  $region10: #{lstm_model_forward.6} parent=0 // pred_check
    _
  $region11: #{lstm_model_forward.6} parent=0 // pred_check_branch
    %13 = sbr.rel (0) target = $region13
  $region12: #{lstm_model_forward.6} parent=0 // pred_region
    _
  $region13: #{lstm_model_forward.6} parent=0 // pred_fallthru
    _
  %v15 = vld [vmem:[%s0] sm:$0xf]
  %v16 = vld [vmem:[%s0 + $0x4] sm:$0xf]
  %v17 = vld [vmem:[%s0 + $0x8] sm:$0xf]
  %v18 = vld [vmem:[%s0 + $0xc] sm:$0xf]
  %v19 = vld [vmem:[%s0 + $0x10] sm:$0xf]
  %v20 = vld [vmem:[%s0 + $0x14] sm:$0xf]
  %v21 = vld [vmem:[%s0 + $0x18] sm:$0xf]
  %v22 = vld [vmem:[%s0 + $0x1c] sm:$0xf]
  %v23 = vld [vmem:[%s0 + $0x20] sm:$0xf]
  %v24 = vld [vmem:[%s0 + $0x24] sm:$0xf]
  %v25 = vld [vmem:[%s0 + $0x28] sm:$0xf]
  %v26 = vld [vmem:[%s0 + $0x2c] sm:$0xf]
  %v27 = vld [vmem:[%s0 + $0x30] sm:$0xf]
  %v28 = vld [vmem:[%s0 + $0x34] sm:$0xf]
  %v29 = vld [vmem:[%s0 + $0x38] sm:$0xf]
  %v30 = vld [vmem:[%s0 + $0x3c] sm:$0xf]
  %v31 = vld [vmem:[%s1] sm:$0xf]
  %v32 = vld [vmem:[%s1 + $0x4] sm:$0xf]
  %v33 = vld [vmem:[%s1 + $0x8] sm:$0xf]
  %v34 = vld [vmem:[%s1 + $0xc] sm:$0xf]
  %v35 = vld [vmem:[%s2] sm:$0x1]
  %v37 = vlaneseq
  %v38 = vshrl.u32 %v37, 7
  %v39 = vsub.s32 0, %v38
  %v40 = vrot.slane %v35, %v39
  %v58 = vunpack.c.l.b16 %v15
  %v59 = vunpack.c.l.b16 %v16
  %v60 = vunpack.c.l.b16 %v17
  %v61 = vunpack.c.l.b16 %v18
  %v62 = vunpack.c.l.b16 %v19
  %v63 = vunpack.c.l.b16 %v20
  %v64 = vunpack.c.l.b16 %v21
  %v65 = vunpack.c.l.b16 %v22
  %v66 = vunpack.c.l.b16 %v23
  %v67 = vunpack.c.l.b16 %v24
  %v68 = vunpack.c.l.b16 %v25
  %v69 = vunpack.c.l.b16 %v26
  %v70 = vunpack.c.l.b16 %v27
  %v71 = vunpack.c.l.b16 %v28
  %v72 = vunpack.c.l.b16 %v29
  %v73 = vunpack.c.l.b16 %v30
  %v74 = vpack.c.b16 %v59, %v58
  %v75 = vpack.c.b16 %v61, %v60
  %v76 = vpack.c.b16 %v63, %v62
  %v77 = vpack.c.b16 %v65, %v64
  %v78 = vpack.c.b16 %v67, %v66
  %v79 = vpack.c.b16 %v69, %v68
  %v80 = vpack.c.b16 %v71, %v70
  %v81 = vpack.c.b16 %v73, %v72
  %v86 = vunpack.c.l.b16 %v31
  %v87 = vunpack.c.l.b16 %v32
  %v88 = vunpack.c.l.b16 %v33
  %v89 = vunpack.c.l.b16 %v34
  %v90 = vpack.c.b16 %v87, %v86
  %v91 = vpack.c.b16 %v89, %v88
  %vm94 = vcmask 261120
  %v96 = vsel %vm94, %v74, 0
  %v99 = vsel %vm94, %v75, 0
  %v102 = vsel %vm94, %v76, 0
  %v105 = vsel %vm94, %v77, 0
  %v108 = vsel %vm94, %v78, 0
  %v111 = vsel %vm94, %v79, 0
  %v114 = vsel %vm94, %v80, 0
  %v117 = vsel %vm94, %v81, 0
  %119 = vmatprep.subr.bf16.mxu0 0
  %120 = vmatpush1.bf16.msra.mxu0 %v90
  %121 = vmatprep.subr.bf16.mxu0 0
  %122 = vmatpush1.bf16.msra.mxu0 %v91
  %123 = vmatprep.subr.bf16.mxu0 0
  %124 = vmatpush1.bf16.msra.mxu0 0
  %125 = vmatprep.subr.bf16.mxu0 0
  %126 = vmatpush1.bf16.msra.mxu0 0
  %127 = vmatprep.subr.bf16.mxu0 0
  %128 = vmatpush1.bf16.msra.mxu0 0
  %129 = vmatprep.subr.bf16.mxu0 0
  %130 = vmatpush1.bf16.msra.mxu0 0
  %131 = vmatprep.subr.bf16.mxu0 0
  %132 = vmatpush1.bf16.msra.mxu0 0
  %133 = vmatprep.subr.bf16.mxu0 0
  %134 = vmatpush1.bf16.msra.mxu0 0
  %135 = vmatprep.subr.bf16.mxu0 0
  %136 = vmatpush1.bf16.msra.mxu0 0
  %137 = vmatprep.subr.bf16.mxu0 0
  %138 = vmatpush1.bf16.msra.mxu0 0
  %139 = vmatprep.subr.bf16.mxu0 0
  %140 = vmatpush1.bf16.msra.mxu0 0
  %141 = vmatprep.subr.bf16.mxu0 0
  %142 = vmatpush1.bf16.msra.mxu0 0
  %143 = vmatprep.subr.bf16.mxu0 0
  %144 = vmatpush1.bf16.msra.mxu0 0
  %145 = vmatprep.subr.bf16.mxu0 0
  %146 = vmatpush1.bf16.msra.mxu0 0
  %147 = vmatprep.subr.bf16.mxu0 0
  %148 = vmatpush1.bf16.msra.mxu0 0
  %149 = vmatprep.subr.bf16.mxu0 0
  %150 = vmatpush1.bf16.msra.mxu0 0
  %151 = vmatprep.mubr.bf16.mxu0 0
  %152 = vmatmul.mubr.bf16.gmra.mrb[0].mxu0 %v96
  %v153 = vpop.f32.mrb[0].mxu0
  %v154 = vadd.f32 %v40, %v153
  %v155 = vpop.f32.mrb[0].mxu0
  %v156 = vpop.f32.mrb[0].mxu0
  %v157 = vadd.f32 %v40, %v156
  %v158 = vpop.f32.mrb[0].mxu0
  %159 = vmatprep.mubr.bf16.mxu0 0
  %160 = vmatmul.mubr.bf16.gmra.mrb[0].mxu0 %v99
  %v161 = vpop.f32.mrb[0].mxu0
  %v162 = vadd.f32 %v40, %v161
  %v163 = vpop.f32.mrb[0].mxu0
  %v164 = vpop.f32.mrb[0].mxu0
  %v165 = vadd.f32 %v40, %v164
  %v166 = vpop.f32.mrb[0].mxu0
  %167 = vmatprep.mubr.bf16.mxu0 0
  %168 = vmatmul.mubr.bf16.gmra.mrb[0].mxu0 %v102
  %v169 = vpop.f32.mrb[0].mxu0
  %v170 = vadd.f32 %v40, %v169
  %v171 = vpop.f32.mrb[0].mxu0
  %v172 = vpop.f32.mrb[0].mxu0
  %v173 = vadd.f32 %v40, %v172
  %v174 = vpop.f32.mrb[0].mxu0
  %175 = vmatprep.mubr.bf16.mxu0 0
  %176 = vmatmul.mubr.bf16.gmra.mrb[0].mxu0 %v105
  %v177 = vpop.f32.mrb[0].mxu0
  %v178 = vadd.f32 %v40, %v177
  %v179 = vpop.f32.mrb[0].mxu0
  %v180 = vpop.f32.mrb[0].mxu0
  %v181 = vadd.f32 %v40, %v180
  %v182 = vpop.f32.mrb[0].mxu0
  %183 = vmatprep.mubr.bf16.mxu0 0
  %184 = vmatmul.mubr.bf16.gmra.mrb[0].mxu0 %v108
  %v185 = vpop.f32.mrb[0].mxu0
  %v186 = vadd.f32 %v40, %v185
  %v187 = vpop.f32.mrb[0].mxu0
  %v188 = vpop.f32.mrb[0].mxu0
  %v189 = vadd.f32 %v40, %v188
  %v190 = vpop.f32.mrb[0].mxu0
  %191 = vmatprep.mubr.bf16.mxu0 0
  %192 = vmatmul.mubr.bf16.gmra.mrb[0].mxu0 %v111
  %v193 = vpop.f32.mrb[0].mxu0
  %v194 = vadd.f32 %v40, %v193
  %v195 = vpop.f32.mrb[0].mxu0
  %v196 = vpop.f32.mrb[0].mxu0
  %v197 = vadd.f32 %v40, %v196
  %v198 = vpop.f32.mrb[0].mxu0
  %199 = vmatprep.mubr.bf16.mxu0 0
  %200 = vmatmul.mubr.bf16.gmra.mrb[0].mxu0 %v114
  %v201 = vpop.f32.mrb[0].mxu0
  %v202 = vadd.f32 %v40, %v201
  %v203 = vpop.f32.mrb[0].mxu0
  %v204 = vpop.f32.mrb[0].mxu0
  %v205 = vadd.f32 %v40, %v204
  %v206 = vpop.f32.mrb[0].mxu0
  %207 = vmatprep.mubr.bf16.mxu0 0
  %208 = vmatmul.mubr.bf16.gmra.mrb[0].mxu0 %v117
  %v209 = vpop.f32.mrb[0].mxu0
  %v210 = vadd.f32 %v40, %v209
  %v211 = vpop.f32.mrb[0].mxu0
  %v212 = vpop.f32.mrb[0].mxu0
  %v213 = vadd.f32 %v40, %v212
  %v214 = vpop.f32.mrb[0].mxu0
  %215 = vdwg.mxu0
  %216 = vst [vmem:[%s3] sm:$0xff] %v154
  %217 = vst [vmem:[%s3 + $0x8] sm:$0xff] %v157
  %218 = vst [vmem:[%s3 + $0x10] sm:$0xff] %v162
  %219 = vst [vmem:[%s3 + $0x18] sm:$0xff] %v165
  %220 = vst [vmem:[%s3 + $0x20] sm:$0xff] %v170
  %221 = vst [vmem:[%s3 + $0x28] sm:$0xff] %v173
  %222 = vst [vmem:[%s3 + $0x30] sm:$0xff] %v178
  %223 = vst [vmem:[%s3 + $0x38] sm:$0xff] %v181
  %224 = vst [vmem:[%s3 + $0x40] sm:$0xff] %v186
  %225 = vst [vmem:[%s3 + $0x48] sm:$0xff] %v189
  %226 = vst [vmem:[%s3 + $0x50] sm:$0xff] %v194
  %227 = vst [vmem:[%s3 + $0x58] sm:$0xff] %v197
  %228 = vst [vmem:[%s3 + $0x60] sm:$0xff] %v202
  %229 = vst [vmem:[%s3 + $0x68] sm:$0xff] %v205
  %230 = vst [vmem:[%s3 + $0x70] sm:$0xff] %v210
  %231 = vst [vmem:[%s3 + $0x78] sm:$0xff] %v213
  // Predicated region
  $region14: #{lstm_model_forward.6} parent=0 // pred_check
    _
  $region15: #{lstm_model_forward.6} parent=0 // pred_check_branch
    %233 = sbr.rel (0) target = $region17
  $region16: #{lstm_model_forward.6} parent=0 // pred_region
    _
  $region17: #{lstm_model_forward.6} parent=0 // pred_fallthru
    _
  // Predicated region
  $region18: #{lstm_model_forward.6} parent=0 // pred_check
    _
  $region19: #{lstm_model_forward.6} parent=0 // pred_check_branch
    %235 = sbr.rel (0) target = $region21
  $region20: #{lstm_model_forward.6} parent=0 // pred_region
    _
  $region21: #{lstm_model_forward.6} parent=0 // pred_fallthru
    _

// kernel: lstm_model_forward.5
$region0: #{lstm_model_forward.5}
  #allocation0 [shape = 'u32[]', space=smem, size = 0x4, offset = 0x4, fixed_abs, tag = 'smem constant byte address 0x4 - core index']
  #allocation1 [shape = 'u32[144,128]{1,0:T(1,128)}', space=vmem, size = 0x12000, scoped, tag = 'internal scratch']
  #allocation2 [shape = 'f32[8,32]{1,0:T(8,128)}', space=vmem, size = 0x1000, scoped, tag = 'scratch operand']
  #allocation3 [shape = 'f32[8,32]{1,0:T(8,128)}', space=vmem, size = 0x1000, scoped, tag = 'scratch operand']
  %s0 = inlined_call_operand.vmem [shape: f32[8,16,128], index: 0, kind: input, shape index: {}]
  %s1 = inlined_call_operand.vmem [shape: bf16[32,128], index: 1, kind: input, shape index: {}]
  %s2 = inlined_call_operand.vmem [shape: bf16[8,16,32], index: 2, kind: output, shape index: {0}]
  %s3 = inlined_call_operand.vmem [shape: f32[16,32], index: 3, kind: output, shape index: {1}]
  %s4 = inlined_call_operand.vmem [shape: f32[16,32], index: 4, kind: output, shape index: {2}]
  %5 = xla_tuple %s2, %s3, %s4
  %s6 = sld [smem:[#allocation0]]
  $region140: #{lstm_model_forward.5} parent=0
    _
  %s8 = ssub.s32 1, %s6
  %s9 = scalar_select 0, %s8, %s6
  $region1: #{lstm_model_forward.5} parent=0
    #allocation4 [shape = 'u8[65536]{0}', space=vmem, size = 0x10000, scoped, tag = 'input window, operand 0']
    #allocation5 [shape = 'u8[32768]{0}', space=vmem, size = 0x8000, scoped, tag = 'output window, operand 0']
    loop: start=0, step=1, limit=4
    $region2: #{lstm_model_forward.5} parent=1 // loop_pre_header
      _
    $region3: #{lstm_model_forward.5} parent=1 // loop_header
      %s11 = sphi 0, %s15
      %p12 = scmp.ge.s32.totalorder %s11, 4
      %s18 = sphi 0, %s30
      %s19 = sphi 0, %s26
      %s20 = sphi 0, %s18
      %s21 = sphi 0, %s19
      %s22 = sphi 0, %s20
      %s23 = sphi 0, %s21
      %s35 = sphi 0, %s37
      %s38 = sphi 0, %s35
      %s39 = sphi 0, %s38
      %s55 = sphi 0, %s39
      %s59 = sphi 0, %s59
      %s61 = sphi 0, %s59
      %s62 = sphi 0, %s61
      %s76 = sphi 0, %s62
      %s84 = sphi 0, %s86
      %s87 = sphi 0, %s84
      %s88 = sphi 0, %s87
      %s104 = sphi 0, %s88
      %s110 = sphi 0, %s112
      %s113 = sphi 0, %s110
      %s114 = sphi 0, %s113
      %s130 = sphi 0, %s114
      %s136 = sphi 0, %s138
      %s139 = sphi 0, %s136
      %s140 = sphi 0, %s139
      %s156 = sphi 0, %s140
    $region4: #{lstm_model_forward.5} parent=1 // loop_header_branch
      %14 = sbr.rel (%p12) target = $region8
    $region5: #{lstm_model_forward.5} parent=1 // loop_body
      %s16 = ssub.s32 %s11, 1
      %s17 = ssub.s32 %s11, 2
      %s24 = sadd.s32 1, %s19
      %p25 = scmp.ge.s32.totalorder %s24, 1
      %s26 = scalar_select %p25, 0, %s24
      %s27 = sadd.s32 1, %s18
      %s28 = scalar_select %p25, %s27, %s18
      %p29 = scmp.ge.s32.totalorder %s28, 2
      %s30 = scalar_select %p29, 0, %s28
      %s31 = ssub.s32 %s19, %s26
      %s32 = ssub.s32 %s18, %s30
      %s33 = sor.u32 %s31, %s32
      %p34 = scmp.eq.s32.totalorder %s33, 0
      %s36 = sadd.s32 %s35, 1
      %s37 = scalar_select %p34, %s35, %s36
      %p40 = pneg %p34
      %p41 = scmp.eq.s32.totalorder %s11, 1
      %p42 = por %p40, %p41
      %p43 = scmp.ne.s32.totalorder %s35, %s38
      %p44 = scmp.eq.s32.totalorder %s11, 0
      %p45 = por %p43, %p44
      %p46 = scmp.ne.s32.totalorder %s35, %s38
      %p47 = scmp.eq.s32.totalorder %s16, 1
      %p48 = por %p46, %p47
      %p49 = scmp.ne.s32.totalorder %s38, %s39
      %p50 = scmp.eq.s32.totalorder %s16, 0
      %p51 = por %p49, %p50
      %p52 = scmp.ne.s32.totalorder %s38, %s39
      %p53 = scmp.eq.s32.totalorder %s17, 1
      %p54 = por %p52, %p53
      %p56 = scmp.ne.s32.totalorder %s39, %s55
      %p57 = scmp.eq.s32.totalorder %s17, 0
      %p58 = por %p56, %p57
      %s60 = sadd.s32 %s59, 1
      %p63 = scmp.eq.s32.totalorder %s11, 1
      %p64 = scmp.ne.s32.totalorder %s59, %s61
      %p65 = scmp.eq.s32.totalorder %s11, 0
      %p66 = por %p64, %p65
      %p67 = scmp.ne.s32.totalorder %s59, %s61
      %p68 = scmp.eq.s32.totalorder %s16, 1
      %p69 = por %p67, %p68
      %p70 = scmp.ne.s32.totalorder %s61, %s62
      %p71 = scmp.eq.s32.totalorder %s16, 0
      %p72 = por %p70, %p71
      %p73 = scmp.ne.s32.totalorder %s61, %s62
      %p74 = scmp.eq.s32.totalorder %s17, 1
      %p75 = por %p73, %p74
      %p77 = scmp.ne.s32.totalorder %s62, %s76
      %p78 = scmp.eq.s32.totalorder %s17, 0
      %p79 = por %p77, %p78
      %s80 = ssub.s32 %s19, %s26
      %s81 = ssub.s32 %s18, %s30
      %s82 = sor.u32 %s80, %s81
      %p83 = scmp.eq.s32.totalorder %s82, 0
      %s85 = sadd.s32 %s84, 1
      %s86 = scalar_select %p83, %s84, %s85
      %p89 = pneg %p83
      %p90 = scmp.eq.s32.totalorder %s11, 1
      %p91 = por %p89, %p90
      %p92 = scmp.ne.s32.totalorder %s84, %s87
      %p93 = scmp.eq.s32.totalorder %s11, 0
      %p94 = por %p92, %p93
      %p95 = scmp.ne.s32.totalorder %s84, %s87
      %p96 = scmp.eq.s32.totalorder %s16, 1
      %p97 = por %p95, %p96
      %p98 = scmp.ne.s32.totalorder %s87, %s88
      %p99 = scmp.eq.s32.totalorder %s16, 0
      %p100 = por %p98, %p99
      %p101 = scmp.ne.s32.totalorder %s87, %s88
      %p102 = scmp.eq.s32.totalorder %s17, 1
      %p103 = por %p101, %p102
      %p105 = scmp.ne.s32.totalorder %s88, %s104
      %p106 = scmp.eq.s32.totalorder %s17, 0
      %p107 = por %p105, %p106
      %s108 = ssub.s32 %s18, %s30
      %p109 = scmp.eq.s32.totalorder %s108, 0
      %s111 = sadd.s32 %s110, 1
      %s112 = scalar_select %p109, %s110, %s111
      %p115 = pneg %p109
      %p116 = scmp.eq.s32.totalorder %s11, 1
      %p117 = por %p115, %p116
      %p118 = scmp.ne.s32.totalorder %s110, %s113
      %p119 = scmp.eq.s32.totalorder %s11, 0
      %p120 = por %p118, %p119
      %p121 = scmp.ne.s32.totalorder %s110, %s113
      %p122 = scmp.eq.s32.totalorder %s16, 1
      %p123 = por %p121, %p122
      %p124 = scmp.ne.s32.totalorder %s113, %s114
      %p125 = scmp.eq.s32.totalorder %s16, 0
      %p126 = por %p124, %p125
      %p127 = scmp.ne.s32.totalorder %s113, %s114
      %p128 = scmp.eq.s32.totalorder %s17, 1
      %p129 = por %p127, %p128
      %p131 = scmp.ne.s32.totalorder %s114, %s130
      %p132 = scmp.eq.s32.totalorder %s17, 0
      %p133 = por %p131, %p132
      %s134 = ssub.s32 %s18, %s30
      %p135 = scmp.eq.s32.totalorder %s134, 0
      %s137 = sadd.s32 %s136, 1
      %s138 = scalar_select %p135, %s136, %s137
      %p141 = pneg %p135
      %p142 = scmp.eq.s32.totalorder %s11, 1
      %p143 = por %p141, %p142
      %p144 = scmp.ne.s32.totalorder %s136, %s139
      %p145 = scmp.eq.s32.totalorder %s11, 0
      %p146 = por %p144, %p145
      %p147 = scmp.ne.s32.totalorder %s136, %s139
      %p148 = scmp.eq.s32.totalorder %s16, 1
      %p149 = por %p147, %p148
      %p150 = scmp.ne.s32.totalorder %s139, %s140
      %p151 = scmp.eq.s32.totalorder %s16, 0
      %p152 = por %p150, %p151
      %p153 = scmp.ne.s32.totalorder %s139, %s140
      %p154 = scmp.eq.s32.totalorder %s17, 1
      %p155 = por %p153, %p154
      %p157 = scmp.ne.s32.totalorder %s140, %s156
      %p158 = scmp.eq.s32.totalorder %s17, 0
      %p159 = por %p157, %p158
      %p160 = scmp.le.s32.totalorder 1, %s11
      %p161 = scmp.lt.s32.totalorder %s11, 3
      %p162 = pnand %p160, %p161
      %p163 = pneg %p162
      // Predicated region
      $region9: #{lstm_model_forward.5} parent=5 // pred_check
        _
      $region10: #{lstm_model_forward.5} parent=5 // pred_check_branch
        %165 = sbr.rel (%p162) target = $region12
      $region11: #{lstm_model_forward.5} parent=5 // pred_region
        %s166 = ssub.s32 %s11, 1
        // Predicated region
        $region13: #{lstm_model_forward.5} parent=11 // pred_check
          %p167 = pneg %p72
        $region14: #{lstm_model_forward.5} parent=11 // pred_check_branch
          %169 = sbr.rel (%p167) target = $region16
        $region15: #{lstm_model_forward.5} parent=11 // pred_region
          _
        $region16: #{lstm_model_forward.5} parent=11 // pred_fallthru
          _
      $region12: #{lstm_model_forward.5} parent=5 // pred_fallthru
        _
      %p170 = scmp.lt.s32.totalorder %s11, 2
      // Predicated region
      $region17: #{lstm_model_forward.5} parent=5 // pred_check
        %p171 = pneg %p170
      $region18: #{lstm_model_forward.5} parent=5 // pred_check_branch
        %173 = sbr.rel (%p171) target = $region20
      $region19: #{lstm_model_forward.5} parent=5 // pred_region
        // Predicated region
        $region21: #{lstm_model_forward.5} parent=19 // pred_check
          %p174 = pneg %p45
        $region22: #{lstm_model_forward.5} parent=19 // pred_check_branch
          %176 = sbr.rel (%p174) target = $region24
        $region23: #{lstm_model_forward.5} parent=19 // pred_region
          %s177 = sand.u32 %s35, 1
          %s178 = sand.u32 %s35, 1
          %s179 = smul.addr %s178, 64
          %s180 = scalar_lea.vmem [#allocation4], %s179
          %s181 = smul.u32 8, %s19
          %s182 = smul.addr %s181, 2
          %s183 = sadd.s32 %s18, %s182
          %s184 = smul.addr %s183, 8
          %s185 = scalar_lea.vmem %s0, %s184
          // Predicated region
          $region25: #{lstm_model_forward.5} parent=23 // pred_check
            _
          $region26: #{lstm_model_forward.5} parent=23 // pred_check_branch
            %187 = sbr.rel (0) target = $region28
          $region27: #{lstm_model_forward.5} parent=23 // pred_region
            // Predicated region
            $region29: #{lstm_model_forward.5} parent=27 // pred_check
              _
            $region30: #{lstm_model_forward.5} parent=27 // pred_check_branch
              %189 = sbr.rel (0) target = $region32
            $region31: #{lstm_model_forward.5} parent=27 // pred_region
              // Predicated region
              $region44: #{lstm_model_forward.5} parent=31 // pred_check
                _
              $region45: #{lstm_model_forward.5} parent=31 // pred_check_branch
                %218 = sbr.rel (0) target = $region47
              $region46: #{lstm_model_forward.5} parent=31 // pred_region
                loop: start=0, step=1, limit=1
                $region48: #{lstm_model_forward.5} parent=46 // loop_pre_header
                  _
                $region49: #{lstm_model_forward.5} parent=46 // loop_header
                  %s220 = sphi 0, %s224
                  %p221 = scmp.ge.s32.totalorder %s220, 1
                  %s225 = sphi %s185, %s185
                  %s226 = sphi %s180, %s180
                $region50: #{lstm_model_forward.5} parent=46 // loop_header_branch
                  %223 = sbr.rel (%p221) target = $region54
                $region51: #{lstm_model_forward.5} parent=46 // loop_body
                  %v227 = vld [vmem:[%s225] sm:$0xff]
                  %228 = vst [vmem:[%s226] sm:$0xff] %v227
                  %v229 = vld [vmem:[%s225 + $0x10] sm:$0xff]
                  %230 = vst [vmem:[%s226 + $0x8] sm:$0xff] %v229
                  %v231 = vld [vmem:[%s225 + $0x20] sm:$0xff]
                  %232 = vst [vmem:[%s226 + $0x10] sm:$0xff] %v231
                  %v233 = vld [vmem:[%s225 + $0x30] sm:$0xff]
                  %234 = vst [vmem:[%s226 + $0x18] sm:$0xff] %v233
                  %v235 = vld [vmem:[%s225 + $0x40] sm:$0xff]
                  %236 = vst [vmem:[%s226 + $0x20] sm:$0xff] %v235
                  %v237 = vld [vmem:[%s225 + $0x50] sm:$0xff]
                  %238 = vst [vmem:[%s226 + $0x28] sm:$0xff] %v237
                  %v239 = vld [vmem:[%s225 + $0x60] sm:$0xff]
                  %240 = vst [vmem:[%s226 + $0x30] sm:$0xff] %v239
                  %v241 = vld [vmem:[%s225 + $0x70] sm:$0xff]
                  %242 = vst [vmem:[%s226 + $0x38] sm:$0xff] %v241
                $region52: #{lstm_model_forward.5} parent=46 // loop_footer
                  %s224 = sadd.s32 1, %s220
                $region53: #{lstm_model_forward.5} parent=46 // loop_footer_branch
                  %219 = sbr.rel target = $region49
                $region54: #{lstm_model_forward.5} parent=46 // loop_exit
                  _
              $region47: #{lstm_model_forward.5} parent=31 // pred_fallthru
                _
              // Predicated region
              $region55: #{lstm_model_forward.5} parent=31 // pred_check
                _
              $region56: #{lstm_model_forward.5} parent=31 // pred_check_branch
                %244 = sbr.rel target = $region58
              $region57: #{lstm_model_forward.5} parent=31 // pred_region
                _
              $region58: #{lstm_model_forward.5} parent=31 // pred_fallthru
                _
            $region32: #{lstm_model_forward.5} parent=27 // pred_fallthru
              _
            // Predicated region
            $region33: #{lstm_model_forward.5} parent=27 // pred_check
              _
            $region34: #{lstm_model_forward.5} parent=27 // pred_check_branch
              %191 = sbr.rel target = $region36
            $region35: #{lstm_model_forward.5} parent=27 // pred_region
              loop: start=0, step=1, limit=1
              $region37: #{lstm_model_forward.5} parent=35 // loop_pre_header
                _
              $region38: #{lstm_model_forward.5} parent=35 // loop_header
                %s194 = sphi 0, %s198
                %p195 = scmp.ge.s32.totalorder %s194, 1
                %s199 = sphi %s185, %s185
                %s200 = sphi %s180, %s180
              $region39: #{lstm_model_forward.5} parent=35 // loop_header_branch
                %197 = sbr.rel (%p195) target = $region43
              $region40: #{lstm_model_forward.5} parent=35 // loop_body
                %v201 = vld [vmem:[%s199] sm:$0xff]
                %202 = vst [vmem:[%s200] sm:$0xff] %v201
                %v203 = vld [vmem:[%s199 + $0x10] sm:$0xff]
                %204 = vst [vmem:[%s200 + $0x8] sm:$0xff] %v203
                %v205 = vld [vmem:[%s199 + $0x20] sm:$0xff]
                %206 = vst [vmem:[%s200 + $0x10] sm:$0xff] %v205
                %v207 = vld [vmem:[%s199 + $0x30] sm:$0xff]
                %208 = vst [vmem:[%s200 + $0x18] sm:$0xff] %v207
                %v209 = vld [vmem:[%s199 + $0x40] sm:$0xff]
                %210 = vst [vmem:[%s200 + $0x20] sm:$0xff] %v209
                %v211 = vld [vmem:[%s199 + $0x50] sm:$0xff]
                %212 = vst [vmem:[%s200 + $0x28] sm:$0xff] %v211
                %v213 = vld [vmem:[%s199 + $0x60] sm:$0xff]
                %214 = vst [vmem:[%s200 + $0x30] sm:$0xff] %v213
                %v215 = vld [vmem:[%s199 + $0x70] sm:$0xff]
                %216 = vst [vmem:[%s200 + $0x38] sm:$0xff] %v215
              $region41: #{lstm_model_forward.5} parent=35 // loop_footer
                %s198 = sadd.s32 1, %s194
              $region42: #{lstm_model_forward.5} parent=35 // loop_footer_branch
                %193 = sbr.rel target = $region38
              $region43: #{lstm_model_forward.5} parent=35 // loop_exit
                _
            $region36: #{lstm_model_forward.5} parent=27 // pred_fallthru
              _
          $region28: #{lstm_model_forward.5} parent=23 // pred_fallthru
            _
          %245 = vnop
        $region24: #{lstm_model_forward.5} parent=19 // pred_fallthru
          _
      $region20: #{lstm_model_forward.5} parent=5 // pred_fallthru
        _
      %p246 = scmp.le.s32.totalorder 1, %s11
      %p247 = scmp.lt.s32.totalorder %s11, 3
      %p248 = pnand %p246, %p247
      %p249 = pneg %p248
      // Predicated region
      $region59: #{lstm_model_forward.5} parent=5 // pred_check
        _
      $region60: #{lstm_model_forward.5} parent=5 // pred_check_branch
        %251 = sbr.rel (%p248) target = $region62
      $region61: #{lstm_model_forward.5} parent=5 // pred_region
        %s252 = ssub.s32 %s11, 1
        %s253 = sand.u32 %s38, 1
        %s254 = sand.u32 %s38, 1
        %s255 = smul.addr %s254, 64
        %s256 = scalar_lea.vmem [#allocation4], %s255
        // Predicated region
        $region63: #{lstm_model_forward.5} parent=61 // pred_check
          %p257 = pneg %p51
        $region64: #{lstm_model_forward.5} parent=61 // pred_check_branch
          %259 = sbr.rel (%p257) target = $region66
        $region65: #{lstm_model_forward.5} parent=61 // pred_region
          _
        $region66: #{lstm_model_forward.5} parent=61 // pred_fallthru
          _
        %s260 = sand.u32 %s38, 1
        %s261 = sand.u32 %s38, 1
        %s262 = smul.addr %s261, 64
        %s263 = scalar_lea.vmem [#allocation4], %s262
        %p264 = pneg %p51
        %p265 = pneg %p48
        %p266 = pneg %p72
        %p267 = pneg %p69
        %p268 = pneg %p100
        %p269 = pneg %p97
        %s270 = sand.u32 %s87, 1
        %s271 = sand.u32 %s87, 1
        %s272 = smul.addr %s271, 32
        %s273 = scalar_lea.vmem [#allocation5], %s272
        %p274 = pneg %p126
        %p275 = pneg %p123
        %p276 = scmp.lt.s32.totalorder %s20, 1
        %s277 = scalar_select %p276, %s20, 1
        %s278 = smul.addr %s277, 8
        %s279 = scalar_lea.vmem %s3, %s278
        %p280 = pneg %p152
        %p281 = pneg %p149
        %p282 = scmp.lt.s32.totalorder %s20, 1
        %s283 = scalar_select %p282, %s20, 1
        %s284 = smul.addr %s283, 8
        %s285 = scalar_lea.vmem %s4, %s284
        %s286 = smul.u32 8, %s21
        %s287 = smul.u32 8, %s21
        %p288 = scmp.lt.s32.totalorder %s20, 1
        %s289 = scalar_select %p288, %s20, 1
        %s290 = smul.addr %s289, 8
        %s291 = scalar_lea.vmem %s3, %s290
        %p292 = scmp.lt.s32.totalorder %s20, 1
        %s293 = scalar_select %p292, %s20, 1
        %s294 = smul.addr %s293, 8
        %s295 = scalar_lea.vmem %s4, %s294
        %p297 = scmp.eq.s32.totalorder %s21, 0
        // Predicated region
        $region67: #{lstm_model_forward.5} parent=61 // pred_check
          %p298 = pneg %p297
        $region68: #{lstm_model_forward.5} parent=61 // pred_check_branch
          %300 = sbr.rel (%p298) target = $region70
        $region69: #{lstm_model_forward.5} parent=61 // pred_region
          %vm301 = vcmask 261120
          %302 = vst.msk [vmem:[#allocation2] sm:$0xff] %vm301, 0.0
          %303 = vst.msk [vmem:[#allocation3] sm:$0xff] %vm301, 0.0
        $region70: #{lstm_model_forward.5} parent=61 // pred_fallthru
          _
        %v304 = vld [vmem:[%s1] sm:$0xf]
        %v305 = vld [vmem:[%s1 + $0x4] sm:$0xf]
        %v306 = vld [vmem:[%s1 + $0x8] sm:$0xf]
        %v307 = vld [vmem:[%s1 + $0xc] sm:$0xf]
        %v308 = vld [vmem:[#allocation2] sm:$0xff]
        %v309 = vld [vmem:[#allocation3] sm:$0xff]
        %v310 = vld [vmem:[%s256] sm:$0xff]
        %v311 = vpack.c.bf16 %v308, %v308
        %v316 = vunpack.c.l.b16 %v304
        %v317 = vunpack.c.l.b16 %v305
        %v318 = vunpack.c.l.b16 %v306
        %v319 = vunpack.c.l.b16 %v307
        %v320 = vpack.c.b16 %v317, %v316
        %v321 = vpack.c.b16 %v319, %v318
        %vm324 = vcmask 261120
        %v326 = vsel %vm324, %v311, 0
        %328 = vmatprep.subr.bf16.mxu0 0
        %329 = vmatpush1.bf16.msra.mxu0 %v320
        %330 = vmatprep.subr.bf16.mxu0 0
        %331 = vmatpush1.bf16.msra.mxu0 %v321
        %332 = vmatprep.subr.bf16.mxu0 0
        %333 = vmatpush1.bf16.msra.mxu0 0
        %334 = vmatprep.subr.bf16.mxu0 0
        %335 = vmatpush1.bf16.msra.mxu0 0
        %336 = vmatprep.subr.bf16.mxu0 0
        %337 = vmatpush1.bf16.msra.mxu0 0
        %338 = vmatprep.subr.bf16.mxu0 0
        %339 = vmatpush1.bf16.msra.mxu0 0
        %340 = vmatprep.subr.bf16.mxu0 0
        %341 = vmatpush1.bf16.msra.mxu0 0
        %342 = vmatprep.subr.bf16.mxu0 0
        %343 = vmatpush1.bf16.msra.mxu0 0
        %344 = vmatprep.subr.bf16.mxu0 0
        %345 = vmatpush1.bf16.msra.mxu0 0
        %346 = vmatprep.subr.bf16.mxu0 0
        %347 = vmatpush1.bf16.msra.mxu0 0
        %348 = vmatprep.subr.bf16.mxu0 0
        %349 = vmatpush1.bf16.msra.mxu0 0
        %350 = vmatprep.subr.bf16.mxu0 0
        %351 = vmatpush1.bf16.msra.mxu0 0
        %352 = vmatprep.subr.bf16.mxu0 0
        %353 = vmatpush1.bf16.msra.mxu0 0
        %354 = vmatprep.subr.bf16.mxu0 0
        %355 = vmatpush1.bf16.msra.mxu0 0
        %356 = vmatprep.subr.bf16.mxu0 0
        %357 = vmatpush1.bf16.msra.mxu0 0
        %358 = vmatprep.subr.bf16.mxu0 0
        %359 = vmatpush1.bf16.msra.mxu0 0
        %360 = vmatprep.mubr.bf16.mxu0 0
        %361 = vmatmul.mubr.bf16.gmra.mrb[0].mxu0 %v326
        %v362 = vpop.f32.mrb[0].mxu0
        %v363 = vadd.f32 0.0, %v362
        %v364 = vpop.f32.mrb[0].mxu0
        %v365 = vpop.f32.mrb[0].mxu0
        %v366 = vpop.f32.mrb[0].mxu0
        %367 = vdwg.mxu0
        %v368 = vadd.f32 %v310, %v363
        %v369 = vxor.u32 %v368, 2147483648
        %v370 = vmul.f32 %v369, 1.442695
        %v371 = vpow.pop %v370
        %v372 = vadd.f32 %v371, 1.0
        %v373 = vrcp.pop %v372
        %v374 = vmul.f32 1.0, %v373
        %v375 = vtanh.pop %v368
        %377 = vrot.lane.b32.xlu0 %v309, 32
        %v378 = vpop.permute.xlu0 %377
        %v380 = vmul.f32 %v374, %v378
        %382 = vrot.lane.b32.xlu0 %v375, 32
        %v383 = vpop.permute.xlu0 %382
        %v385 = vmul.f32 %v374, %v383
        %387 = vrot.lane.b32.xlu0 %v385, 32
        %v388 = vpop.permute.xlu0 %387
        %v390 = vadd.f32 %v380, %v388
        %v391 = vtanh.pop %v390
        %393 = vrot.lane.b32.xlu0 %v391, 32
        %v394 = vpop.permute.xlu0 %393
        %v396 = vmul.f32 %v374, %v394
        %v397 = vpack.c.bf16 %v396, %v396
        %v399 = vunpack.c.l.b16 %v397
        %v400 = vpack.c.b16 %v399, %v399
        %401 = vrot.lane.b32.xlu0 %v400, 64
        %v402 = vpop.permute.xlu0 %401
        %vm404 = vcmask 257024
        %405 = vst.msk [vmem:[%s273] sm:$0xf] %vm404, %v402
        %s406 = scalar_lea.vmem %s256, 8 [#allocation4]
        %v407 = vld [vmem:[%s406] sm:$0xff]
        %408 = vrot.lane.b32.xlu0 %v397, 64
        %v409 = vpop.permute.xlu0 %408
        %v411 = vsel %vm324, %v409, 0
        %413 = vmatprep.subr.bf16.mxu0 0
        %414 = vmatpush1.bf16.msra.mxu0 %v320
        %415 = vmatprep.subr.bf16.mxu0 0
        %416 = vmatpush1.bf16.msra.mxu0 %v321
        %417 = vmatprep.subr.bf16.mxu0 0
        %418 = vmatpush1.bf16.msra.mxu0 0
        %419 = vmatprep.subr.bf16.mxu0 0
        %420 = vmatpush1.bf16.msra.mxu0 0
        %421 = vmatprep.subr.bf16.mxu0 0
        %422 = vmatpush1.bf16.msra.mxu0 0
        %423 = vmatprep.subr.bf16.mxu0 0
        %424 = vmatpush1.bf16.msra.mxu0 0
        %425 = vmatprep.subr.bf16.mxu0 0
        %426 = vmatpush1.bf16.msra.mxu0 0
        %427 = vmatprep.subr.bf16.mxu0 0
        %428 = vmatpush1.bf16.msra.mxu0 0
        %429 = vmatprep.subr.bf16.mxu0 0
        %430 = vmatpush1.bf16.msra.mxu0 0
        %431 = vmatprep.subr.bf16.mxu0 0
        %432 = vmatpush1.bf16.msra.mxu0 0
        %433 = vmatprep.subr.bf16.mxu0 0
        %434 = vmatpush1.bf16.msra.mxu0 0
        %435 = vmatprep.subr.bf16.mxu0 0
        %436 = vmatpush1.bf16.msra.mxu0 0
        %437 = vmatprep.subr.bf16.mxu0 0
        %438 = vmatpush1.bf16.msra.mxu0 0
        %439 = vmatprep.subr.bf16.mxu0 0
        %440 = vmatpush1.bf16.msra.mxu0 0
        %441 = vmatprep.subr.bf16.mxu0 0
        %442 = vmatpush1.bf16.msra.mxu0 0
        %443 = vmatprep.subr.bf16.mxu0 0
        %444 = vmatpush1.bf16.msra.mxu0 0
        %445 = vmatprep.mubr.bf16.mxu0 0
        %446 = vmatmul.mubr.bf16.gmra.mrb[0].mxu0 %v411
        %v447 = vpop.f32.mrb[0].mxu0
        %v448 = vadd.f32 0.0, %v447
        %v449 = vpop.f32.mrb[0].mxu0
        %v450 = vpop.f32.mrb[0].mxu0
        %v451 = vpop.f32.mrb[0].mxu0
        %452 = vdwg.mxu0
        %v453 = vadd.f32 %v407, %v448
        %v454 = vxor.u32 %v453, 2147483648
        %v455 = vmul.f32 %v454, 1.442695
        %v456 = vpow.pop %v455
        %v457 = vadd.f32 %v456, 1.0
        %v458 = vrcp.pop %v457
        %v459 = vmul.f32 1.0, %v458
        %v460 = vtanh.pop %v453
        %v461 = vmul.f32 %v459, %v390
        %463 = vrot.lane.b32.xlu0 %v460, 32
        %v464 = vpop.permute.xlu0 %463
        %v466 = vmul.f32 %v459, %v464
        %468 = vrot.lane.b32.xlu0 %v466, 32
        %v469 = vpop.permute.xlu0 %468
        %v471 = vadd.f32 %v461, %v469
        %v472 = vtanh.pop %v471
        %474 = vrot.lane.b32.xlu0 %v472, 32
        %v475 = vpop.permute.xlu0 %474
        %v477 = vmul.f32 %v459, %v475
        %v478 = vpack.c.bf16 %v477, %v477
        %v480 = vunpack.c.l.b16 %v478
        %v481 = vpack.c.b16 %v480, %v480
        %482 = vrot.lane.b32.xlu0 %v481, 64
        %v483 = vpop.permute.xlu0 %482
        %s485 = scalar_lea.vmem %s273, 4 [#allocation5]
        %486 = vst.msk [vmem:[%s485] sm:$0xf] %vm404, %v483
        %s487 = scalar_lea.vmem %s256, 16 [#allocation4]
        %v488 = vld [vmem:[%s487] sm:$0xff]
        %489 = vrot.lane.b32.xlu0 %v478, 64
        %v490 = vpop.permute.xlu0 %489
        %v492 = vsel %vm324, %v490, 0
        %494 = vmatprep.subr.bf16.mxu0 0
        %495 = vmatpush1.bf16.msra.mxu0 %v320
        %496 = vmatprep.subr.bf16.mxu0 0
        %497 = vmatpush1.bf16.msra.mxu0 %v321
        %498 = vmatprep.subr.bf16.mxu0 0
        %499 = vmatpush1.bf16.msra.mxu0 0
        %500 = vmatprep.subr.bf16.mxu0 0
        %501 = vmatpush1.bf16.msra.mxu0 0
        %502 = vmatprep.subr.bf16.mxu0 0
        %503 = vmatpush1.bf16.msra.mxu0 0
        %504 = vmatprep.subr.bf16.mxu0 0
        %505 = vmatpush1.bf16.msra.mxu0 0
        %506 = vmatprep.subr.bf16.mxu0 0
        %507 = vmatpush1.bf16.msra.mxu0 0
        %508 = vmatprep.subr.bf16.mxu0 0
        %509 = vmatpush1.bf16.msra.mxu0 0
        %510 = vmatprep.subr.bf16.mxu0 0
        %511 = vmatpush1.bf16.msra.mxu0 0
        %512 = vmatprep.subr.bf16.mxu0 0
        %513 = vmatpush1.bf16.msra.mxu0 0
        %514 = vmatprep.subr.bf16.mxu0 0
        %515 = vmatpush1.bf16.msra.mxu0 0
        %516 = vmatprep.subr.bf16.mxu0 0
        %517 = vmatpush1.bf16.msra.mxu0 0
        %518 = vmatprep.subr.bf16.mxu0 0
        %519 = vmatpush1.bf16.msra.mxu0 0
        %520 = vmatprep.subr.bf16.mxu0 0
        %521 = vmatpush1.bf16.msra.mxu0 0
        %522 = vmatprep.subr.bf16.mxu0 0
        %523 = vmatpush1.bf16.msra.mxu0 0
        %524 = vmatprep.subr.bf16.mxu0 0
        %525 = vmatpush1.bf16.msra.mxu0 0
        %526 = vmatprep.mubr.bf16.mxu0 0
        %527 = vmatmul.mubr.bf16.gmra.mrb[0].mxu0 %v492
        %v528 = vpop.f32.mrb[0].mxu0
        %v529 = vadd.f32 0.0, %v528
        %v530 = vpop.f32.mrb[0].mxu0
        %v531 = vpop.f32.mrb[0].mxu0
        %v532 = vpop.f32.mrb[0].mxu0
        %533 = vdwg.mxu0
        %v534 = vadd.f32 %v488, %v529
        %v535 = vxor.u32 %v534, 2147483648
        %v536 = vmul.f32 %v535, 1.442695
        %v537 = vpow.pop %v536
        %v538 = vadd.f32 %v537, 1.0
        %v539 = vrcp.pop %v538
        %v540 = vmul.f32 1.0, %v539
        %v541 = vtanh.pop %v534
        %v542 = vmul.f32 %v540, %v471
        %544 = vrot.lane.b32.xlu0 %v541, 32
        %v545 = vpop.permute.xlu0 %544
        %v547 = vmul.f32 %v540, %v545
        %549 = vrot.lane.b32.xlu0 %v547, 32
        %v550 = vpop.permute.xlu0 %549
        %v552 = vadd.f32 %v542, %v550
        %v553 = vtanh.pop %v552
        %555 = vrot.lane.b32.xlu0 %v553, 32
        %v556 = vpop.permute.xlu0 %555
        %v558 = vmul.f32 %v540, %v556
        %v559 = vpack.c.bf16 %v558, %v558
        %v561 = vunpack.c.l.b16 %v559
        %v562 = vpack.c.b16 %v561, %v561
        %563 = vrot.lane.b32.xlu0 %v562, 64
        %v564 = vpop.permute.xlu0 %563
        %s566 = scalar_lea.vmem %s273, 8 [#allocation5]
        %567 = vst.msk [vmem:[%s566] sm:$0xf] %vm404, %v564
        %s568 = scalar_lea.vmem %s256, 24 [#allocation4]
        %v569 = vld [vmem:[%s568] sm:$0xff]
        %570 = vrot.lane.b32.xlu0 %v559, 64
        %v571 = vpop.permute.xlu0 %570
        %v573 = vsel %vm324, %v571, 0
        %575 = vmatprep.subr.bf16.mxu0 0
        %576 = vmatpush1.bf16.msra.mxu0 %v320
        %577 = vmatprep.subr.bf16.mxu0 0
        %578 = vmatpush1.bf16.msra.mxu0 %v321
        %579 = vmatprep.subr.bf16.mxu0 0
        %580 = vmatpush1.bf16.msra.mxu0 0
        %581 = vmatprep.subr.bf16.mxu0 0
        %582 = vmatpush1.bf16.msra.mxu0 0
        %583 = vmatprep.subr.bf16.mxu0 0
        %584 = vmatpush1.bf16.msra.mxu0 0
        %585 = vmatprep.subr.bf16.mxu0 0
        %586 = vmatpush1.bf16.msra.mxu0 0
        %587 = vmatprep.subr.bf16.mxu0 0
        %588 = vmatpush1.bf16.msra.mxu0 0
        %589 = vmatprep.subr.bf16.mxu0 0
        %590 = vmatpush1.bf16.msra.mxu0 0
        %591 = vmatprep.subr.bf16.mxu0 0
        %592 = vmatpush1.bf16.msra.mxu0 0
        %593 = vmatprep.subr.bf16.mxu0 0
        %594 = vmatpush1.bf16.msra.mxu0 0
        %595 = vmatprep.subr.bf16.mxu0 0
        %596 = vmatpush1.bf16.msra.mxu0 0
        %597 = vmatprep.subr.bf16.mxu0 0
        %598 = vmatpush1.bf16.msra.mxu0 0
        %599 = vmatprep.subr.bf16.mxu0 0
        %600 = vmatpush1.bf16.msra.mxu0 0
        %601 = vmatprep.subr.bf16.mxu0 0
        %602 = vmatpush1.bf16.msra.mxu0 0
        %603 = vmatprep.subr.bf16.mxu0 0
        %604 = vmatpush1.bf16.msra.mxu0 0
        %605 = vmatprep.subr.bf16.mxu0 0
        %606 = vmatpush1.bf16.msra.mxu0 0
        %607 = vmatprep.mubr.bf16.mxu0 0
        %608 = vmatmul.mubr.bf16.gmra.mrb[0].mxu0 %v573
        %v609 = vpop.f32.mrb[0].mxu0
        %v610 = vadd.f32 0.0, %v609
        %v611 = vpop.f32.mrb[0].mxu0
        %v612 = vpop.f32.mrb[0].mxu0
        %v613 = vpop.f32.mrb[0].mxu0
        %614 = vdwg.mxu0
        %v615 = vadd.f32 %v569, %v610
        %v616 = vxor.u32 %v615, 2147483648
        %v617 = vmul.f32 %v616, 1.442695
        %v618 = vpow.pop %v617
        %v619 = vadd.f32 %v618, 1.0
        %v620 = vrcp.pop %v619
        %v621 = vmul.f32 1.0, %v620
        %v622 = vtanh.pop %v615
        %v623 = vmul.f32 %v621, %v552
        %625 = vrot.lane.b32.xlu0 %v622, 32
        %v626 = vpop.permute.xlu0 %625
        %v628 = vmul.f32 %v621, %v626
        %630 = vrot.lane.b32.xlu0 %v628, 32
        %v631 = vpop.permute.xlu0 %630
        %v633 = vadd.f32 %v623, %v631
        %v634 = vtanh.pop %v633
        %636 = vrot.lane.b32.xlu0 %v634, 32
        %v637 = vpop.permute.xlu0 %636
        %v639 = vmul.f32 %v621, %v637
        %v640 = vpack.c.bf16 %v639, %v639
        %v642 = vunpack.c.l.b16 %v640
        %v643 = vpack.c.b16 %v642, %v642
        %644 = vrot.lane.b32.xlu0 %v643, 64
        %v645 = vpop.permute.xlu0 %644
        %s647 = scalar_lea.vmem %s273, 12 [#allocation5]
        %648 = vst.msk [vmem:[%s647] sm:$0xf] %vm404, %v645
        %s649 = scalar_lea.vmem %s256, 32 [#allocation4]
        %v650 = vld [vmem:[%s649] sm:$0xff]
        %651 = vrot.lane.b32.xlu0 %v640, 64
        %v652 = vpop.permute.xlu0 %651
        %v654 = vsel %vm324, %v652, 0
        %656 = vmatprep.subr.bf16.mxu0 0
        %657 = vmatpush1.bf16.msra.mxu0 %v320
        %658 = vmatprep.subr.bf16.mxu0 0
        %659 = vmatpush1.bf16.msra.mxu0 %v321
        %660 = vmatprep.subr.bf16.mxu0 0
        %661 = vmatpush1.bf16.msra.mxu0 0
        %662 = vmatprep.subr.bf16.mxu0 0
        %663 = vmatpush1.bf16.msra.mxu0 0
        %664 = vmatprep.subr.bf16.mxu0 0
        %665 = vmatpush1.bf16.msra.mxu0 0
        %666 = vmatprep.subr.bf16.mxu0 0
        %667 = vmatpush1.bf16.msra.mxu0 0
        %668 = vmatprep.subr.bf16.mxu0 0
        %669 = vmatpush1.bf16.msra.mxu0 0
        %670 = vmatprep.subr.bf16.mxu0 0
        %671 = vmatpush1.bf16.msra.mxu0 0
        %672 = vmatprep.subr.bf16.mxu0 0
        %673 = vmatpush1.bf16.msra.mxu0 0
        %674 = vmatprep.subr.bf16.mxu0 0
        %675 = vmatpush1.bf16.msra.mxu0 0
        %676 = vmatprep.subr.bf16.mxu0 0
        %677 = vmatpush1.bf16.msra.mxu0 0
        %678 = vmatprep.subr.bf16.mxu0 0
        %679 = vmatpush1.bf16.msra.mxu0 0
        %680 = vmatprep.subr.bf16.mxu0 0
        %681 = vmatpush1.bf16.msra.mxu0 0
        %682 = vmatprep.subr.bf16.mxu0 0
        %683 = vmatpush1.bf16.msra.mxu0 0
        %684 = vmatprep.subr.bf16.mxu0 0
        %685 = vmatpush1.bf16.msra.mxu0 0
        %686 = vmatprep.subr.bf16.mxu0 0
        %687 = vmatpush1.bf16.msra.mxu0 0
        %688 = vmatprep.mubr.bf16.mxu0 0
        %689 = vmatmul.mubr.bf16.gmra.mrb[0].mxu0 %v654
        %v690 = vpop.f32.mrb[0].mxu0
        %v691 = vadd.f32 0.0, %v690
        %v692 = vpop.f32.mrb[0].mxu0
        %v693 = vpop.f32.mrb[0].mxu0
        %v694 = vpop.f32.mrb[0].mxu0
        %695 = vdwg.mxu0
        %v696 = vadd.f32 %v650, %v691
        %v697 = vxor.u32 %v696, 2147483648
        %v698 = vmul.f32 %v697, 1.442695
        %v699 = vpow.pop %v698
        %v700 = vadd.f32 %v699, 1.0
        %v701 = vrcp.pop %v700
        %v702 = vmul.f32 1.0, %v701
        %v703 = vtanh.pop %v696
        %v704 = vmul.f32 %v702, %v633
        %706 = vrot.lane.b32.xlu0 %v703, 32
        %v707 = vpop.permute.xlu0 %706
        %v709 = vmul.f32 %v702, %v707
        %711 = vrot.lane.b32.xlu0 %v709, 32
        %v712 = vpop.permute.xlu0 %711
        %v714 = vadd.f32 %v704, %v712
        %v715 = vtanh.pop %v714
        %717 = vrot.lane.b32.xlu0 %v715, 32
        %v718 = vpop.permute.xlu0 %717
        %v720 = vmul.f32 %v702, %v718
        %v721 = vpack.c.bf16 %v720, %v720
        %v723 = vunpack.c.l.b16 %v721
        %v724 = vpack.c.b16 %v723, %v723
        %725 = vrot.lane.b32.xlu0 %v724, 64
        %v726 = vpop.permute.xlu0 %725
        %s728 = scalar_lea.vmem %s273, 16 [#allocation5]
        %729 = vst.msk [vmem:[%s728] sm:$0xf] %vm404, %v726
        %s730 = scalar_lea.vmem %s256, 40 [#allocation4]
        %v731 = vld [vmem:[%s730] sm:$0xff]
        %732 = vrot.lane.b32.xlu0 %v721, 64
        %v733 = vpop.permute.xlu0 %732
        %v735 = vsel %vm324, %v733, 0
        %737 = vmatprep.subr.bf16.mxu0 0
        %738 = vmatpush1.bf16.msra.mxu0 %v320
        %739 = vmatprep.subr.bf16.mxu0 0
        %740 = vmatpush1.bf16.msra.mxu0 %v321
        %741 = vmatprep.subr.bf16.mxu0 0
        %742 = vmatpush1.bf16.msra.mxu0 0
        %743 = vmatprep.subr.bf16.mxu0 0
        %744 = vmatpush1.bf16.msra.mxu0 0
        %745 = vmatprep.subr.bf16.mxu0 0
        %746 = vmatpush1.bf16.msra.mxu0 0
        %747 = vmatprep.subr.bf16.mxu0 0
        %748 = vmatpush1.bf16.msra.mxu0 0
        %749 = vmatprep.subr.bf16.mxu0 0
        %750 = vmatpush1.bf16.msra.mxu0 0
        %751 = vmatprep.subr.bf16.mxu0 0
        %752 = vmatpush1.bf16.msra.mxu0 0
        %753 = vmatprep.subr.bf16.mxu0 0
        %754 = vmatpush1.bf16.msra.mxu0 0
        %755 = vmatprep.subr.bf16.mxu0 0
        %756 = vmatpush1.bf16.msra.mxu0 0
        %757 = vmatprep.subr.bf16.mxu0 0
        %758 = vmatpush1.bf16.msra.mxu0 0
        %759 = vmatprep.subr.bf16.mxu0 0
        %760 = vmatpush1.bf16.msra.mxu0 0
        %761 = vmatprep.subr.bf16.mxu0 0
        %762 = vmatpush1.bf16.msra.mxu0 0
        %763 = vmatprep.subr.bf16.mxu0 0
        %764 = vmatpush1.bf16.msra.mxu0 0
        %765 = vmatprep.subr.bf16.mxu0 0
        %766 = vmatpush1.bf16.msra.mxu0 0
        %767 = vmatprep.subr.bf16.mxu0 0
        %768 = vmatpush1.bf16.msra.mxu0 0
        %769 = vmatprep.mubr.bf16.mxu0 0
        %770 = vmatmul.mubr.bf16.gmra.mrb[0].mxu0 %v735
        %v771 = vpop.f32.mrb[0].mxu0
        %v772 = vadd.f32 0.0, %v771
        %v773 = vpop.f32.mrb[0].mxu0
        %v774 = vpop.f32.mrb[0].mxu0
        %v775 = vpop.f32.mrb[0].mxu0
        %776 = vdwg.mxu0
        %v777 = vadd.f32 %v731, %v772
        %v778 = vxor.u32 %v777, 2147483648
        %v779 = vmul.f32 %v778, 1.442695
        %v780 = vpow.pop %v779
        %v781 = vadd.f32 %v780, 1.0
        %v782 = vrcp.pop %v781
        %v783 = vmul.f32 1.0, %v782
        %v784 = vtanh.pop %v777
        %v785 = vmul.f32 %v783, %v714
        %787 = vrot.lane.b32.xlu0 %v784, 32
        %v788 = vpop.permute.xlu0 %787
        %v790 = vmul.f32 %v783, %v788
        %792 = vrot.lane.b32.xlu0 %v790, 32
        %v793 = vpop.permute.xlu0 %792
        %v795 = vadd.f32 %v785, %v793
        %v796 = vtanh.pop %v795
        %798 = vrot.lane.b32.xlu0 %v796, 32
        %v799 = vpop.permute.xlu0 %798
        %v801 = vmul.f32 %v783, %v799
        %v802 = vpack.c.bf16 %v801, %v801
        %v804 = vunpack.c.l.b16 %v802
        %v805 = vpack.c.b16 %v804, %v804
        %806 = vrot.lane.b32.xlu0 %v805, 64
        %v807 = vpop.permute.xlu0 %806
        %s809 = scalar_lea.vmem %s273, 20 [#allocation5]
        %810 = vst.msk [vmem:[%s809] sm:$0xf] %vm404, %v807
        %s811 = scalar_lea.vmem %s256, 48 [#allocation4]
        %v812 = vld [vmem:[%s811] sm:$0xff]
        %813 = vrot.lane.b32.xlu0 %v802, 64
        %v814 = vpop.permute.xlu0 %813
        %v816 = vsel %vm324, %v814, 0
        %818 = vmatprep.subr.bf16.mxu0 0
        %819 = vmatpush1.bf16.msra.mxu0 %v320
        %820 = vmatprep.subr.bf16.mxu0 0
        %821 = vmatpush1.bf16.msra.mxu0 %v321
        %822 = vmatprep.subr.bf16.mxu0 0
        %823 = vmatpush1.bf16.msra.mxu0 0
        %824 = vmatprep.subr.bf16.mxu0 0
        %825 = vmatpush1.bf16.msra.mxu0 0
        %826 = vmatprep.subr.bf16.mxu0 0
        %827 = vmatpush1.bf16.msra.mxu0 0
        %828 = vmatprep.subr.bf16.mxu0 0
        %829 = vmatpush1.bf16.msra.mxu0 0
        %830 = vmatprep.subr.bf16.mxu0 0
        %831 = vmatpush1.bf16.msra.mxu0 0
        %832 = vmatprep.subr.bf16.mxu0 0
        %833 = vmatpush1.bf16.msra.mxu0 0
        %834 = vmatprep.subr.bf16.mxu0 0
        %835 = vmatpush1.bf16.msra.mxu0 0
        %836 = vmatprep.subr.bf16.mxu0 0
        %837 = vmatpush1.bf16.msra.mxu0 0
        %838 = vmatprep.subr.bf16.mxu0 0
        %839 = vmatpush1.bf16.msra.mxu0 0
        %840 = vmatprep.subr.bf16.mxu0 0
        %841 = vmatpush1.bf16.msra.mxu0 0
        %842 = vmatprep.subr.bf16.mxu0 0
        %843 = vmatpush1.bf16.msra.mxu0 0
        %844 = vmatprep.subr.bf16.mxu0 0
        %845 = vmatpush1.bf16.msra.mxu0 0
        %846 = vmatprep.subr.bf16.mxu0 0
        %847 = vmatpush1.bf16.msra.mxu0 0
        %848 = vmatprep.subr.bf16.mxu0 0
        %849 = vmatpush1.bf16.msra.mxu0 0
        %850 = vmatprep.mubr.bf16.mxu0 0
        %851 = vmatmul.mubr.bf16.gmra.mrb[0].mxu0 %v816
        %v852 = vpop.f32.mrb[0].mxu0
        %v853 = vadd.f32 0.0, %v852
        %v854 = vpop.f32.mrb[0].mxu0
        %v855 = vpop.f32.mrb[0].mxu0
        %v856 = vpop.f32.mrb[0].mxu0
        %857 = vdwg.mxu0
        %v858 = vadd.f32 %v812, %v853
        %v859 = vxor.u32 %v858, 2147483648
        %v860 = vmul.f32 %v859, 1.442695
        %v861 = vpow.pop %v860
        %v862 = vadd.f32 %v861, 1.0
        %v863 = vrcp.pop %v862
        %v864 = vmul.f32 1.0, %v863
        %v865 = vtanh.pop %v858
        %v866 = vmul.f32 %v864, %v795
        %868 = vrot.lane.b32.xlu0 %v865, 32
        %v869 = vpop.permute.xlu0 %868
        %v871 = vmul.f32 %v864, %v869
        %873 = vrot.lane.b32.xlu0 %v871, 32
        %v874 = vpop.permute.xlu0 %873
        %v876 = vadd.f32 %v866, %v874
        %v877 = vtanh.pop %v876
        %879 = vrot.lane.b32.xlu0 %v877, 32
        %v880 = vpop.permute.xlu0 %879
        %v882 = vmul.f32 %v864, %v880
        %v883 = vpack.c.bf16 %v882, %v882
        %v885 = vunpack.c.l.b16 %v883
        %v886 = vpack.c.b16 %v885, %v885
        %887 = vrot.lane.b32.xlu0 %v886, 64
        %v888 = vpop.permute.xlu0 %887
        %s890 = scalar_lea.vmem %s273, 24 [#allocation5]
        %891 = vst.msk [vmem:[%s890] sm:$0xf] %vm404, %v888
        %s892 = scalar_lea.vmem %s256, 56 [#allocation4]
        %v893 = vld [vmem:[%s892] sm:$0xff]
        %894 = vrot.lane.b32.xlu0 %v883, 64
        %v895 = vpop.permute.xlu0 %894
        %v897 = vsel %vm324, %v895, 0
        %899 = vmatprep.subr.bf16.mxu0 0
        %900 = vmatpush1.bf16.msra.mxu0 %v320
        %901 = vmatprep.subr.bf16.mxu0 0
        %902 = vmatpush1.bf16.msra.mxu0 %v321
        %903 = vmatprep.subr.bf16.mxu0 0
        %904 = vmatpush1.bf16.msra.mxu0 0
        %905 = vmatprep.subr.bf16.mxu0 0
        %906 = vmatpush1.bf16.msra.mxu0 0
        %907 = vmatprep.subr.bf16.mxu0 0
        %908 = vmatpush1.bf16.msra.mxu0 0
        %909 = vmatprep.subr.bf16.mxu0 0
        %910 = vmatpush1.bf16.msra.mxu0 0
        %911 = vmatprep.subr.bf16.mxu0 0
        %912 = vmatpush1.bf16.msra.mxu0 0
        %913 = vmatprep.subr.bf16.mxu0 0
        %914 = vmatpush1.bf16.msra.mxu0 0
        %915 = vmatprep.subr.bf16.mxu0 0
        %916 = vmatpush1.bf16.msra.mxu0 0
        %917 = vmatprep.subr.bf16.mxu0 0
        %918 = vmatpush1.bf16.msra.mxu0 0
        %919 = vmatprep.subr.bf16.mxu0 0
        %920 = vmatpush1.bf16.msra.mxu0 0
        %921 = vmatprep.subr.bf16.mxu0 0
        %922 = vmatpush1.bf16.msra.mxu0 0
        %923 = vmatprep.subr.bf16.mxu0 0
        %924 = vmatpush1.bf16.msra.mxu0 0
        %925 = vmatprep.subr.bf16.mxu0 0
        %926 = vmatpush1.bf16.msra.mxu0 0
        %927 = vmatprep.subr.bf16.mxu0 0
        %928 = vmatpush1.bf16.msra.mxu0 0
        %929 = vmatprep.subr.bf16.mxu0 0
        %930 = vmatpush1.bf16.msra.mxu0 0
        %931 = vmatprep.mubr.bf16.mxu0 0
        %932 = vmatmul.mubr.bf16.gmra.mrb[0].mxu0 %v897
        %v933 = vpop.f32.mrb[0].mxu0
        %v934 = vadd.f32 0.0, %v933
        %v935 = vpop.f32.mrb[0].mxu0
        %v936 = vpop.f32.mrb[0].mxu0
        %v937 = vpop.f32.mrb[0].mxu0
        %938 = vdwg.mxu0
        %v939 = vadd.f32 %v893, %v934
        %v940 = vxor.u32 %v939, 2147483648
        %v941 = vmul.f32 %v940, 1.442695
        %v942 = vpow.pop %v941
        %v943 = vadd.f32 %v942, 1.0
        %v944 = vrcp.pop %v943
        %v945 = vmul.f32 1.0, %v944
        %v946 = vtanh.pop %v939
        %v947 = vmul.f32 %v945, %v876
        %949 = vrot.lane.b32.xlu0 %v946, 32
        %v950 = vpop.permute.xlu0 %949
        %v952 = vmul.f32 %v945, %v950
        %954 = vrot.lane.b32.xlu0 %v952, 32
        %v955 = vpop.permute.xlu0 %954
        %v957 = vadd.f32 %v947, %v955
        %v958 = vtanh.pop %v957
        %960 = vrot.lane.b32.xlu0 %v958, 32
        %v961 = vpop.permute.xlu0 %960
        %v963 = vmul.f32 %v945, %v961
        %v964 = vpack.c.bf16 %v963, %v963
        %v966 = vunpack.c.l.b16 %v964
        %v967 = vpack.c.b16 %v966, %v966
        %968 = vrot.lane.b32.xlu0 %v967, 64
        %v969 = vpop.permute.xlu0 %968
        %s971 = scalar_lea.vmem %s273, 28 [#allocation5]
        %972 = vst.msk [vmem:[%s971] sm:$0xf] %vm404, %v969
        %974 = vrot.lane.b32.xlu0 %v963, 64
        %v975 = vpop.permute.xlu0 %974
        %977 = vst.msk [vmem:[#allocation2] sm:$0xff] %vm324, %v975
        %979 = vrot.lane.b32.xlu0 %v957, 96
        %v980 = vpop.permute.xlu0 %979
        %982 = vst.msk [vmem:[#allocation3] sm:$0xff] %vm324, %v980
        // Predicated region
        $region71: #{lstm_model_forward.5} parent=61 // pred_check
          %p983 = pneg %p297
        $region72: #{lstm_model_forward.5} parent=61 // pred_check_branch
          %985 = sbr.rel (%p983) target = $region74
        $region73: #{lstm_model_forward.5} parent=61 // pred_region
          %986 = vst.msk [vmem:[%s291] sm:$0xff] %vm324, %v975
          %987 = vst.msk [vmem:[%s295] sm:$0xff] %vm324, %v980
        $region74: #{lstm_model_forward.5} parent=61 // pred_fallthru
          _
        %s988 = sand.u32 %s87, 1
        %s989 = sand.u32 %s87, 1
        %s990 = smul.addr %s989, 32
        %s991 = scalar_lea.vmem [#allocation5], %s990
        %p992 = scmp.lt.s32.totalorder %s20, 1
        %s993 = scalar_select %p992, %s20, 1
        %s994 = smul.addr %s993, 8
        %s995 = scalar_lea.vmem %s3, %s994
        %p996 = scmp.lt.s32.totalorder %s20, 1
        %s997 = scalar_select %p996, %s20, 1
        %s998 = smul.addr %s997, 8
        %s999 = scalar_lea.vmem %s4, %s998
        // Predicated region
        $region75: #{lstm_model_forward.5} parent=61 // pred_check
          %p1000 = pneg %p97
        $region76: #{lstm_model_forward.5} parent=61 // pred_check_branch
          %1002 = sbr.rel (%p1000) target = $region78
        $region77: #{lstm_model_forward.5} parent=61 // pred_region
          %s1003 = smul.u32 8, %s21
          %s1004 = smul.addr %s1003, 2
          %s1005 = sadd.s32 %s20, %s1004
          %s1006 = smul.addr %s1005, 4
          %s1007 = scalar_lea.vmem %s2, %s1006
          // Predicated region
          $region79: #{lstm_model_forward.5} parent=77 // pred_check
            _
          $region80: #{lstm_model_forward.5} parent=77 // pred_check_branch
            %1009 = sbr.rel (0) target = $region82
          $region81: #{lstm_model_forward.5} parent=77 // pred_region
            // Predicated region
            $region83: #{lstm_model_forward.5} parent=81 // pred_check
              _
            $region84: #{lstm_model_forward.5} parent=81 // pred_check_branch
              %1011 = sbr.rel target = $region86
            $region85: #{lstm_model_forward.5} parent=81 // pred_region
              // Predicated region
              $region98: #{lstm_model_forward.5} parent=85 // pred_check
                _
              $region99: #{lstm_model_forward.5} parent=85 // pred_check_branch
                %1040 = sbr.rel (0) target = $region101
              $region100: #{lstm_model_forward.5} parent=85 // pred_region
                loop: start=0, step=1, limit=1
                $region102: #{lstm_model_forward.5} parent=100 // loop_pre_header
                  _
                $region103: #{lstm_model_forward.5} parent=100 // loop_header
                  %s1042 = sphi 0, %s1046
                  %p1043 = scmp.ge.s32.totalorder %s1042, 1
                  %s1047 = sphi %s991, %s991
                  %s1048 = sphi %s1007, %s1007
                $region104: #{lstm_model_forward.5} parent=100 // loop_header_branch
                  %1045 = sbr.rel (%p1043) target = $region108
                $region105: #{lstm_model_forward.5} parent=100 // loop_body
                  _
                $region106: #{lstm_model_forward.5} parent=100 // loop_footer
                  %s1046 = sadd.s32 1, %s1042
                $region107: #{lstm_model_forward.5} parent=100 // loop_footer_branch
                  %1041 = sbr.rel target = $region103
                $region108: #{lstm_model_forward.5} parent=100 // loop_exit
                  _
                loop: start=0, step=1, limit=1
                $region109: #{lstm_model_forward.5} parent=100 // loop_pre_header
                  _
                $region110: #{lstm_model_forward.5} parent=100 // loop_header
                  %s1051 = sphi 0, %s1055
                  %p1052 = scmp.ge.s32.totalorder %s1051, 1
                  %s1056 = sphi %s991, %s991
                  %s1057 = sphi %s1007, %s1007
                $region111: #{lstm_model_forward.5} parent=100 // loop_header_branch
                  %1054 = sbr.rel (%p1052) target = $region115
                $region112: #{lstm_model_forward.5} parent=100 // loop_body
                  %v1058 = vld [vmem:[%s1056] sm:$0xf]
                  %1059 = vst [vmem:[%s1057] sm:$0xf] %v1058
                  %v1060 = vld [vmem:[%s1056 + $0x4] sm:$0xf]
                  %1061 = vst [vmem:[%s1057 + $0x8] sm:$0xf] %v1060
                  %v1062 = vld [vmem:[%s1056 + $0x8] sm:$0xf]
                  %1063 = vst [vmem:[%s1057 + $0x10] sm:$0xf] %v1062
                  %v1064 = vld [vmem:[%s1056 + $0xc] sm:$0xf]
                  %1065 = vst [vmem:[%s1057 + $0x18] sm:$0xf] %v1064
                  %v1066 = vld [vmem:[%s1056 + $0x10] sm:$0xf]
                  %1067 = vst [vmem:[%s1057 + $0x20] sm:$0xf] %v1066
                  %v1068 = vld [vmem:[%s1056 + $0x14] sm:$0xf]
                  %1069 = vst [vmem:[%s1057 + $0x28] sm:$0xf] %v1068
                  %v1070 = vld [vmem:[%s1056 + $0x18] sm:$0xf]
                  %1071 = vst [vmem:[%s1057 + $0x30] sm:$0xf] %v1070
                  %v1072 = vld [vmem:[%s1056 + $0x1c] sm:$0xf]
                  %1073 = vst [vmem:[%s1057 + $0x38] sm:$0xf] %v1072
                $region113: #{lstm_model_forward.5} parent=100 // loop_footer
                  %s1055 = sadd.s32 1, %s1051
                $region114: #{lstm_model_forward.5} parent=100 // loop_footer_branch
                  %1050 = sbr.rel target = $region110
                $region115: #{lstm_model_forward.5} parent=100 // loop_exit
                  _
              $region101: #{lstm_model_forward.5} parent=85 // pred_fallthru
                _
            $region86: #{lstm_model_forward.5} parent=81 // pred_fallthru
              _
            // Predicated region
            $region87: #{lstm_model_forward.5} parent=81 // pred_check
              _
            $region88: #{lstm_model_forward.5} parent=81 // pred_check_branch
              %1013 = sbr.rel (0) target = $region90
            $region89: #{lstm_model_forward.5} parent=81 // pred_region
              loop: start=0, step=1, limit=1
              $region91: #{lstm_model_forward.5} parent=89 // loop_pre_header
                _
              $region92: #{lstm_model_forward.5} parent=89 // loop_header
                %s1016 = sphi 0, %s1020
                %p1017 = scmp.ge.s32.totalorder %s1016, 1
                %s1021 = sphi %s991, %s991
                %s1022 = sphi %s1007, %s1007
              $region93: #{lstm_model_forward.5} parent=89 // loop_header_branch
                %1019 = sbr.rel (%p1017) target = $region97
              $region94: #{lstm_model_forward.5} parent=89 // loop_body
                %v1023 = vld [vmem:[%s1021] sm:$0xf]
                %1024 = vst [vmem:[%s1022] sm:$0xf] %v1023
                %v1025 = vld [vmem:[%s1021 + $0x4] sm:$0xf]
                %1026 = vst [vmem:[%s1022 + $0x8] sm:$0xf] %v1025
                %v1027 = vld [vmem:[%s1021 + $0x8] sm:$0xf]
                %1028 = vst [vmem:[%s1022 + $0x10] sm:$0xf] %v1027
                %v1029 = vld [vmem:[%s1021 + $0xc] sm:$0xf]
                %1030 = vst [vmem:[%s1022 + $0x18] sm:$0xf] %v1029
                %v1031 = vld [vmem:[%s1021 + $0x10] sm:$0xf]
                %1032 = vst [vmem:[%s1022 + $0x20] sm:$0xf] %v1031
                %v1033 = vld [vmem:[%s1021 + $0x14] sm:$0xf]
                %1034 = vst [vmem:[%s1022 + $0x28] sm:$0xf] %v1033
                %v1035 = vld [vmem:[%s1021 + $0x18] sm:$0xf]
                %1036 = vst [vmem:[%s1022 + $0x30] sm:$0xf] %v1035
                %v1037 = vld [vmem:[%s1021 + $0x1c] sm:$0xf]
                %1038 = vst [vmem:[%s1022 + $0x38] sm:$0xf] %v1037
              $region95: #{lstm_model_forward.5} parent=89 // loop_footer
                %s1020 = sadd.s32 1, %s1016
              $region96: #{lstm_model_forward.5} parent=89 // loop_footer_branch
                %1015 = sbr.rel target = $region92
              $region97: #{lstm_model_forward.5} parent=89 // loop_exit
                _
            $region90: #{lstm_model_forward.5} parent=81 // pred_fallthru
              _
          $region82: #{lstm_model_forward.5} parent=77 // pred_fallthru
            _
          %1074 = vnop
        $region78: #{lstm_model_forward.5} parent=61 // pred_fallthru
          _
        // Predicated region
        $region116: #{lstm_model_forward.5} parent=61 // pred_check
          %p1075 = pneg %p123
        $region117: #{lstm_model_forward.5} parent=61 // pred_check_branch
          %1077 = sbr.rel (%p1075) target = $region119
        $region118: #{lstm_model_forward.5} parent=61 // pred_region
          _
        $region119: #{lstm_model_forward.5} parent=61 // pred_fallthru
          _
        // Predicated region
        $region120: #{lstm_model_forward.5} parent=61 // pred_check
          %p1078 = pneg %p149
        $region121: #{lstm_model_forward.5} parent=61 // pred_check_branch
          %1080 = sbr.rel (%p1078) target = $region123
        $region122: #{lstm_model_forward.5} parent=61 // pred_region
          _
        $region123: #{lstm_model_forward.5} parent=61 // pred_fallthru
          _
      $region62: #{lstm_model_forward.5} parent=5 // pred_fallthru
        _
      %p1081 = scmp.le.s32.totalorder 2, %s11
      // Predicated region
      $region124: #{lstm_model_forward.5} parent=5 // pred_check
        %p1082 = pneg %p1081
      $region125: #{lstm_model_forward.5} parent=5 // pred_check_branch
        %1084 = sbr.rel (%p1082) target = $region127
      $region126: #{lstm_model_forward.5} parent=5 // pred_region
        %s1085 = ssub.s32 %s11, 2
        // Predicated region
        $region128: #{lstm_model_forward.5} parent=126 // pred_check
          %p1086 = pneg %p103
        $region129: #{lstm_model_forward.5} parent=126 // pred_check_branch
          %1088 = sbr.rel (%p1086) target = $region131
        $region130: #{lstm_model_forward.5} parent=126 // pred_region
          %s1089 = sand.u32 %s88, 1
          %s1090 = sand.u32 %s88, 1
          %s1091 = smul.addr %s1090, 32
          %s1092 = scalar_lea.vmem [#allocation5], %s1091
        $region131: #{lstm_model_forward.5} parent=126 // pred_fallthru
          _
        // Predicated region
        $region132: #{lstm_model_forward.5} parent=126 // pred_check
          %p1093 = pneg %p129
        $region133: #{lstm_model_forward.5} parent=126 // pred_check_branch
          %1095 = sbr.rel (%p1093) target = $region135
        $region134: #{lstm_model_forward.5} parent=126 // pred_region
          %p1096 = scmp.lt.s32.totalorder %s22, 1
          %s1097 = scalar_select %p1096, %s22, 1
          %s1098 = smul.addr %s1097, 8
          %s1099 = scalar_lea.vmem %s3, %s1098
        $region135: #{lstm_model_forward.5} parent=126 // pred_fallthru
          _
        // Predicated region
        $region136: #{lstm_model_forward.5} parent=126 // pred_check
          %p1100 = pneg %p155
        $region137: #{lstm_model_forward.5} parent=126 // pred_check_branch
          %1102 = sbr.rel (%p1100) target = $region139
        $region138: #{lstm_model_forward.5} parent=126 // pred_region
          %p1103 = scmp.lt.s32.totalorder %s22, 1
          %s1104 = scalar_select %p1103, %s22, 1
          %s1105 = smul.addr %s1104, 8
          %s1106 = scalar_lea.vmem %s4, %s1105
        $region139: #{lstm_model_forward.5} parent=126 // pred_fallthru
          _
      $region127: #{lstm_model_forward.5} parent=5 // pred_fallthru
        _
    $region6: #{lstm_model_forward.5} parent=1 // loop_footer
      %s15 = sadd.s32 1, %s11
    $region7: #{lstm_model_forward.5} parent=1 // loop_footer_branch
      %10 = sbr.rel target = $region3
    $region8: #{lstm_model_forward.5} parent=1 // loop_exit
      _

// kernel: lstm_model_forward.7
$region0: #{lstm_model_forward.7}
  #allocation0 [shape = 'u32[]', space=smem, size = 0x4, offset = 0x4, fixed_abs, tag = 'smem constant byte address 0x4 - core index']
  #allocation1 [shape = 'u32[144,128]{1,0:T(1,128)}', space=vmem, size = 0x12000, scoped, tag = 'internal scratch']
  #allocation2 [shape = 'f32[8,32]{1,0:T(8,128)}', space=vmem, size = 0x1000, scoped, tag = 'scratch operand']
  #allocation3 [shape = 'f32[8,32]{1,0:T(8,128)}', space=vmem, size = 0x1000, scoped, tag = 'scratch operand']
  #allocation4 [shape = 'f32[8,8,32]{2,1,0:T(8,128)}', space=vmem, size = 0x8000, scoped, tag = 'scratch operand']
  #allocation5 [shape = 'f32[1,1]{1,0:T(1,128)S(1)}', space=vmem, size = 0x200, scoped, tag = 'scoped memory for lstm_model_forward.7']
  %s0 = inlined_call_operand.vmem [shape: f32[8,16,128], index: 0, kind: input, shape index: {}]
  %s1 = inlined_call_operand.vmem [shape: bf16[32,128], index: 1, kind: input, shape index: {}]
  %s2 = inlined_call_operand.vmem [shape: f32[32,1], index: 2, kind: input, shape index: {}]
  %s3 = inlined_call_operand.<no memory space> [shape: f32[1,1], index: 3, kind: input, shape index: {}]
  %s4 = inlined_call_operand.vmem [shape: f32[8,16,1], index: 4, kind: output, shape index: {0}]
  %s5 = inlined_call_operand.vmem [shape: f32[16,32], index: 5, kind: output, shape index: {1}]
  %s6 = inlined_call_operand.vmem [shape: f32[16,32], index: 6, kind: output, shape index: {2}]
  %7 = xla_tuple %s4, %s5, %s6
  %s8 = sld [smem:[#allocation0]]
  $region145: #{lstm_model_forward.7} parent=0
    _
  %s10 = ssub.s32 1, %s8
  %s11 = scalar_select 0, %s10, %s8
  %v12 = vstv %s3
  %13 = vst [vmem:[#allocation5] sm:$0x1] %v12
  $region1: #{lstm_model_forward.7} parent=0
    #allocation6 [shape = 'u8[65536]{0}', space=vmem, size = 0x10000, scoped, tag = 'input window, operand 0']
    #allocation7 [shape = 'u8[65536]{0}', space=vmem, size = 0x10000, scoped, tag = 'output window, operand 0']
    loop: start=0, step=1, limit=4
    $region2: #{lstm_model_forward.7} parent=1 // loop_pre_header
      _
    $region3: #{lstm_model_forward.7} parent=1 // loop_header
      %s15 = sphi 0, %s19
      %p16 = scmp.ge.s32.totalorder %s15, 4
      %s22 = sphi 0, %s34
      %s23 = sphi 0, %s30
      %s24 = sphi 0, %s22
      %s25 = sphi 0, %s23
      %s26 = sphi 0, %s24
      %s27 = sphi 0, %s25
      %s39 = sphi 0, %s41
      %s42 = sphi 0, %s39
      %s43 = sphi 0, %s42
      %s59 = sphi 0, %s43
      %s63 = sphi 0, %s63
      %s65 = sphi 0, %s63
      %s66 = sphi 0, %s65
      %s80 = sphi 0, %s66
      %s84 = sphi 0, %s84
      %s86 = sphi 0, %s84
      %s87 = sphi 0, %s86
      %s101 = sphi 0, %s87
      %s105 = sphi 0, %s105
      %s107 = sphi 0, %s105
      %s108 = sphi 0, %s107
      %s122 = sphi 0, %s108
      %s130 = sphi 0, %s132
      %s133 = sphi 0, %s130
      %s134 = sphi 0, %s133
      %s150 = sphi 0, %s134
      %s156 = sphi 0, %s158
      %s159 = sphi 0, %s156
      %s160 = sphi 0, %s159
      %s176 = sphi 0, %s160
      %s182 = sphi 0, %s184
      %s185 = sphi 0, %s182
      %s186 = sphi 0, %s185
      %s202 = sphi 0, %s186
    $region4: #{lstm_model_forward.7} parent=1 // loop_header_branch
      %18 = sbr.rel (%p16) target = $region8
    $region5: #{lstm_model_forward.7} parent=1 // loop_body
      %s20 = ssub.s32 %s15, 1
      %s21 = ssub.s32 %s15, 2
      %s28 = sadd.s32 1, %s23
      %p29 = scmp.ge.s32.totalorder %s28, 1
      %s30 = scalar_select %p29, 0, %s28
      %s31 = sadd.s32 1, %s22
      %s32 = scalar_select %p29, %s31, %s22
      %p33 = scmp.ge.s32.totalorder %s32, 2
      %s34 = scalar_select %p33, 0, %s32
      %s35 = ssub.s32 %s23, %s30
      %s36 = ssub.s32 %s22, %s34
      %s37 = sor.u32 %s35, %s36
      %p38 = scmp.eq.s32.totalorder %s37, 0
      %s40 = sadd.s32 %s39, 1
      %s41 = scalar_select %p38, %s39, %s40
      %p44 = pneg %p38
      %p45 = scmp.eq.s32.totalorder %s15, 1
      %p46 = por %p44, %p45
      %p47 = scmp.ne.s32.totalorder %s39, %s42
      %p48 = scmp.eq.s32.totalorder %s15, 0
      %p49 = por %p47, %p48
      %p50 = scmp.ne.s32.totalorder %s39, %s42
      %p51 = scmp.eq.s32.totalorder %s20, 1
      %p52 = por %p50, %p51
      %p53 = scmp.ne.s32.totalorder %s42, %s43
      %p54 = scmp.eq.s32.totalorder %s20, 0
      %p55 = por %p53, %p54
      %p56 = scmp.ne.s32.totalorder %s42, %s43
      %p57 = scmp.eq.s32.totalorder %s21, 1
      %p58 = por %p56, %p57
      %p60 = scmp.ne.s32.totalorder %s43, %s59
      %p61 = scmp.eq.s32.totalorder %s21, 0
      %p62 = por %p60, %p61
      %s64 = sadd.s32 %s63, 1
      %p67 = scmp.eq.s32.totalorder %s15, 1
      %p68 = scmp.ne.s32.totalorder %s63, %s65
      %p69 = scmp.eq.s32.totalorder %s15, 0
      %p70 = por %p68, %p69
      %p71 = scmp.ne.s32.totalorder %s63, %s65
      %p72 = scmp.eq.s32.totalorder %s20, 1
      %p73 = por %p71, %p72
      %p74 = scmp.ne.s32.totalorder %s65, %s66
      %p75 = scmp.eq.s32.totalorder %s20, 0
      %p76 = por %p74, %p75
      %p77 = scmp.ne.s32.totalorder %s65, %s66
      %p78 = scmp.eq.s32.totalorder %s21, 1
      %p79 = por %p77, %p78
      %p81 = scmp.ne.s32.totalorder %s66, %s80
      %p82 = scmp.eq.s32.totalorder %s21, 0
      %p83 = por %p81, %p82
      %s85 = sadd.s32 %s84, 1
      %p88 = scmp.eq.s32.totalorder %s15, 1
      %p89 = scmp.ne.s32.totalorder %s84, %s86
      %p90 = scmp.eq.s32.totalorder %s15, 0
      %p91 = por %p89, %p90
      %p92 = scmp.ne.s32.totalorder %s84, %s86
      %p93 = scmp.eq.s32.totalorder %s20, 1
      %p94 = por %p92, %p93
      %p95 = scmp.ne.s32.totalorder %s86, %s87
      %p96 = scmp.eq.s32.totalorder %s20, 0
      %p97 = por %p95, %p96
      %p98 = scmp.ne.s32.totalorder %s86, %s87
      %p99 = scmp.eq.s32.totalorder %s21, 1
      %p100 = por %p98, %p99
      %p102 = scmp.ne.s32.totalorder %s87, %s101
      %p103 = scmp.eq.s32.totalorder %s21, 0
      %p104 = por %p102, %p103
      %s106 = sadd.s32 %s105, 1
      %p109 = scmp.eq.s32.totalorder %s15, 1
      %p110 = scmp.ne.s32.totalorder %s105, %s107
      %p111 = scmp.eq.s32.totalorder %s15, 0
      %p112 = por %p110, %p111
      %p113 = scmp.ne.s32.totalorder %s105, %s107
      %p114 = scmp.eq.s32.totalorder %s20, 1
      %p115 = por %p113, %p114
      %p116 = scmp.ne.s32.totalorder %s107, %s108
      %p117 = scmp.eq.s32.totalorder %s20, 0
      %p118 = por %p116, %p117
      %p119 = scmp.ne.s32.totalorder %s107, %s108
      %p120 = scmp.eq.s32.totalorder %s21, 1
      %p121 = por %p119, %p120
      %p123 = scmp.ne.s32.totalorder %s108, %s122
      %p124 = scmp.eq.s32.totalorder %s21, 0
      %p125 = por %p123, %p124
      %s126 = ssub.s32 %s23, %s30
      %s127 = ssub.s32 %s22, %s34
      %s128 = sor.u32 %s126, %s127
      %p129 = scmp.eq.s32.totalorder %s128, 0
      %s131 = sadd.s32 %s130, 1
      %s132 = scalar_select %p129, %s130, %s131
      %p135 = pneg %p129
      %p136 = scmp.eq.s32.totalorder %s15, 1
      %p137 = por %p135, %p136
      %p138 = scmp.ne.s32.totalorder %s130, %s133
      %p139 = scmp.eq.s32.totalorder %s15, 0
      %p140 = por %p138, %p139
      %p141 = scmp.ne.s32.totalorder %s130, %s133
      %p142 = scmp.eq.s32.totalorder %s20, 1
      %p143 = por %p141, %p142
      %p144 = scmp.ne.s32.totalorder %s133, %s134
      %p145 = scmp.eq.s32.totalorder %s20, 0
      %p146 = por %p144, %p145
      %p147 = scmp.ne.s32.totalorder %s133, %s134
      %p148 = scmp.eq.s32.totalorder %s21, 1
      %p149 = por %p147, %p148
      %p151 = scmp.ne.s32.totalorder %s134, %s150
      %p152 = scmp.eq.s32.totalorder %s21, 0
      %p153 = por %p151, %p152
      %s154 = ssub.s32 %s22, %s34
      %p155 = scmp.eq.s32.totalorder %s154, 0
      %s157 = sadd.s32 %s156, 1
      %s158 = scalar_select %p155, %s156, %s157
      %p161 = pneg %p155
      %p162 = scmp.eq.s32.totalorder %s15, 1
      %p163 = por %p161, %p162
      %p164 = scmp.ne.s32.totalorder %s156, %s159
      %p165 = scmp.eq.s32.totalorder %s15, 0
      %p166 = por %p164, %p165
      %p167 = scmp.ne.s32.totalorder %s156, %s159
      %p168 = scmp.eq.s32.totalorder %s20, 1
      %p169 = por %p167, %p168
      %p170 = scmp.ne.s32.totalorder %s159, %s160
      %p171 = scmp.eq.s32.totalorder %s20, 0
      %p172 = por %p170, %p171
      %p173 = scmp.ne.s32.totalorder %s159, %s160
      %p174 = scmp.eq.s32.totalorder %s21, 1
      %p175 = por %p173, %p174
      %p177 = scmp.ne.s32.totalorder %s160, %s176
      %p178 = scmp.eq.s32.totalorder %s21, 0
      %p179 = por %p177, %p178
      %s180 = ssub.s32 %s22, %s34
      %p181 = scmp.eq.s32.totalorder %s180, 0
      %s183 = sadd.s32 %s182, 1
      %s184 = scalar_select %p181, %s182, %s183
      %p187 = pneg %p181
      %p188 = scmp.eq.s32.totalorder %s15, 1
      %p189 = por %p187, %p188
      %p190 = scmp.ne.s32.totalorder %s182, %s185
      %p191 = scmp.eq.s32.totalorder %s15, 0
      %p192 = por %p190, %p191
      %p193 = scmp.ne.s32.totalorder %s182, %s185
      %p194 = scmp.eq.s32.totalorder %s20, 1
      %p195 = por %p193, %p194
      %p196 = scmp.ne.s32.totalorder %s185, %s186
      %p197 = scmp.eq.s32.totalorder %s20, 0
      %p198 = por %p196, %p197
      %p199 = scmp.ne.s32.totalorder %s185, %s186
      %p200 = scmp.eq.s32.totalorder %s21, 1
      %p201 = por %p199, %p200
      %p203 = scmp.ne.s32.totalorder %s186, %s202
      %p204 = scmp.eq.s32.totalorder %s21, 0
      %p205 = por %p203, %p204
      %p206 = scmp.le.s32.totalorder 1, %s15
      %p207 = scmp.lt.s32.totalorder %s15, 3
      %p208 = pnand %p206, %p207
      %p209 = pneg %p208
      // Predicated region
      $region9: #{lstm_model_forward.7} parent=5 // pred_check
        _
      $region10: #{lstm_model_forward.7} parent=5 // pred_check_branch
        %211 = sbr.rel (%p208) target = $region12
      $region11: #{lstm_model_forward.7} parent=5 // pred_region
        %s212 = ssub.s32 %s15, 1
        // Predicated region
        $region13: #{lstm_model_forward.7} parent=11 // pred_check
          %p213 = pneg %p76
        $region14: #{lstm_model_forward.7} parent=11 // pred_check_branch
          %215 = sbr.rel (%p213) target = $region16
        $region15: #{lstm_model_forward.7} parent=11 // pred_region
          _
        $region16: #{lstm_model_forward.7} parent=11 // pred_fallthru
          _
        // Predicated region
        $region17: #{lstm_model_forward.7} parent=11 // pred_check
          %p216 = pneg %p97
        $region18: #{lstm_model_forward.7} parent=11 // pred_check_branch
          %218 = sbr.rel (%p216) target = $region20
        $region19: #{lstm_model_forward.7} parent=11 // pred_region
          _
        $region20: #{lstm_model_forward.7} parent=11 // pred_fallthru
          _
        // Predicated region
        $region21: #{lstm_model_forward.7} parent=11 // pred_check
          %p219 = pneg %p118
        $region22: #{lstm_model_forward.7} parent=11 // pred_check_branch
          %221 = sbr.rel (%p219) target = $region24
        $region23: #{lstm_model_forward.7} parent=11 // pred_region
          _
        $region24: #{lstm_model_forward.7} parent=11 // pred_fallthru
          _
      $region12: #{lstm_model_forward.7} parent=5 // pred_fallthru
        _
      %p222 = scmp.lt.s32.totalorder %s15, 2
      // Predicated region
      $region25: #{lstm_model_forward.7} parent=5 // pred_check
        %p223 = pneg %p222
      $region26: #{lstm_model_forward.7} parent=5 // pred_check_branch
        %225 = sbr.rel (%p223) target = $region28
      $region27: #{lstm_model_forward.7} parent=5 // pred_region
        // Predicated region
        $region29: #{lstm_model_forward.7} parent=27 // pred_check
          %p226 = pneg %p49
        $region30: #{lstm_model_forward.7} parent=27 // pred_check_branch
          %228 = sbr.rel (%p226) target = $region32
        $region31: #{lstm_model_forward.7} parent=27 // pred_region
          %s229 = sand.u32 %s39, 1
          %s230 = sand.u32 %s39, 1
          %s231 = smul.addr %s230, 64
          %s232 = scalar_lea.vmem [#allocation6], %s231
          %s233 = smul.u32 8, %s23
          %s234 = smul.addr %s233, 2
          %s235 = sadd.s32 %s22, %s234
          %s236 = smul.addr %s235, 8
          %s237 = scalar_lea.vmem %s0, %s236
          // Predicated region
          $region33: #{lstm_model_forward.7} parent=31 // pred_check
            _
          $region34: #{lstm_model_forward.7} parent=31 // pred_check_branch
            %239 = sbr.rel (0) target = $region36
          $region35: #{lstm_model_forward.7} parent=31 // pred_region
            // Predicated region
            $region37: #{lstm_model_forward.7} parent=35 // pred_check
              _
            $region38: #{lstm_model_forward.7} parent=35 // pred_check_branch
              %241 = sbr.rel (0) target = $region40
            $region39: #{lstm_model_forward.7} parent=35 // pred_region
              // Predicated region
              $region52: #{lstm_model_forward.7} parent=39 // pred_check
                _
              $region53: #{lstm_model_forward.7} parent=39 // pred_check_branch
                %270 = sbr.rel (0) target = $region55
              $region54: #{lstm_model_forward.7} parent=39 // pred_region
                loop: start=0, step=1, limit=1
                $region56: #{lstm_model_forward.7} parent=54 // loop_pre_header
                  _
                $region57: #{lstm_model_forward.7} parent=54 // loop_header
                  %s272 = sphi 0, %s276
                  %p273 = scmp.ge.s32.totalorder %s272, 1
                  %s277 = sphi %s237, %s237
                  %s278 = sphi %s232, %s232
                $region58: #{lstm_model_forward.7} parent=54 // loop_header_branch
                  %275 = sbr.rel (%p273) target = $region62
                $region59: #{lstm_model_forward.7} parent=54 // loop_body
                  %v279 = vld [vmem:[%s277] sm:$0xff]
                  %280 = vst [vmem:[%s278] sm:$0xff] %v279
                  %v281 = vld [vmem:[%s277 + $0x10] sm:$0xff]
                  %282 = vst [vmem:[%s278 + $0x8] sm:$0xff] %v281
                  %v283 = vld [vmem:[%s277 + $0x20] sm:$0xff]
                  %284 = vst [vmem:[%s278 + $0x10] sm:$0xff] %v283
                  %v285 = vld [vmem:[%s277 + $0x30] sm:$0xff]
                  %286 = vst [vmem:[%s278 + $0x18] sm:$0xff] %v285
                  %v287 = vld [vmem:[%s277 + $0x40] sm:$0xff]
                  %288 = vst [vmem:[%s278 + $0x20] sm:$0xff] %v287
                  %v289 = vld [vmem:[%s277 + $0x50] sm:$0xff]
                  %290 = vst [vmem:[%s278 + $0x28] sm:$0xff] %v289
                  %v291 = vld [vmem:[%s277 + $0x60] sm:$0xff]
                  %292 = vst [vmem:[%s278 + $0x30] sm:$0xff] %v291
                  %v293 = vld [vmem:[%s277 + $0x70] sm:$0xff]
                  %294 = vst [vmem:[%s278 + $0x38] sm:$0xff] %v293
                $region60: #{lstm_model_forward.7} parent=54 // loop_footer
                  %s276 = sadd.s32 1, %s272
                $region61: #{lstm_model_forward.7} parent=54 // loop_footer_branch
                  %271 = sbr.rel target = $region57
                $region62: #{lstm_model_forward.7} parent=54 // loop_exit
                  _
              $region55: #{lstm_model_forward.7} parent=39 // pred_fallthru
                _
              // Predicated region
              $region63: #{lstm_model_forward.7} parent=39 // pred_check
                _
              $region64: #{lstm_model_forward.7} parent=39 // pred_check_branch
                %296 = sbr.rel target = $region66
              $region65: #{lstm_model_forward.7} parent=39 // pred_region
                _
              $region66: #{lstm_model_forward.7} parent=39 // pred_fallthru
                _
            $region40: #{lstm_model_forward.7} parent=35 // pred_fallthru
              _
            // Predicated region
            $region41: #{lstm_model_forward.7} parent=35 // pred_check
              _
            $region42: #{lstm_model_forward.7} parent=35 // pred_check_branch
              %243 = sbr.rel target = $region44
            $region43: #{lstm_model_forward.7} parent=35 // pred_region
              loop: start=0, step=1, limit=1
              $region45: #{lstm_model_forward.7} parent=43 // loop_pre_header
                _
              $region46: #{lstm_model_forward.7} parent=43 // loop_header
                %s246 = sphi 0, %s250
                %p247 = scmp.ge.s32.totalorder %s246, 1
                %s251 = sphi %s237, %s237
                %s252 = sphi %s232, %s232
              $region47: #{lstm_model_forward.7} parent=43 // loop_header_branch
                %249 = sbr.rel (%p247) target = $region51
              $region48: #{lstm_model_forward.7} parent=43 // loop_body
                %v253 = vld [vmem:[%s251] sm:$0xff]
                %254 = vst [vmem:[%s252] sm:$0xff] %v253
                %v255 = vld [vmem:[%s251 + $0x10] sm:$0xff]
                %256 = vst [vmem:[%s252 + $0x8] sm:$0xff] %v255
                %v257 = vld [vmem:[%s251 + $0x20] sm:$0xff]
                %258 = vst [vmem:[%s252 + $0x10] sm:$0xff] %v257
                %v259 = vld [vmem:[%s251 + $0x30] sm:$0xff]
                %260 = vst [vmem:[%s252 + $0x18] sm:$0xff] %v259
                %v261 = vld [vmem:[%s251 + $0x40] sm:$0xff]
                %262 = vst [vmem:[%s252 + $0x20] sm:$0xff] %v261
                %v263 = vld [vmem:[%s251 + $0x50] sm:$0xff]
                %264 = vst [vmem:[%s252 + $0x28] sm:$0xff] %v263
                %v265 = vld [vmem:[%s251 + $0x60] sm:$0xff]
                %266 = vst [vmem:[%s252 + $0x30] sm:$0xff] %v265
                %v267 = vld [vmem:[%s251 + $0x70] sm:$0xff]
                %268 = vst [vmem:[%s252 + $0x38] sm:$0xff] %v267
              $region49: #{lstm_model_forward.7} parent=43 // loop_footer
                %s250 = sadd.s32 1, %s246
              $region50: #{lstm_model_forward.7} parent=43 // loop_footer_branch
                %245 = sbr.rel target = $region46
              $region51: #{lstm_model_forward.7} parent=43 // loop_exit
                _
            $region44: #{lstm_model_forward.7} parent=35 // pred_fallthru
              _
          $region36: #{lstm_model_forward.7} parent=31 // pred_fallthru
            _
          %297 = vnop
        $region32: #{lstm_model_forward.7} parent=27 // pred_fallthru
          _
      $region28: #{lstm_model_forward.7} parent=5 // pred_fallthru
        _
      %p298 = scmp.le.s32.totalorder 1, %s15
      %p299 = scmp.lt.s32.totalorder %s15, 3
      %p300 = pnand %p298, %p299
      %p301 = pneg %p300
      // Predicated region
      $region67: #{lstm_model_forward.7} parent=5 // pred_check
        _
      $region68: #{lstm_model_forward.7} parent=5 // pred_check_branch
        %303 = sbr.rel (%p300) target = $region70
      $region69: #{lstm_model_forward.7} parent=5 // pred_region
        %s304 = ssub.s32 %s15, 1
        %s305 = sand.u32 %s42, 1
        %s306 = sand.u32 %s42, 1
        %s307 = smul.addr %s306, 64
        %s308 = scalar_lea.vmem [#allocation6], %s307
        // Predicated region
        $region71: #{lstm_model_forward.7} parent=69 // pred_check
          %p309 = pneg %p55
        $region72: #{lstm_model_forward.7} parent=69 // pred_check_branch
          %311 = sbr.rel (%p309) target = $region74
        $region73: #{lstm_model_forward.7} parent=69 // pred_region
          _
        $region74: #{lstm_model_forward.7} parent=69 // pred_fallthru
          _
        %s312 = sand.u32 %s42, 1
        %s313 = sand.u32 %s42, 1
        %s314 = smul.addr %s313, 64
        %s315 = scalar_lea.vmem [#allocation6], %s314
        %p316 = pneg %p55
        %p317 = pneg %p52
        %p318 = pneg %p76
        %p319 = pneg %p73
        %p320 = pneg %p97
        %p321 = pneg %p94
        %p322 = pneg %p118
        %p323 = pneg %p115
        %p324 = pneg %p146
        %p325 = pneg %p143
        %s326 = sand.u32 %s133, 1
        %s327 = sand.u32 %s133, 1
        %s328 = smul.addr %s327, 64
        %s329 = scalar_lea.vmem [#allocation7], %s328
        %p330 = pneg %p172
        %p331 = pneg %p169
        %p332 = scmp.lt.s32.totalorder %s24, 1
        %s333 = scalar_select %p332, %s24, 1
        %s334 = smul.addr %s333, 8
        %s335 = scalar_lea.vmem %s5, %s334
        %p336 = pneg %p198
        %p337 = pneg %p195
        %p338 = scmp.lt.s32.totalorder %s24, 1
        %s339 = scalar_select %p338, %s24, 1
        %s340 = smul.addr %s339, 8
        %s341 = scalar_lea.vmem %s6, %s340
        %s342 = smul.u32 8, %s25
        %s343 = smul.u32 8, %s25
        %p344 = scmp.lt.s32.totalorder %s24, 1
        %s345 = scalar_select %p344, %s24, 1
        %s346 = smul.addr %s345, 8
        %s347 = scalar_lea.vmem %s5, %s346
        %p348 = scmp.lt.s32.totalorder %s24, 1
        %s349 = scalar_select %p348, %s24, 1
        %s350 = smul.addr %s349, 8
        %s351 = scalar_lea.vmem %s6, %s350
        %p353 = scmp.eq.s32.totalorder %s25, 0
        // Predicated region
        $region75: #{lstm_model_forward.7} parent=69 // pred_check
          %p354 = pneg %p353
        $region76: #{lstm_model_forward.7} parent=69 // pred_check_branch
          %356 = sbr.rel (%p354) target = $region78
        $region77: #{lstm_model_forward.7} parent=69 // pred_region
          %vm357 = vcmask 261120
          %358 = vst.msk [vmem:[#allocation2] sm:$0xff] %vm357, 0.0
          %359 = vst.msk [vmem:[#allocation3] sm:$0xff] %vm357, 0.0
        $region78: #{lstm_model_forward.7} parent=69 // pred_fallthru
          _
        %v360 = vld [vmem:[%s1] sm:$0xf]
        %v361 = vld [vmem:[%s1 + $0x4] sm:$0xf]
        %v362 = vld [vmem:[%s1 + $0x8] sm:$0xf]
        %v363 = vld [vmem:[%s1 + $0xc] sm:$0xf]
        %v364 = vld [vmem:[%s2] sm:$0xff]
        %v365 = vld [vmem:[%s2 + $0x8] sm:$0xff]
        %v366 = vld [vmem:[%s2 + $0x10] sm:$0xff]
        %v367 = vld [vmem:[%s2 + $0x18] sm:$0xff]
        %v368 = vld [vmem:[#allocation5] sm:$0x1]
        %v369 = vld [vmem:[#allocation2] sm:$0xff]
        %v370 = vld [vmem:[#allocation3] sm:$0xff]
        %v371 = vld [vmem:[%s308] sm:$0xff]
        %v372 = vpack.c.bf16 %v369, %v369
        %v377 = vunpack.c.l.b16 %v360
        %v378 = vunpack.c.l.b16 %v361
        %v379 = vunpack.c.l.b16 %v362
        %v380 = vunpack.c.l.b16 %v363
        %v381 = vpack.c.b16 %v378, %v377
        %v382 = vpack.c.b16 %v380, %v379
        %vm385 = vcmask 261120
        %v387 = vsel %vm385, %v372, 0
        %389 = vmatprep.subr.bf16.mxu0 0
        %390 = vmatpush1.bf16.msra.mxu0 %v381
        %391 = vmatprep.subr.bf16.mxu0 0
        %392 = vmatpush1.bf16.msra.mxu0 %v382
        %393 = vmatprep.subr.bf16.mxu0 0
        %394 = vmatpush1.bf16.msra.mxu0 0
        %395 = vmatprep.subr.bf16.mxu0 0
        %396 = vmatpush1.bf16.msra.mxu0 0
        %397 = vmatprep.subr.bf16.mxu0 0
        %398 = vmatpush1.bf16.msra.mxu0 0
        %399 = vmatprep.subr.bf16.mxu0 0
        %400 = vmatpush1.bf16.msra.mxu0 0
        %401 = vmatprep.subr.bf16.mxu0 0
        %402 = vmatpush1.bf16.msra.mxu0 0
        %403 = vmatprep.subr.bf16.mxu0 0
        %404 = vmatpush1.bf16.msra.mxu0 0
        %405 = vmatprep.subr.bf16.mxu0 0
        %406 = vmatpush1.bf16.msra.mxu0 0
        %407 = vmatprep.subr.bf16.mxu0 0
        %408 = vmatpush1.bf16.msra.mxu0 0
        %409 = vmatprep.subr.bf16.mxu0 0
        %410 = vmatpush1.bf16.msra.mxu0 0
        %411 = vmatprep.subr.bf16.mxu0 0
        %412 = vmatpush1.bf16.msra.mxu0 0
        %413 = vmatprep.subr.bf16.mxu0 0
        %414 = vmatpush1.bf16.msra.mxu0 0
        %415 = vmatprep.subr.bf16.mxu0 0
        %416 = vmatpush1.bf16.msra.mxu0 0
        %417 = vmatprep.subr.bf16.mxu0 0
        %418 = vmatpush1.bf16.msra.mxu0 0
        %419 = vmatprep.subr.bf16.mxu0 0
        %420 = vmatpush1.bf16.msra.mxu0 0
        %421 = vmatprep.mubr.bf16.mxu0 0
        %422 = vmatmul.mubr.bf16.gmra.mrb[0].mxu0 %v387
        %v423 = vpop.f32.mrb[0].mxu0
        %v424 = vadd.f32 0.0, %v423
        %v425 = vpop.f32.mrb[0].mxu0
        %v426 = vpop.f32.mrb[0].mxu0
        %v427 = vpop.f32.mrb[0].mxu0
        %428 = vdwg.mxu0
        %v429 = vadd.f32 %v371, %v424
        %v430 = vxor.u32 %v429, 2147483648
        %v431 = vmul.f32 %v430, 1.442695
        %v432 = vpow.pop %v431
        %v433 = vadd.f32 %v432, 1.0
        %v434 = vrcp.pop %v433
        %v435 = vmul.f32 1.0, %v434
        %v436 = vtanh.pop %v429
        %438 = vrot.lane.b32.xlu0 %v370, 32
        %v439 = vpop.permute.xlu0 %438
        %v441 = vmul.f32 %v435, %v439
        %443 = vrot.lane.b32.xlu0 %v436, 32
        %v444 = vpop.permute.xlu0 %443
        %v446 = vmul.f32 %v435, %v444
        %448 = vrot.lane.b32.xlu0 %v446, 32
        %v449 = vpop.permute.xlu0 %448
        %v451 = vadd.f32 %v441, %v449
        %v452 = vtanh.pop %v451
        %454 = vrot.lane.b32.xlu0 %v452, 32
        %v455 = vpop.permute.xlu0 %454
        %v457 = vmul.f32 %v435, %v455
        %459 = vrot.lane.b32.xlu0 %v457, 64
        %v460 = vpop.permute.xlu0 %459
        %462 = vst.msk [vmem:[#allocation4] sm:$0xff] %vm385, %v460
        %s463 = scalar_lea.vmem %s308, 8 [#allocation6]
        %v464 = vld [vmem:[%s463] sm:$0xff]
        %v465 = vpack.c.bf16 %v457, %v457
        %467 = vrot.lane.b32.xlu0 %v465, 64
        %v468 = vpop.permute.xlu0 %467
        %v470 = vsel %vm385, %v468, 0
        %472 = vmatprep.subr.bf16.mxu0 0
        %473 = vmatpush1.bf16.msra.mxu0 %v381
        %474 = vmatprep.subr.bf16.mxu0 0
        %475 = vmatpush1.bf16.msra.mxu0 %v382
        %476 = vmatprep.subr.bf16.mxu0 0
        %477 = vmatpush1.bf16.msra.mxu0 0
        %478 = vmatprep.subr.bf16.mxu0 0
        %479 = vmatpush1.bf16.msra.mxu0 0
        %480 = vmatprep.subr.bf16.mxu0 0
        %481 = vmatpush1.bf16.msra.mxu0 0
        %482 = vmatprep.subr.bf16.mxu0 0
        %483 = vmatpush1.bf16.msra.mxu0 0
        %484 = vmatprep.subr.bf16.mxu0 0
        %485 = vmatpush1.bf16.msra.mxu0 0
        %486 = vmatprep.subr.bf16.mxu0 0
        %487 = vmatpush1.bf16.msra.mxu0 0
        %488 = vmatprep.subr.bf16.mxu0 0
        %489 = vmatpush1.bf16.msra.mxu0 0
        %490 = vmatprep.subr.bf16.mxu0 0
        %491 = vmatpush1.bf16.msra.mxu0 0
        %492 = vmatprep.subr.bf16.mxu0 0
        %493 = vmatpush1.bf16.msra.mxu0 0
        %494 = vmatprep.subr.bf16.mxu0 0
        %495 = vmatpush1.bf16.msra.mxu0 0
        %496 = vmatprep.subr.bf16.mxu0 0
        %497 = vmatpush1.bf16.msra.mxu0 0
        %498 = vmatprep.subr.bf16.mxu0 0
        %499 = vmatpush1.bf16.msra.mxu0 0
        %500 = vmatprep.subr.bf16.mxu0 0
        %501 = vmatpush1.bf16.msra.mxu0 0
        %502 = vmatprep.subr.bf16.mxu0 0
        %503 = vmatpush1.bf16.msra.mxu0 0
        %504 = vmatprep.mubr.bf16.mxu0 0
        %505 = vmatmul.mubr.bf16.gmra.mrb[0].mxu0 %v470
        %v506 = vpop.f32.mrb[0].mxu0
        %v507 = vadd.f32 0.0, %v506
        %v508 = vpop.f32.mrb[0].mxu0
        %v509 = vpop.f32.mrb[0].mxu0
        %v510 = vpop.f32.mrb[0].mxu0
        %511 = vdwg.mxu0
        %v512 = vadd.f32 %v464, %v507
        %v513 = vxor.u32 %v512, 2147483648
        %v514 = vmul.f32 %v513, 1.442695
        %v515 = vpow.pop %v514
        %v516 = vadd.f32 %v515, 1.0
        %v517 = vrcp.pop %v516
        %v518 = vmul.f32 1.0, %v517
        %v519 = vtanh.pop %v512
        %v520 = vmul.f32 %v518, %v451
        %522 = vrot.lane.b32.xlu0 %v519, 32
        %v523 = vpop.permute.xlu0 %522
        %v525 = vmul.f32 %v518, %v523
        %527 = vrot.lane.b32.xlu0 %v525, 32
        %v528 = vpop.permute.xlu0 %527
        %v530 = vadd.f32 %v520, %v528
        %v531 = vtanh.pop %v530
        %533 = vrot.lane.b32.xlu0 %v531, 32
        %v534 = vpop.permute.xlu0 %533
        %v536 = vmul.f32 %v518, %v534
        %538 = vrot.lane.b32.xlu0 %v536, 64
        %v539 = vpop.permute.xlu0 %538
        %s541 = scalar_lea.vmem [#allocation4], 8
        %542 = vst.msk [vmem:[%s541] sm:$0xff] %vm385, %v539
        %s543 = scalar_lea.vmem %s308, 16 [#allocation6]
        %v544 = vld [vmem:[%s543] sm:$0xff]
        %v545 = vpack.c.bf16 %v536, %v536
        %547 = vrot.lane.b32.xlu0 %v545, 64
        %v548 = vpop.permute.xlu0 %547
        %v550 = vsel %vm385, %v548, 0
        %552 = vmatprep.subr.bf16.mxu0 0
        %553 = vmatpush1.bf16.msra.mxu0 %v381
        %554 = vmatprep.subr.bf16.mxu0 0
        %555 = vmatpush1.bf16.msra.mxu0 %v382
        %556 = vmatprep.subr.bf16.mxu0 0
        %557 = vmatpush1.bf16.msra.mxu0 0
        %558 = vmatprep.subr.bf16.mxu0 0
        %559 = vmatpush1.bf16.msra.mxu0 0
        %560 = vmatprep.subr.bf16.mxu0 0
        %561 = vmatpush1.bf16.msra.mxu0 0
        %562 = vmatprep.subr.bf16.mxu0 0
        %563 = vmatpush1.bf16.msra.mxu0 0
        %564 = vmatprep.subr.bf16.mxu0 0
        %565 = vmatpush1.bf16.msra.mxu0 0
        %566 = vmatprep.subr.bf16.mxu0 0
        %567 = vmatpush1.bf16.msra.mxu0 0
        %568 = vmatprep.subr.bf16.mxu0 0
        %569 = vmatpush1.bf16.msra.mxu0 0
        %570 = vmatprep.subr.bf16.mxu0 0
        %571 = vmatpush1.bf16.msra.mxu0 0
        %572 = vmatprep.subr.bf16.mxu0 0
        %573 = vmatpush1.bf16.msra.mxu0 0
        %574 = vmatprep.subr.bf16.mxu0 0
        %575 = vmatpush1.bf16.msra.mxu0 0
        %576 = vmatprep.subr.bf16.mxu0 0
        %577 = vmatpush1.bf16.msra.mxu0 0
        %578 = vmatprep.subr.bf16.mxu0 0
        %579 = vmatpush1.bf16.msra.mxu0 0
        %580 = vmatprep.subr.bf16.mxu0 0
        %581 = vmatpush1.bf16.msra.mxu0 0
        %582 = vmatprep.subr.bf16.mxu0 0
        %583 = vmatpush1.bf16.msra.mxu0 0
        %584 = vmatprep.mubr.bf16.mxu0 0
        %585 = vmatmul.mubr.bf16.gmra.mrb[0].mxu0 %v550
        %v586 = vpop.f32.mrb[0].mxu0
        %v587 = vadd.f32 0.0, %v586
        %v588 = vpop.f32.mrb[0].mxu0
        %v589 = vpop.f32.mrb[0].mxu0
        %v590 = vpop.f32.mrb[0].mxu0
        %591 = vdwg.mxu0
        %v592 = vadd.f32 %v544, %v587
        %v593 = vxor.u32 %v592, 2147483648
        %v594 = vmul.f32 %v593, 1.442695
        %v595 = vpow.pop %v594
        %v596 = vadd.f32 %v595, 1.0
        %v597 = vrcp.pop %v596
        %v598 = vmul.f32 1.0, %v597
        %v599 = vtanh.pop %v592
        %v600 = vmul.f32 %v598, %v530
        %602 = vrot.lane.b32.xlu0 %v599, 32
        %v603 = vpop.permute.xlu0 %602
        %v605 = vmul.f32 %v598, %v603
        %607 = vrot.lane.b32.xlu0 %v605, 32
        %v608 = vpop.permute.xlu0 %607
        %v610 = vadd.f32 %v600, %v608
        %v611 = vtanh.pop %v610
        %613 = vrot.lane.b32.xlu0 %v611, 32
        %v614 = vpop.permute.xlu0 %613
        %v616 = vmul.f32 %v598, %v614
        %618 = vrot.lane.b32.xlu0 %v616, 64
        %v619 = vpop.permute.xlu0 %618
        %s621 = scalar_lea.vmem [#allocation4], 16
        %622 = vst.msk [vmem:[%s621] sm:$0xff] %vm385, %v619
        %s623 = scalar_lea.vmem %s308, 24 [#allocation6]
        %v624 = vld [vmem:[%s623] sm:$0xff]
        %v625 = vpack.c.bf16 %v616, %v616
        %627 = vrot.lane.b32.xlu0 %v625, 64
        %v628 = vpop.permute.xlu0 %627
        %v630 = vsel %vm385, %v628, 0
        %632 = vmatprep.subr.bf16.mxu0 0
        %633 = vmatpush1.bf16.msra.mxu0 %v381
        %634 = vmatprep.subr.bf16.mxu0 0
        %635 = vmatpush1.bf16.msra.mxu0 %v382
        %636 = vmatprep.subr.bf16.mxu0 0
        %637 = vmatpush1.bf16.msra.mxu0 0
        %638 = vmatprep.subr.bf16.mxu0 0
        %639 = vmatpush1.bf16.msra.mxu0 0
        %640 = vmatprep.subr.bf16.mxu0 0
        %641 = vmatpush1.bf16.msra.mxu0 0
        %642 = vmatprep.subr.bf16.mxu0 0
        %643 = vmatpush1.bf16.msra.mxu0 0
        %644 = vmatprep.subr.bf16.mxu0 0
        %645 = vmatpush1.bf16.msra.mxu0 0
        %646 = vmatprep.subr.bf16.mxu0 0
        %647 = vmatpush1.bf16.msra.mxu0 0
        %648 = vmatprep.subr.bf16.mxu0 0
        %649 = vmatpush1.bf16.msra.mxu0 0
        %650 = vmatprep.subr.bf16.mxu0 0
        %651 = vmatpush1.bf16.msra.mxu0 0
        %652 = vmatprep.subr.bf16.mxu0 0
        %653 = vmatpush1.bf16.msra.mxu0 0
        %654 = vmatprep.subr.bf16.mxu0 0
        %655 = vmatpush1.bf16.msra.mxu0 0
        %656 = vmatprep.subr.bf16.mxu0 0
        %657 = vmatpush1.bf16.msra.mxu0 0
        %658 = vmatprep.subr.bf16.mxu0 0
        %659 = vmatpush1.bf16.msra.mxu0 0
        %660 = vmatprep.subr.bf16.mxu0 0
        %661 = vmatpush1.bf16.msra.mxu0 0
        %662 = vmatprep.subr.bf16.mxu0 0
        %663 = vmatpush1.bf16.msra.mxu0 0
        %664 = vmatprep.mubr.bf16.mxu0 0
        %665 = vmatmul.mubr.bf16.gmra.mrb[0].mxu0 %v630
        %v666 = vpop.f32.mrb[0].mxu0
        %v667 = vadd.f32 0.0, %v666
        %v668 = vpop.f32.mrb[0].mxu0
        %v669 = vpop.f32.mrb[0].mxu0
        %v670 = vpop.f32.mrb[0].mxu0
        %671 = vdwg.mxu0
        %v672 = vadd.f32 %v624, %v667
        %v673 = vxor.u32 %v672, 2147483648
        %v674 = vmul.f32 %v673, 1.442695
        %v675 = vpow.pop %v674
        %v676 = vadd.f32 %v675, 1.0
        %v677 = vrcp.pop %v676
        %v678 = vmul.f32 1.0, %v677
        %v679 = vtanh.pop %v672
        %v680 = vmul.f32 %v678, %v610
        %682 = vrot.lane.b32.xlu0 %v679, 32
        %v683 = vpop.permute.xlu0 %682
        %v685 = vmul.f32 %v678, %v683
        %687 = vrot.lane.b32.xlu0 %v685, 32
        %v688 = vpop.permute.xlu0 %687
        %v690 = vadd.f32 %v680, %v688
        %v691 = vtanh.pop %v690
        %693 = vrot.lane.b32.xlu0 %v691, 32
        %v694 = vpop.permute.xlu0 %693
        %v696 = vmul.f32 %v678, %v694
        %698 = vrot.lane.b32.xlu0 %v696, 64
        %v699 = vpop.permute.xlu0 %698
        %s701 = scalar_lea.vmem [#allocation4], 24
        %702 = vst.msk [vmem:[%s701] sm:$0xff] %vm385, %v699
        %s703 = scalar_lea.vmem %s308, 32 [#allocation6]
        %v704 = vld [vmem:[%s703] sm:$0xff]
        %v705 = vpack.c.bf16 %v696, %v696
        %707 = vrot.lane.b32.xlu0 %v705, 64
        %v708 = vpop.permute.xlu0 %707
        %v710 = vsel %vm385, %v708, 0
        %712 = vmatprep.subr.bf16.mxu0 0
        %713 = vmatpush1.bf16.msra.mxu0 %v381
        %714 = vmatprep.subr.bf16.mxu0 0
        %715 = vmatpush1.bf16.msra.mxu0 %v382
        %716 = vmatprep.subr.bf16.mxu0 0
        %717 = vmatpush1.bf16.msra.mxu0 0
        %718 = vmatprep.subr.bf16.mxu0 0
        %719 = vmatpush1.bf16.msra.mxu0 0
        %720 = vmatprep.subr.bf16.mxu0 0
        %721 = vmatpush1.bf16.msra.mxu0 0
        %722 = vmatprep.subr.bf16.mxu0 0
        %723 = vmatpush1.bf16.msra.mxu0 0
        %724 = vmatprep.subr.bf16.mxu0 0
        %725 = vmatpush1.bf16.msra.mxu0 0
        %726 = vmatprep.subr.bf16.mxu0 0
        %727 = vmatpush1.bf16.msra.mxu0 0
        %728 = vmatprep.subr.bf16.mxu0 0
        %729 = vmatpush1.bf16.msra.mxu0 0
        %730 = vmatprep.subr.bf16.mxu0 0
        %731 = vmatpush1.bf16.msra.mxu0 0
        %732 = vmatprep.subr.bf16.mxu0 0
        %733 = vmatpush1.bf16.msra.mxu0 0
        %734 = vmatprep.subr.bf16.mxu0 0
        %735 = vmatpush1.bf16.msra.mxu0 0
        %736 = vmatprep.subr.bf16.mxu0 0
        %737 = vmatpush1.bf16.msra.mxu0 0
        %738 = vmatprep.subr.bf16.mxu0 0
        %739 = vmatpush1.bf16.msra.mxu0 0
        %740 = vmatprep.subr.bf16.mxu0 0
        %741 = vmatpush1.bf16.msra.mxu0 0
        %742 = vmatprep.subr.bf16.mxu0 0
        %743 = vmatpush1.bf16.msra.mxu0 0
        %744 = vmatprep.mubr.bf16.mxu0 0
        %745 = vmatmul.mubr.bf16.gmra.mrb[0].mxu0 %v710
        %v746 = vpop.f32.mrb[0].mxu0
        %v747 = vadd.f32 0.0, %v746
        %v748 = vpop.f32.mrb[0].mxu0
        %v749 = vpop.f32.mrb[0].mxu0
        %v750 = vpop.f32.mrb[0].mxu0
        %751 = vdwg.mxu0
        %v752 = vadd.f32 %v704, %v747
        %v753 = vxor.u32 %v752, 2147483648
        %v754 = vmul.f32 %v753, 1.442695
        %v755 = vpow.pop %v754
        %v756 = vadd.f32 %v755, 1.0
        %v757 = vrcp.pop %v756
        %v758 = vmul.f32 1.0, %v757
        %v759 = vtanh.pop %v752
        %v760 = vmul.f32 %v758, %v690
        %762 = vrot.lane.b32.xlu0 %v759, 32
        %v763 = vpop.permute.xlu0 %762
        %v765 = vmul.f32 %v758, %v763
        %767 = vrot.lane.b32.xlu0 %v765, 32
        %v768 = vpop.permute.xlu0 %767
        %v770 = vadd.f32 %v760, %v768
        %v771 = vtanh.pop %v770
        %773 = vrot.lane.b32.xlu0 %v771, 32
        %v774 = vpop.permute.xlu0 %773
        %v776 = vmul.f32 %v758, %v774
        %778 = vrot.lane.b32.xlu0 %v776, 64
        %v779 = vpop.permute.xlu0 %778
        %s781 = scalar_lea.vmem [#allocation4], 32
        %782 = vst.msk [vmem:[%s781] sm:$0xff] %vm385, %v779
        %s783 = scalar_lea.vmem %s308, 40 [#allocation6]
        %v784 = vld [vmem:[%s783] sm:$0xff]
        %v785 = vpack.c.bf16 %v776, %v776
        %787 = vrot.lane.b32.xlu0 %v785, 64
        %v788 = vpop.permute.xlu0 %787
        %v790 = vsel %vm385, %v788, 0
        %792 = vmatprep.subr.bf16.mxu0 0
        %793 = vmatpush1.bf16.msra.mxu0 %v381
        %794 = vmatprep.subr.bf16.mxu0 0
        %795 = vmatpush1.bf16.msra.mxu0 %v382
        %796 = vmatprep.subr.bf16.mxu0 0
        %797 = vmatpush1.bf16.msra.mxu0 0
        %798 = vmatprep.subr.bf16.mxu0 0
        %799 = vmatpush1.bf16.msra.mxu0 0
        %800 = vmatprep.subr.bf16.mxu0 0
        %801 = vmatpush1.bf16.msra.mxu0 0
        %802 = vmatprep.subr.bf16.mxu0 0
        %803 = vmatpush1.bf16.msra.mxu0 0
        %804 = vmatprep.subr.bf16.mxu0 0
        %805 = vmatpush1.bf16.msra.mxu0 0
        %806 = vmatprep.subr.bf16.mxu0 0
        %807 = vmatpush1.bf16.msra.mxu0 0
        %808 = vmatprep.subr.bf16.mxu0 0
        %809 = vmatpush1.bf16.msra.mxu0 0
        %810 = vmatprep.subr.bf16.mxu0 0
        %811 = vmatpush1.bf16.msra.mxu0 0
        %812 = vmatprep.subr.bf16.mxu0 0
        %813 = vmatpush1.bf16.msra.mxu0 0
        %814 = vmatprep.subr.bf16.mxu0 0
        %815 = vmatpush1.bf16.msra.mxu0 0
        %816 = vmatprep.subr.bf16.mxu0 0
        %817 = vmatpush1.bf16.msra.mxu0 0
        %818 = vmatprep.subr.bf16.mxu0 0
        %819 = vmatpush1.bf16.msra.mxu0 0
        %820 = vmatprep.subr.bf16.mxu0 0
        %821 = vmatpush1.bf16.msra.mxu0 0
        %822 = vmatprep.subr.bf16.mxu0 0
        %823 = vmatpush1.bf16.msra.mxu0 0
        %824 = vmatprep.mubr.bf16.mxu0 0
        %825 = vmatmul.mubr.bf16.gmra.mrb[0].mxu0 %v790
        %v826 = vpop.f32.mrb[0].mxu0
        %v827 = vadd.f32 0.0, %v826
        %v828 = vpop.f32.mrb[0].mxu0
        %v829 = vpop.f32.mrb[0].mxu0
        %v830 = vpop.f32.mrb[0].mxu0
        %831 = vdwg.mxu0
        %v832 = vadd.f32 %v784, %v827
        %v833 = vxor.u32 %v832, 2147483648
        %v834 = vmul.f32 %v833, 1.442695
        %v835 = vpow.pop %v834
        %v836 = vadd.f32 %v835, 1.0
        %v837 = vrcp.pop %v836
        %v838 = vmul.f32 1.0, %v837
        %v839 = vtanh.pop %v832
        %v840 = vmul.f32 %v838, %v770
        %842 = vrot.lane.b32.xlu0 %v839, 32
        %v843 = vpop.permute.xlu0 %842
        %v845 = vmul.f32 %v838, %v843
        %847 = vrot.lane.b32.xlu0 %v845, 32
        %v848 = vpop.permute.xlu0 %847
        %v850 = vadd.f32 %v840, %v848
        %v851 = vtanh.pop %v850
        %853 = vrot.lane.b32.xlu0 %v851, 32
        %v854 = vpop.permute.xlu0 %853
        %v856 = vmul.f32 %v838, %v854
        %858 = vrot.lane.b32.xlu0 %v856, 64
        %v859 = vpop.permute.xlu0 %858
        %s861 = scalar_lea.vmem [#allocation4], 40
        %862 = vst.msk [vmem:[%s861] sm:$0xff] %vm385, %v859
        %s863 = scalar_lea.vmem %s308, 48 [#allocation6]
        %v864 = vld [vmem:[%s863] sm:$0xff]
        %v865 = vpack.c.bf16 %v856, %v856
        %867 = vrot.lane.b32.xlu0 %v865, 64
        %v868 = vpop.permute.xlu0 %867
        %v870 = vsel %vm385, %v868, 0
        %872 = vmatprep.subr.bf16.mxu0 0
        %873 = vmatpush1.bf16.msra.mxu0 %v381
        %874 = vmatprep.subr.bf16.mxu0 0
        %875 = vmatpush1.bf16.msra.mxu0 %v382
        %876 = vmatprep.subr.bf16.mxu0 0
        %877 = vmatpush1.bf16.msra.mxu0 0
        %878 = vmatprep.subr.bf16.mxu0 0
        %879 = vmatpush1.bf16.msra.mxu0 0
        %880 = vmatprep.subr.bf16.mxu0 0
        %881 = vmatpush1.bf16.msra.mxu0 0
        %882 = vmatprep.subr.bf16.mxu0 0
        %883 = vmatpush1.bf16.msra.mxu0 0
        %884 = vmatprep.subr.bf16.mxu0 0
        %885 = vmatpush1.bf16.msra.mxu0 0
        %886 = vmatprep.subr.bf16.mxu0 0
        %887 = vmatpush1.bf16.msra.mxu0 0
        %888 = vmatprep.subr.bf16.mxu0 0
        %889 = vmatpush1.bf16.msra.mxu0 0
        %890 = vmatprep.subr.bf16.mxu0 0
        %891 = vmatpush1.bf16.msra.mxu0 0
        %892 = vmatprep.subr.bf16.mxu0 0
        %893 = vmatpush1.bf16.msra.mxu0 0
        %894 = vmatprep.subr.bf16.mxu0 0
        %895 = vmatpush1.bf16.msra.mxu0 0
        %896 = vmatprep.subr.bf16.mxu0 0
        %897 = vmatpush1.bf16.msra.mxu0 0
        %898 = vmatprep.subr.bf16.mxu0 0
        %899 = vmatpush1.bf16.msra.mxu0 0
        %900 = vmatprep.subr.bf16.mxu0 0
        %901 = vmatpush1.bf16.msra.mxu0 0
        %902 = vmatprep.subr.bf16.mxu0 0
        %903 = vmatpush1.bf16.msra.mxu0 0
        %904 = vmatprep.mubr.bf16.mxu0 0
        %905 = vmatmul.mubr.bf16.gmra.mrb[0].mxu0 %v870
        %v906 = vpop.f32.mrb[0].mxu0
        %v907 = vadd.f32 0.0, %v906
        %v908 = vpop.f32.mrb[0].mxu0
        %v909 = vpop.f32.mrb[0].mxu0
        %v910 = vpop.f32.mrb[0].mxu0
        %911 = vdwg.mxu0
        %v912 = vadd.f32 %v864, %v907
        %v913 = vxor.u32 %v912, 2147483648
        %v914 = vmul.f32 %v913, 1.442695
        %v915 = vpow.pop %v914
        %v916 = vadd.f32 %v915, 1.0
        %v917 = vrcp.pop %v916
        %v918 = vmul.f32 1.0, %v917
        %v919 = vtanh.pop %v912
        %v920 = vmul.f32 %v918, %v850
        %922 = vrot.lane.b32.xlu0 %v919, 32
        %v923 = vpop.permute.xlu0 %922
        %v925 = vmul.f32 %v918, %v923
        %927 = vrot.lane.b32.xlu0 %v925, 32
        %v928 = vpop.permute.xlu0 %927
        %v930 = vadd.f32 %v920, %v928
        %v931 = vtanh.pop %v930
        %933 = vrot.lane.b32.xlu0 %v931, 32
        %v934 = vpop.permute.xlu0 %933
        %v936 = vmul.f32 %v918, %v934
        %938 = vrot.lane.b32.xlu0 %v936, 64
        %v939 = vpop.permute.xlu0 %938
        %s941 = scalar_lea.vmem [#allocation4], 48
        %942 = vst.msk [vmem:[%s941] sm:$0xff] %vm385, %v939
        %s943 = scalar_lea.vmem %s308, 56 [#allocation6]
        %v944 = vld [vmem:[%s943] sm:$0xff]
        %v945 = vpack.c.bf16 %v936, %v936
        %947 = vrot.lane.b32.xlu0 %v945, 64
        %v948 = vpop.permute.xlu0 %947
        %v950 = vsel %vm385, %v948, 0
        %952 = vmatprep.subr.bf16.mxu0 0
        %953 = vmatpush1.bf16.msra.mxu0 %v381
        %954 = vmatprep.subr.bf16.mxu0 0
        %955 = vmatpush1.bf16.msra.mxu0 %v382
        %956 = vmatprep.subr.bf16.mxu0 0
        %957 = vmatpush1.bf16.msra.mxu0 0
        %958 = vmatprep.subr.bf16.mxu0 0
        %959 = vmatpush1.bf16.msra.mxu0 0
        %960 = vmatprep.subr.bf16.mxu0 0
        %961 = vmatpush1.bf16.msra.mxu0 0
        %962 = vmatprep.subr.bf16.mxu0 0
        %963 = vmatpush1.bf16.msra.mxu0 0
        %964 = vmatprep.subr.bf16.mxu0 0
        %965 = vmatpush1.bf16.msra.mxu0 0
        %966 = vmatprep.subr.bf16.mxu0 0
        %967 = vmatpush1.bf16.msra.mxu0 0
        %968 = vmatprep.subr.bf16.mxu0 0
        %969 = vmatpush1.bf16.msra.mxu0 0
        %970 = vmatprep.subr.bf16.mxu0 0
        %971 = vmatpush1.bf16.msra.mxu0 0
        %972 = vmatprep.subr.bf16.mxu0 0
        %973 = vmatpush1.bf16.msra.mxu0 0
        %974 = vmatprep.subr.bf16.mxu0 0
        %975 = vmatpush1.bf16.msra.mxu0 0
        %976 = vmatprep.subr.bf16.mxu0 0
        %977 = vmatpush1.bf16.msra.mxu0 0
        %978 = vmatprep.subr.bf16.mxu0 0
        %979 = vmatpush1.bf16.msra.mxu0 0
        %980 = vmatprep.subr.bf16.mxu0 0
        %981 = vmatpush1.bf16.msra.mxu0 0
        %982 = vmatprep.subr.bf16.mxu0 0
        %983 = vmatpush1.bf16.msra.mxu0 0
        %984 = vmatprep.mubr.bf16.mxu0 0
        %985 = vmatmul.mubr.bf16.gmra.mrb[0].mxu0 %v950
        %v986 = vpop.f32.mrb[0].mxu0
        %v987 = vadd.f32 0.0, %v986
        %v988 = vpop.f32.mrb[0].mxu0
        %v989 = vpop.f32.mrb[0].mxu0
        %v990 = vpop.f32.mrb[0].mxu0
        %991 = vdwg.mxu0
        %v992 = vadd.f32 %v944, %v987
        %v993 = vxor.u32 %v992, 2147483648
        %v994 = vmul.f32 %v993, 1.442695
        %v995 = vpow.pop %v994
        %v996 = vadd.f32 %v995, 1.0
        %v997 = vrcp.pop %v996
        %v998 = vmul.f32 1.0, %v997
        %v999 = vtanh.pop %v992
        %v1000 = vmul.f32 %v998, %v930
        %1002 = vrot.lane.b32.xlu0 %v999, 32
        %v1003 = vpop.permute.xlu0 %1002
        %v1005 = vmul.f32 %v998, %v1003
        %1007 = vrot.lane.b32.xlu0 %v1005, 32
        %v1008 = vpop.permute.xlu0 %1007
        %v1010 = vadd.f32 %v1000, %v1008
        %v1011 = vtanh.pop %v1010
        %1013 = vrot.lane.b32.xlu0 %v1011, 32
        %v1014 = vpop.permute.xlu0 %1013
        %v1016 = vmul.f32 %v998, %v1014
        %1018 = vrot.lane.b32.xlu0 %v1016, 64
        %v1019 = vpop.permute.xlu0 %1018
        %s1021 = scalar_lea.vmem [#allocation4], 56
        %1022 = vst.msk [vmem:[%s1021] sm:$0xff] %vm385, %v1019
        %1023 = vst.msk [vmem:[#allocation2] sm:$0xff] %vm385, %v1019
        %1025 = vrot.lane.b32.xlu0 %v1010, 96
        %v1026 = vpop.permute.xlu0 %1025
        %1028 = vst.msk [vmem:[#allocation3] sm:$0xff] %vm385, %v1026
        %v1029 = vld [vmem:[#allocation4] sm:$0xff]
        %v1030 = vld [vmem:[#allocation4 + $0x8] sm:$0xff]
        %v1031 = vld [vmem:[#allocation4 + $0x10] sm:$0xff]
        %v1032 = vld [vmem:[#allocation4 + $0x18] sm:$0xff]
        %v1033 = vld [vmem:[#allocation4 + $0x20] sm:$0xff]
        %v1034 = vld [vmem:[#allocation4 + $0x28] sm:$0xff]
        %v1035 = vld [vmem:[#allocation4 + $0x30] sm:$0xff]
        %v1036 = vld [vmem:[#allocation4 + $0x38] sm:$0xff]
        %v1038 = vlaneseq
        %v1039 = vshrl.u32 %v1038, 7
        %v1040 = vsub.s32 0, %v1039
        %v1041 = vrot.slane %v368, %v1040
        %v1044 = vsel %vm385, %v1029, 0
        %v1047 = vsel %vm385, %v1030, 0
        %v1050 = vsel %vm385, %v1031, 0
        %v1053 = vsel %vm385, %v1032, 0
        %v1056 = vsel %vm385, %v1033, 0
        %v1059 = vsel %vm385, %v1034, 0
        %v1062 = vsel %vm385, %v1035, 0
        %v1065 = vsel %vm385, %v1036, 0
        %1067 = vmatprep.subr.mxu0 0.0
        %1068 = vmatpush1.msra.mxu0 %v364
        %1069 = vmatprep.subr.mxu0 0.0
        %1070 = vmatpush1.msra.mxu0 %v365
        %1071 = vmatprep.subr.mxu0 0.0
        %1072 = vmatpush1.msra.mxu0 %v366
        %1073 = vmatprep.subr.mxu0 0.0
        %1074 = vmatpush1.msra.mxu0 %v367
        %1075 = vmatprep.subr.mxu0 0.0
        %1076 = vmatpush1.msra.mxu0 0.0
        %1077 = vmatprep.subr.mxu0 0.0
        %1078 = vmatpush1.msra.mxu0 0.0
        %1079 = vmatprep.subr.mxu0 0.0
        %1080 = vmatpush1.msra.mxu0 0.0
        %1081 = vmatprep.subr.mxu0 0.0
        %1082 = vmatpush1.msra.mxu0 0.0
        %1083 = vmatprep.subr.mxu0 0.0
        %1084 = vmatpush1.msra.mxu0 0.0
        %1085 = vmatprep.subr.mxu0 0.0
        %1086 = vmatpush1.msra.mxu0 0.0
        %1087 = vmatprep.subr.mxu0 0.0
        %1088 = vmatpush1.msra.mxu0 0.0
        %1089 = vmatprep.subr.mxu0 0.0
        %1090 = vmatpush1.msra.mxu0 0.0
        %1091 = vmatprep.subr.mxu0 0.0
        %1092 = vmatpush1.msra.mxu0 0.0
        %1093 = vmatprep.subr.mxu0 0.0
        %1094 = vmatpush1.msra.mxu0 0.0
        %1095 = vmatprep.subr.mxu0 0.0
        %1096 = vmatpush1.msra.mxu0 0.0
        %1097 = vmatprep.subr.mxu0 0.0
        %1098 = vmatpush1.msra.mxu0 0.0
        %1099 = vmatprep.subr.mxu0 0.0
        %1100 = vmatpush1.msra.mxu0 0.0
        %1101 = vmatprep.subr.mxu0 0.0
        %1102 = vmatpush1.msra.mxu0 0.0
        %1103 = vmatprep.subr.mxu0 0.0
        %1104 = vmatpush1.msra.mxu0 0.0
        %1105 = vmatprep.subr.mxu0 0.0
        %1106 = vmatpush1.msra.mxu0 0.0
        %1107 = vmatprep.subr.mxu0 0.0
        %1108 = vmatpush1.msra.mxu0 0.0
        %1109 = vmatprep.subr.mxu0 0.0
        %1110 = vmatpush1.msra.mxu0 0.0
        %1111 = vmatprep.subr.mxu0 0.0
        %1112 = vmatpush1.msra.mxu0 0.0
        %1113 = vmatprep.subr.mxu0 0.0
        %1114 = vmatpush1.msra.mxu0 0.0
        %1115 = vmatprep.subr.mxu0 0.0
        %1116 = vmatpush1.msra.mxu0 0.0
        %1117 = vmatprep.subr.mxu0 0.0
        %1118 = vmatpush1.msra.mxu0 0.0
        %1119 = vmatprep.subr.mxu0 0.0
        %1120 = vmatpush1.msra.mxu0 0.0
        %1121 = vmatprep.subr.mxu0 0.0
        %1122 = vmatpush1.msra.mxu0 0.0
        %1123 = vmatprep.subr.mxu0 0.0
        %1124 = vmatpush1.msra.mxu0 0.0
        %1125 = vmatprep.subr.mxu0 0.0
        %1126 = vmatpush1.msra.mxu0 0.0
        %1127 = vmatprep.subr.mxu0 0.0
        %1128 = vmatpush1.msra.mxu0 0.0
        %1129 = vmatprep.subr.mxu0 0.0
        %1130 = vmatpush1.msra.mxu0 0.0
        %1131 = vmatprep.mubr.f32.mxu0 0.0
        %1132 = vmatmul.mubr.f32.gmra.mrb[0].mxu0 %v1044
        %v1133 = vpop.f32.mrb[0].mxu0
        %v1134 = vadd.f32 %v1041, %v1133
        %v1135 = vpop.f32.mrb[0].mxu0
        %1136 = vmatprep.mubr.f32.mxu0 0.0
        %1137 = vmatmul.mubr.f32.gmra.mrb[0].mxu0 %v1047
        %v1138 = vpop.f32.mrb[0].mxu0
        %v1139 = vadd.f32 %v1041, %v1138
        %v1140 = vpop.f32.mrb[0].mxu0
        %1141 = vmatprep.mubr.f32.mxu0 0.0
        %1142 = vmatmul.mubr.f32.gmra.mrb[0].mxu0 %v1050
        %v1143 = vpop.f32.mrb[0].mxu0
        %v1144 = vadd.f32 %v1041, %v1143
        %v1145 = vpop.f32.mrb[0].mxu0
        %1146 = vmatprep.mubr.f32.mxu0 0.0
        %1147 = vmatmul.mubr.f32.gmra.mrb[0].mxu0 %v1053
        %v1148 = vpop.f32.mrb[0].mxu0
        %v1149 = vadd.f32 %v1041, %v1148
        %v1150 = vpop.f32.mrb[0].mxu0
        %1151 = vmatprep.mubr.f32.mxu0 0.0
        %1152 = vmatmul.mubr.f32.gmra.mrb[0].mxu0 %v1056
        %v1153 = vpop.f32.mrb[0].mxu0
        %v1154 = vadd.f32 %v1041, %v1153
        %v1155 = vpop.f32.mrb[0].mxu0
        %1156 = vmatprep.mubr.f32.mxu0 0.0
        %1157 = vmatmul.mubr.f32.gmra.mrb[0].mxu0 %v1059
        %v1158 = vpop.f32.mrb[0].mxu0
        %v1159 = vadd.f32 %v1041, %v1158
        %v1160 = vpop.f32.mrb[0].mxu0
        %1161 = vmatprep.mubr.f32.mxu0 0.0
        %1162 = vmatmul.mubr.f32.gmra.mrb[0].mxu0 %v1062
        %v1163 = vpop.f32.mrb[0].mxu0
        %v1164 = vadd.f32 %v1041, %v1163
        %v1165 = vpop.f32.mrb[0].mxu0
        %1166 = vmatprep.mubr.f32.mxu0 0.0
        %1167 = vmatmul.mubr.f32.gmra.mrb[0].mxu0 %v1065
        %v1168 = vpop.f32.mrb[0].mxu0
        %v1169 = vadd.f32 %v1041, %v1168
        %v1170 = vpop.f32.mrb[0].mxu0
        %1171 = vdwg.mxu0
        %vm1172 = vcmask 7168
        %1173 = vst.msk [vmem:[%s329] sm:$0xff] %vm1172, %v1134
        %1174 = vst.msk [vmem:[%s329 + $0x8] sm:$0xff] %vm1172, %v1139
        %1175 = vst.msk [vmem:[%s329 + $0x10] sm:$0xff] %vm1172, %v1144
        %1176 = vst.msk [vmem:[%s329 + $0x18] sm:$0xff] %vm1172, %v1149
        %1177 = vst.msk [vmem:[%s329 + $0x20] sm:$0xff] %vm1172, %v1154
        %1178 = vst.msk [vmem:[%s329 + $0x28] sm:$0xff] %vm1172, %v1159
        %1179 = vst.msk [vmem:[%s329 + $0x30] sm:$0xff] %vm1172, %v1164
        %1180 = vst.msk [vmem:[%s329 + $0x38] sm:$0xff] %vm1172, %v1169
        // Predicated region
        $region79: #{lstm_model_forward.7} parent=69 // pred_check
          %p1181 = pneg %p353
        $region80: #{lstm_model_forward.7} parent=69 // pred_check_branch
          %1183 = sbr.rel (%p1181) target = $region82
        $region81: #{lstm_model_forward.7} parent=69 // pred_region
          %1184 = vst.msk [vmem:[%s347] sm:$0xff] %vm385, %v1019
          %1185 = vst.msk [vmem:[%s351] sm:$0xff] %vm385, %v1026
        $region82: #{lstm_model_forward.7} parent=69 // pred_fallthru
          _
        %s1186 = sand.u32 %s133, 1
        %s1187 = sand.u32 %s133, 1
        %s1188 = smul.addr %s1187, 64
        %s1189 = scalar_lea.vmem [#allocation7], %s1188
        %p1190 = scmp.lt.s32.totalorder %s24, 1
        %s1191 = scalar_select %p1190, %s24, 1
        %s1192 = smul.addr %s1191, 8
        %s1193 = scalar_lea.vmem %s5, %s1192
        %p1194 = scmp.lt.s32.totalorder %s24, 1
        %s1195 = scalar_select %p1194, %s24, 1
        %s1196 = smul.addr %s1195, 8
        %s1197 = scalar_lea.vmem %s6, %s1196
        // Predicated region
        $region83: #{lstm_model_forward.7} parent=69 // pred_check
          %p1198 = pneg %p143
        $region84: #{lstm_model_forward.7} parent=69 // pred_check_branch
          %1200 = sbr.rel (%p1198) target = $region86
        $region85: #{lstm_model_forward.7} parent=69 // pred_region
          %s1201 = smul.u32 8, %s25
          %s1202 = smul.addr %s1201, 2
          %s1203 = sadd.s32 %s24, %s1202
          %s1204 = smul.addr %s1203, 8
          %s1205 = scalar_lea.vmem %s4, %s1204
          // Predicated region
          $region87: #{lstm_model_forward.7} parent=85 // pred_check
            _
          $region88: #{lstm_model_forward.7} parent=85 // pred_check_branch
            %1207 = sbr.rel (0) target = $region90
          $region89: #{lstm_model_forward.7} parent=85 // pred_region
            // Predicated region
            $region91: #{lstm_model_forward.7} parent=89 // pred_check
              _
            $region92: #{lstm_model_forward.7} parent=89 // pred_check_branch
              %1209 = sbr.rel (0) target = $region94
            $region93: #{lstm_model_forward.7} parent=89 // pred_region
              // Predicated region
              $region106: #{lstm_model_forward.7} parent=93 // pred_check
                _
              $region107: #{lstm_model_forward.7} parent=93 // pred_check_branch
                %1238 = sbr.rel (0) target = $region109
              $region108: #{lstm_model_forward.7} parent=93 // pred_region
                loop: start=0, step=1, limit=1
                $region110: #{lstm_model_forward.7} parent=108 // loop_pre_header
                  _
                $region111: #{lstm_model_forward.7} parent=108 // loop_header
                  %s1240 = sphi 0, %s1244
                  %p1241 = scmp.ge.s32.totalorder %s1240, 1
                  %s1245 = sphi %s1189, %s1189
                  %s1246 = sphi %s1205, %s1205
                $region112: #{lstm_model_forward.7} parent=108 // loop_header_branch
                  %1243 = sbr.rel (%p1241) target = $region116
                $region113: #{lstm_model_forward.7} parent=108 // loop_body
                  %v1247 = vld [vmem:[%s1245] sm:$0xff]
                  %1248 = vst [vmem:[%s1246] sm:$0xff] %v1247
                  %v1249 = vld [vmem:[%s1245 + $0x8] sm:$0xff]
                  %1250 = vst [vmem:[%s1246 + $0x10] sm:$0xff] %v1249
                  %v1251 = vld [vmem:[%s1245 + $0x10] sm:$0xff]
                  %1252 = vst [vmem:[%s1246 + $0x20] sm:$0xff] %v1251
                  %v1253 = vld [vmem:[%s1245 + $0x18] sm:$0xff]
                  %1254 = vst [vmem:[%s1246 + $0x30] sm:$0xff] %v1253
                  %v1255 = vld [vmem:[%s1245 + $0x20] sm:$0xff]
                  %1256 = vst [vmem:[%s1246 + $0x40] sm:$0xff] %v1255
                  %v1257 = vld [vmem:[%s1245 + $0x28] sm:$0xff]
                  %1258 = vst [vmem:[%s1246 + $0x50] sm:$0xff] %v1257
                  %v1259 = vld [vmem:[%s1245 + $0x30] sm:$0xff]
                  %1260 = vst [vmem:[%s1246 + $0x60] sm:$0xff] %v1259
                  %v1261 = vld [vmem:[%s1245 + $0x38] sm:$0xff]
                  %1262 = vst [vmem:[%s1246 + $0x70] sm:$0xff] %v1261
                $region114: #{lstm_model_forward.7} parent=108 // loop_footer
                  %s1244 = sadd.s32 1, %s1240
                $region115: #{lstm_model_forward.7} parent=108 // loop_footer_branch
                  %1239 = sbr.rel target = $region111
                $region116: #{lstm_model_forward.7} parent=108 // loop_exit
                  _
              $region109: #{lstm_model_forward.7} parent=93 // pred_fallthru
                _
              // Predicated region
              $region117: #{lstm_model_forward.7} parent=93 // pred_check
                _
              $region118: #{lstm_model_forward.7} parent=93 // pred_check_branch
                %1264 = sbr.rel target = $region120
              $region119: #{lstm_model_forward.7} parent=93 // pred_region
                _
              $region120: #{lstm_model_forward.7} parent=93 // pred_fallthru
                _
            $region94: #{lstm_model_forward.7} parent=89 // pred_fallthru
              _
            // Predicated region
            $region95: #{lstm_model_forward.7} parent=89 // pred_check
              _
            $region96: #{lstm_model_forward.7} parent=89 // pred_check_branch
              %1211 = sbr.rel target = $region98
            $region97: #{lstm_model_forward.7} parent=89 // pred_region
              loop: start=0, step=1, limit=1
              $region99: #{lstm_model_forward.7} parent=97 // loop_pre_header
                _
              $region100: #{lstm_model_forward.7} parent=97 // loop_header
                %s1214 = sphi 0, %s1218
                %p1215 = scmp.ge.s32.totalorder %s1214, 1
                %s1219 = sphi %s1189, %s1189
                %s1220 = sphi %s1205, %s1205
              $region101: #{lstm_model_forward.7} parent=97 // loop_header_branch
                %1217 = sbr.rel (%p1215) target = $region105
              $region102: #{lstm_model_forward.7} parent=97 // loop_body
                %v1221 = vld [vmem:[%s1219] sm:$0xff]
                %1222 = vst [vmem:[%s1220] sm:$0xff] %v1221
                %v1223 = vld [vmem:[%s1219 + $0x8] sm:$0xff]
                %1224 = vst [vmem:[%s1220 + $0x10] sm:$0xff] %v1223
                %v1225 = vld [vmem:[%s1219 + $0x10] sm:$0xff]
                %1226 = vst [vmem:[%s1220 + $0x20] sm:$0xff] %v1225
                %v1227 = vld [vmem:[%s1219 + $0x18] sm:$0xff]
                %1228 = vst [vmem:[%s1220 + $0x30] sm:$0xff] %v1227
                %v1229 = vld [vmem:[%s1219 + $0x20] sm:$0xff]
                %1230 = vst [vmem:[%s1220 + $0x40] sm:$0xff] %v1229
                %v1231 = vld [vmem:[%s1219 + $0x28] sm:$0xff]
                %1232 = vst [vmem:[%s1220 + $0x50] sm:$0xff] %v1231
                %v1233 = vld [vmem:[%s1219 + $0x30] sm:$0xff]
                %1234 = vst [vmem:[%s1220 + $0x60] sm:$0xff] %v1233
                %v1235 = vld [vmem:[%s1219 + $0x38] sm:$0xff]
                %1236 = vst [vmem:[%s1220 + $0x70] sm:$0xff] %v1235
              $region103: #{lstm_model_forward.7} parent=97 // loop_footer
                %s1218 = sadd.s32 1, %s1214
              $region104: #{lstm_model_forward.7} parent=97 // loop_footer_branch
                %1213 = sbr.rel target = $region100
              $region105: #{lstm_model_forward.7} parent=97 // loop_exit
                _
            $region98: #{lstm_model_forward.7} parent=89 // pred_fallthru
              _
          $region90: #{lstm_model_forward.7} parent=85 // pred_fallthru
            _
          %1265 = vnop
        $region86: #{lstm_model_forward.7} parent=69 // pred_fallthru
          _
        // Predicated region
        $region121: #{lstm_model_forward.7} parent=69 // pred_check
          %p1266 = pneg %p169
        $region122: #{lstm_model_forward.7} parent=69 // pred_check_branch
          %1268 = sbr.rel (%p1266) target = $region124
        $region123: #{lstm_model_forward.7} parent=69 // pred_region
          _
        $region124: #{lstm_model_forward.7} parent=69 // pred_fallthru
          _
        // Predicated region
        $region125: #{lstm_model_forward.7} parent=69 // pred_check
          %p1269 = pneg %p195
        $region126: #{lstm_model_forward.7} parent=69 // pred_check_branch
          %1271 = sbr.rel (%p1269) target = $region128
        $region127: #{lstm_model_forward.7} parent=69 // pred_region
          _
        $region128: #{lstm_model_forward.7} parent=69 // pred_fallthru
          _
      $region70: #{lstm_model_forward.7} parent=5 // pred_fallthru
        _
      %p1272 = scmp.le.s32.totalorder 2, %s15
      // Predicated region
      $region129: #{lstm_model_forward.7} parent=5 // pred_check
        %p1273 = pneg %p1272
      $region130: #{lstm_model_forward.7} parent=5 // pred_check_branch
        %1275 = sbr.rel (%p1273) target = $region132
      $region131: #{lstm_model_forward.7} parent=5 // pred_region
        %s1276 = ssub.s32 %s15, 2
        // Predicated region
        $region133: #{lstm_model_forward.7} parent=131 // pred_check
          %p1277 = pneg %p149
        $region134: #{lstm_model_forward.7} parent=131 // pred_check_branch
          %1279 = sbr.rel (%p1277) target = $region136
        $region135: #{lstm_model_forward.7} parent=131 // pred_region
          %s1280 = sand.u32 %s134, 1
          %s1281 = sand.u32 %s134, 1
          %s1282 = smul.addr %s1281, 64
          %s1283 = scalar_lea.vmem [#allocation7], %s1282
        $region136: #{lstm_model_forward.7} parent=131 // pred_fallthru
          _
        // Predicated region
        $region137: #{lstm_model_forward.7} parent=131 // pred_check
          %p1284 = pneg %p175
        $region138: #{lstm_model_forward.7} parent=131 // pred_check_branch
          %1286 = sbr.rel (%p1284) target = $region140
        $region139: #{lstm_model_forward.7} parent=131 // pred_region
          %p1287 = scmp.lt.s32.totalorder %s26, 1
          %s1288 = scalar_select %p1287, %s26, 1
          %s1289 = smul.addr %s1288, 8
          %s1290 = scalar_lea.vmem %s5, %s1289
        $region140: #{lstm_model_forward.7} parent=131 // pred_fallthru
          _
        // Predicated region
        $region141: #{lstm_model_forward.7} parent=131 // pred_check
          %p1291 = pneg %p201
        $region142: #{lstm_model_forward.7} parent=131 // pred_check_branch
          %1293 = sbr.rel (%p1291) target = $region144
        $region143: #{lstm_model_forward.7} parent=131 // pred_region
          %p1294 = scmp.lt.s32.totalorder %s26, 1
          %s1295 = scalar_select %p1294, %s26, 1
          %s1296 = smul.addr %s1295, 8
          %s1297 = scalar_lea.vmem %s6, %s1296
        $region144: #{lstm_model_forward.7} parent=131 // pred_fallthru
          _
      $region132: #{lstm_model_forward.7} parent=5 // pred_fallthru
        _
    $region6: #{lstm_model_forward.7} parent=1 // loop_footer
      %s19 = sadd.s32 1, %s15
    $region7: #{lstm_model_forward.7} parent=1 // loop_footer_branch
      %14 = sbr.rel target = $region3
    $region8: #{lstm_model_forward.7} parent=1 // loop_exit
      _

</llo_original>
